<compile_context>
chip_gen: v7x
topology: tpu7x:2x2x1
jax: 0.10.0
libtpu: 0.0.40
codegen_flags: <defaults>
</compile_context>

<pallas_src>
import jax
import jax.numpy as jnp
from jax import lax
from jax.experimental import pallas as pl
from jax.experimental.pallas import tpu as pltpu


REL_IN = 51 + 151 + 151            # 353 (one-hot part of the embedding input)
REL_PAD = 384                      # 353 padded up to a multiple of 128
UNION_IN = 4096                    # fg_union_feats width (already 32 * 128)
K_RELUNI = REL_PAD + UNION_IN      # 4480 = K of the embedding matmul

# Order of the small (<=128x128) layers inside the stacked weight/bias slabs.
LAYER_ORDER = [
    "se1", "se2", "se3", "se_mu", "se_lv",
    "ve1", "ve2", "ve3", "ve_mu", "ve_lv",
    "sd0", "sd1", "sd2", "sd3",
    "vd0_z", "vd0_c", "vd1", "vd2", "vd3",
]
LIDX = {n: i for i, n in enumerate(LAYER_ORDER)}
B_EMB_IDX = len(LAYER_ORDER)       # bias-only row for the embedding layer


def _cdiv(a, b):
    return (a + b - 1) // b


def _round_up(a, b):
    return _cdiv(a, b) * b


# --------------------------------------------------------------------------- #
# Fused kernel factory (all dims are Python constants captured by closure)
# --------------------------------------------------------------------------- #
def _make_apfg_kernel(SD, L, FD, PADN, A_W, B_W, C_W):
    f32 = jnp.float32
    bf16 = jnp.bfloat16

    def kernel(x_ref, eps_ref, we_ref, w_ref, b_ref, outa_ref, outb_ref, outc_ref):
        M = x_ref.shape[0]

        def leaky(y):                                    # LeakyReLU(0.1): one vmul+vmax
            return jnp.maximum(y, 0.1 * y)

        def lin(x_bf, name):                             # bf16 matmul, f32 accumulate
            i = LIDX[name]
            y = jnp.dot(x_bf, w_ref[i], preferred_element_type=f32)
            return y + b_ref[i:i + 1, :]

        def lin_act(x_bf, name):
            return leaky(lin(x_bf, name)).astype(bf16)

        # ---- packed-input slices (all offsets are multiples of 128 lanes) ----
        rel_uni = x_ref[:, 0:K_RELUNI]                   # (M, 4480) bf16: [rel|pad|union]
        feats = x_ref[:, K_RELUNI:K_RELUNI + PADN]       # (M, PADN) bf16, zeros >= FD
        eps_s = eps_ref[:, 0:PADN]                       # (M, PADN) f32, zeros >= L
        eps_v = eps_ref[:, PADN:2 * PADN]

        # ---- embedding: lrelu(cat([rel_one_hot, fg_union]) @ We + b) ----
        emb = jnp.dot(rel_uni, we_ref[...], preferred_element_type=f32)   # (M, SD)
        emb = emb + b_ref[B_EMB_IDX:B_EMB_IDX + 1, 0:SD]
        sem = leaky(emb)                                 # (M, SD) f32  (output)
        if SD < PADN:
            sem_pad = jnp.concatenate([sem, jnp.zeros((M, PADN - SD), f32)], axis=1)
        else:
            sem_pad = sem
        sem_bf = sem_pad.astype(bf16)                    # (M, PADN), zeros >= SD

        # ---- semantic encoder ----
        h = lin_act(sem_bf, "se1")
        h = lin_act(h, "se2")
        h = lin_act(h, "se3")
        mu_s = lin(h, "se_mu")                           # (M, PADN) f32, zeros >= L
        lv_s = lin(h, "se_lv")

        # ---- visual encoder ----
        h = lin_act(feats, "ve1")
        h = lin_act(h, "ve2")
        h = lin_act(h, "ve3")
        mu_v = lin(h, "ve_mu")
        lv_v = lin(h, "ve_lv")

        # ---- reparameterize (padded lanes stay zero: eps=0, exp(0)=1, mu=0) ----
        z_s = (eps_s * jnp.exp(0.5 * lv_s) + mu_s).astype(bf16)   # (M, PADN)
        z_v = (eps_v * jnp.exp(0.5 * lv_v) + mu_v).astype(bf16)

        # ---- semantic decoder, run per z-half (no sublane concat) ----
        def sem_dec(z):
            x = lin_act(z, "sd0")
            x = lin_act(x, "sd1")
            x = lin_act(x, "sd2")
            return lin(x, "sd3")                         # (M, PADN) f32, zeros >= SD
        de1_s = sem_dec(z_s)
        de1_v = sem_dec(z_v)

        # ---- visual decoder: c-contribution (sem @ Wc) computed once, reused ----
        c_part = jnp.dot(sem_bf, w_ref[LIDX["vd0_c"]], preferred_element_type=f32)
        iz = LIDX["vd0_z"]

        def vis_dec(z):
            x = jnp.dot(z, w_ref[iz], preferred_element_type=f32) + c_part \
                + b_ref[iz:iz + 1, :]
            x = leaky(x).astype(bf16)
            x = lin_act(x, "vd1")
            x = lin_act(x, "vd2")
            return lin(x, "vd3")                         # (M, PADN) f32, zeros >= FD
        de2_s = vis_dec(z_s)
        de2_v = vis_dec(z_v)

        # ---- lane-dense packed writebacks (3 full-width output slabs) ----
        parts_a = [sem, mu_s[:, :L], lv_s[:, :L], mu_v[:, :L], lv_v[:, :L]]
        used_a = SD + 4 * L
        if used_a < A_W:
            parts_a.append(jnp.zeros((M, A_W - used_a), f32))
        outa_ref[...] = jnp.concatenate(parts_a, axis=1)

        parts_b = [de1_s[:, :SD], de1_v[:, :SD]]
        if 2 * SD < B_W:
            parts_b.append(jnp.zeros((M, B_W - 2 * SD), f32))
        outb_ref[...] = jnp.concatenate(parts_b, axis=1)

        parts_c = [de2_s[:, :FD], de2_v[:, :FD]]
        if 2 * FD < C_W:
            parts_c.append(jnp.zeros((M, C_W - 2 * FD), f32))
        outc_ref[...] = jnp.concatenate(parts_c, axis=1)

    return kernel


# --------------------------------------------------------------------------- #
# Parameter construction (mirrors weights_init: W ~ N(0, 0.02), b = 0)
# --------------------------------------------------------------------------- #
def init_raw_params(key, SD, L, FD):
    """Plain f32 (in, out) weights + (out,) biases; used for packing + reference."""
    specs = {
        "emb": (REL_IN + UNION_IN, SD),
        "se1": (SD, SD), "se2": (SD, SD // 2), "se3": (SD // 2, 2 * L),
        "se_mu": (2 * L, L), "se_lv": (2 * L, L),
        "ve1": (FD, FD), "ve2": (FD, FD // 2), "ve3": (FD // 2, 2 * L),
        "ve_mu": (2 * L, L), "ve_lv": (2 * L, L),
        "sd0": (L, 2 * L), "sd1": (2 * L, SD // 2), "sd2": (SD // 2, SD), "sd3": (SD, SD),
        "vd0": (L + SD, 2 * L), "vd1": (2 * L, FD // 2), "vd2": (FD // 2, FD), "vd3": (FD, FD),
    }
    keys = jax.random.split(key, len(specs))
    raw = {}
    for k, (name, (fi, fo)) in zip(keys, specs.items()):
        raw[name + "_w"] = 0.02 * jax.random.normal(k, (fi, fo), jnp.float32)
        raw[name + "_b"] = jnp.zeros((fo,), jnp.float32)
    return raw


def pack_params(raw, SD, L, FD):
    """Pack raw params into 3 DMA-friendly slabs (bf16 weights, f32 biases)."""
    PADN = 128 * _cdiv(max(FD, SD, 2 * L), 128)
    NW = len(LAYER_ORDER)

    # Embedding weight: rows [0:353]=rel part, [353:384]=0 (pads rel), rest=union part.
    we_emb = jnp.zeros((K_RELUNI, SD), jnp.float32)
    we_emb = we_emb.at[:REL_IN, :].set(raw["emb_w"][:REL_IN])
    we_emb = we_emb.at[REL_PAD:, :].set(raw["emb_w"][REL_IN:])

    small_w = {
        "se1": raw["se1_w"], "se2": raw["se2_w"], "se3": raw["se3_w"],
        "se_mu": raw["se_mu_w"], "se_lv": raw["se_lv_w"],
        "ve1": raw["ve1_w"], "ve2": raw["ve2_w"], "ve3": raw["ve3_w"],
        "ve_mu": raw["ve_mu_w"], "ve_lv": raw["ve_lv_w"],
        "sd0": raw["sd0_w"], "sd1": raw["sd1_w"], "sd2": raw["sd2_w"], "sd3": raw["sd3_w"],
        "vd0_z": raw["vd0_w"][:L], "vd0_c": raw["vd0_w"][L:],   # fold fc0 input concat
        "vd1": raw["vd1_w"], "vd2": raw["vd2_w"], "vd3": raw["vd3_w"],
    }
    small_b = {
        "se1": raw["se1_b"], "se2": raw["se2_b"], "se3": raw["se3_b"],
        "se_mu": raw["se_mu_b"], "se_lv": raw["se_lv_b"],
        "ve1": raw["ve1_b"], "ve2": raw["ve2_b"], "ve3": raw["ve3_b"],
        "ve_mu": raw["ve_mu_b"], "ve_lv": raw["ve_lv_b"],
        "sd0": raw["sd0_b"], "sd1": raw["sd1_b"], "sd2": raw["sd2_b"], "sd3": raw["sd3_b"],
        "vd0_z": raw["vd0_b"], "vd0_c": jnp.zeros((2 * L,), jnp.float32),
        "vd1": raw["vd1_b"], "vd2": raw["vd2_b"], "vd3": raw["vd3_b"],
    }

    w_stack = jnp.zeros((NW, PADN, PADN), jnp.float32)
    b_stack = jnp.zeros((_round_up(NW + 1, 8), PADN), jnp.float32)
    for i, name in enumerate(LAYER_ORDER):
        w = small_w[name]
        b = small_b[name]
        w_stack = w_stack.at[i, :w.shape[0], :w.shape[1]].set(w)
        b_stack = b_stack.at[i, :b.shape[0]].set(b)
    b_stack = b_stack.at[B_EMB_IDX, :SD].set(raw["emb_b"])

    return {"we_emb": we_emb.astype(jnp.bfloat16),
            "w_stack": w_stack.astype(jnp.bfloat16),
            "b_stack": b_stack}


# --------------------------------------------------------------------------- #
# Forward wrapper: one pallas_call, batch-tiled "parallel" grid
# --------------------------------------------------------------------------- #
def apfg_forward(params, feats, rel_one_hot, fg_union_feats, eps_semantic, eps_visual,
                 *, max_tile_m=128):
    """Mirrors APFG_MODEL.forward; eps_* replace torch.randn_like for determinism.
    max_tile_m: batch tile (128 matches v5e MXU; 256 also fine on v6e/v7x)."""
    B, FD = feats.shape
    L = eps_semantic.shape[1]
    SD = params["we_emb"].shape[1]
    PADN = params["w_stack"].shape[-1]
    NW = params["w_stack"].shape[0]
    NB = params["b_stack"].shape[0]
    K_IN = K_RELUNI + PADN

    A_W = _round_up(SD + 4 * L, 128)          # [sem | mu_s | lv_s | mu_v | lv_v]
    B_W = _round_up(2 * SD, 128)              # [de1_sem | de1_vis]
    C_W = _round_up(2 * FD, 128)              # [de2_sem | de2_vis]

    # Batch: pad to sublane granularity (>=8) and tile with a parallel grid.
    tile_m = min(_round_up(B, 8), max_tile_m)
    b_pad = _round_up(B, tile_m)
    grid = (b_pad // tile_m,)

    bf16 = jnp.bfloat16
    # One packed bf16 activation slab: [rel(353) | 0-pad | union(4096) | feats->PADN]
    x_in = jnp.zeros((b_pad, K_IN), bf16)
    x_in = x_in.at[:B, 0:REL_IN].set(rel_one_hot.astype(bf16))
    x_in = x_in.at[:B, REL_PAD:REL_PAD + UNION_IN].set(fg_union_feats.astype(bf16))
    x_in = x_in.at[:B, K_RELUNI:K_RELUNI + FD].set(feats.astype(bf16))

    # One f32 eps slab: [eps_semantic -> PADN | eps_visual -> PADN], zeros beyond L.
    eps_in = jnp.zeros((b_pad, 2 * PADN), jnp.float32)
    eps_in = eps_in.at[:B, 0:L].set(eps_semantic)
    eps_in = eps_in.at[:B, PADN:PADN + L].set(eps_visual)

    kernel = _make_apfg_kernel(SD, L, FD, PADN, A_W, B_W, C_W)

    out_shapes = (
        jax.ShapeDtypeStruct((b_pad, A_W), jnp.float32),
        jax.ShapeDtypeStruct((b_pad, B_W), jnp.float32),
        jax.ShapeDtypeStruct((b_pad, C_W), jnp.float32),
    )

    outa, outb, outc = pl.pallas_call(
        kernel,
        out_shape=out_shapes,
        grid=grid,
        in_specs=[
            pl.BlockSpec((tile_m, K_IN), lambda i: (i, 0)),          # activations
            pl.BlockSpec((tile_m, 2 * PADN), lambda i: (i, 0)),      # eps
            pl.BlockSpec((K_RELUNI, SD), lambda i: (0, 0)),          # embedding W (resident)
            pl.BlockSpec((NW, PADN, PADN), lambda i: (0, 0, 0)),     # stacked small W (resident)
            pl.BlockSpec((NB, PADN), lambda i: (0, 0)),              # stacked biases (resident)
        ],
        out_specs=(
            pl.BlockSpec((tile_m, A_W), lambda i: (i, 0)),
            pl.BlockSpec((tile_m, B_W), lambda i: (i, 0)),
            pl.BlockSpec((tile_m, C_W), lambda i: (i, 0)),
        ),
        compiler_params=pltpu.CompilerParams(
            dimension_semantics=("parallel",),
            vmem_limit_bytes=16 * 1024 * 1024,
        ),
    )(x_in, eps_in, params["we_emb"], params["w_stack"], params["b_stack"])

    sem = outa[:B, 0:SD]
    mu_s = outa[:B, SD:SD + L]
    lv_s = outa[:B, SD + L:SD + 2 * L]
    mu_v = outa[:B, SD + 2 * L:SD + 3 * L]
    lv_v = outa[:B, SD + 3 * L:SD + 4 * L]
    de1_s = outb[:B, 0:SD]
    de1_v = outb[:B, SD:2 * SD]
    de2_s = outc[:B, 0:FD]
    de2_v = outc[:B, FD:2 * FD]

    return [feats, sem, de1_s, de1_v, de2_s, de2_v, mu_s, lv_s, mu_v, lv_v]


# --------------------------------------------------------------------------- #
# Pure-JAX f32 reference (mirrors the PyTorch forward)
# --------------------------------------------------------------------------- #
def reference_forward(raw, feats, rel_one_hot, fg_union_feats, eps_s, eps_v):
    P = lax.Precision.HIGHEST

    def lin(x, w, b):
        return jnp.dot(x, w, precision=P) + b

    def lr(x):
        return jnp.maximum(x, 0.1 * x)

    sem = lr(lin(jnp.concatenate([rel_one_hot, fg_union_feats], axis=1),
                 raw["emb_w"], raw["emb_b"]))
    h = lr(lin(sem, raw["se1_w"], raw["se1_b"]))
    h = lr(lin(h, raw["se2_w"], raw["se2_b"]))
    h = lr(lin(h, raw["se3_w"], raw["se3_b"]))
    mu_s = lin(h, raw["se_mu_w"], raw["se_mu_b"])
    lv_s = lin(h, raw["se_lv_w"], raw["se_lv_b"])
    h = lr(lin(feats, raw["ve1_w"], raw["ve1_b"]))
    h = lr(lin(h, raw["ve2_w"], raw["ve2_b"]))
    h = lr(lin(h, raw["ve3_w"], raw["ve3_b"]))
    mu_v = lin(h, raw["ve_mu_w"], raw["ve_mu_b"])
    lv_v = lin(h, raw["ve_lv_w"], raw["ve_lv_b"])
    z_s = eps_s * jnp.exp(0.5 * lv_s) + mu_s
    z_v = eps_v * jnp.exp(0.5 * lv_v) + mu_v

    def sdec(z):
        x = lr(lin(z, raw["sd0_w"], raw["sd0_b"]))
        x = lr(lin(x, raw["sd1_w"], raw["sd1_b"]))
        x = lr(lin(x, raw["sd2_w"], raw["sd2_b"]))
        return lin(x, raw["sd3_w"], raw["sd3_b"])

    def vdec(z):
        x = lr(lin(jnp.concatenate([z, sem], axis=1), raw["vd0_w"], raw["vd0_b"]))
        x = lr(lin(x, raw["vd1_w"], raw["vd1_b"]))
        x = lr(lin(x, raw["vd2_w"], raw["vd2_b"]))
        return lin(x, raw["vd3_w"], raw["vd3_b"])

    return [feats, sem, sdec(z_s), sdec(z_v), vdec(z_s), vdec(z_v),
            mu_s, lv_s, mu_v, lv_v]


# --------------------------------------------------------------------------- #
# Main
# --------------------------------------------------------------------------- #
if __name__ == "__main__":
    SEMANTIC_DIM = 64          # cfg.MODEL.semantic_dim
    LATENT = 16                # cfg.MODEL.APFG_latent_size
    FEAT_DIM = 128             # cfg.MODEL.ROI_RELATION_HEAD.LAST_FEATS_DIM
    B = 2

    key = jax.random.PRNGKey(0)
    k_params, k_feats, k_rel, k_union, k_eps_s, k_eps_v = jax.random.split(key, 6)

    raw = init_raw_params(k_params, SEMANTIC_DIM, LATENT, FEAT_DIM)
    params = pack_params(raw, SEMANTIC_DIM, LATENT, FEAT_DIM)

    feats = jax.random.normal(k_feats, (B, FEAT_DIM), jnp.float32)
    rel_one_hot = jax.random.normal(k_rel, (B, REL_IN), jnp.float32)
    fg_union_feats = jax.random.normal(k_union, (B, UNION_IN), jnp.float32)
    eps_semantic = jax.random.normal(k_eps_s, (B, LATENT), jnp.float32)
    eps_visual = jax.random.normal(k_eps_v, (B, LATENT), jnp.float32)

    fwd = jax.jit(apfg_forward)
    outs = fwd(params, feats, rel_one_hot, fg_union_feats, eps_semantic, eps_visual)
    outs = [jax.block_until_ready(o) for o in outs]

    refs = reference_forward(raw, feats, rel_one_hot, fg_union_feats,
                             eps_semantic, eps_visual)

    names = ["feats", "semantic_embedding", "De1_z_semantic", "De1_z_visual",
             "De2_z_semantic", "De2_z_visual", "mu_semantic", "log_var_semantic",
             "mu_visual", "log_var_visual"]
    for n, got, want in zip(names, outs, refs):
        assert got.shape == want.shape, (n, got.shape, want.shape)
        assert bool(jnp.all(jnp.isfinite(got))), n
        # bf16 weights/activations with f32 accumulation -> loose tolerance vs f32 ref
        assert bool(jnp.allclose(got, want, rtol=1e-1, atol=3e-2)), (
            n, float(jnp.max(jnp.abs(got - want))))

    print("KERNEL_OK")
</pallas_src>

<mosaic_0001>
module attributes {stable_mosaic.version = 11 : i64} {
  func.func @kernel(%arg0: i32, %arg1: memref<8x4608xbf16, #tpu.memory_space<vmem>>, %arg2: memref<8x256xf32, #tpu.memory_space<vmem>>, %arg3: memref<4480x64xbf16, #tpu.memory_space<vmem>>, %arg4: memref<19x128x128xbf16, #tpu.memory_space<vmem>>, %arg5: memref<24x128xf32, #tpu.memory_space<vmem>>, %arg6: memref<8x128xf32, #tpu.memory_space<vmem>>, %arg7: memref<8x128xf32, #tpu.memory_space<vmem>>, %arg8: memref<8x256xf32, #tpu.memory_space<vmem>>) attributes {dimension_semantics = [#tpu.dimension_semantics<parallel>], iteration_bounds = array<i64: 1>, scalar_prefetch = 0 : i64, scratch_operands = 0 : i64, tpu.core_type = #tpu.core_type<tc>, window_params = [{transform_indices = @transform_0, window_bounds = array<i64: 8, 4608>}, {transform_indices = @transform_1, window_bounds = array<i64: 8, 256>}, {pipeline_mode = #tpu.pipeline_mode<synchronous>, transform_indices = @transform_2, window_bounds = array<i64: 4480, 64>}, {pipeline_mode = #tpu.pipeline_mode<synchronous>, transform_indices = @transform_3, window_bounds = array<i64: 19, 128, 128>}, {pipeline_mode = #tpu.pipeline_mode<synchronous>, transform_indices = @transform_4, window_bounds = array<i64: 24, 128>}, {transform_indices = @transform_5, window_bounds = array<i64: 8, 128>}, {transform_indices = @transform_6, window_bounds = array<i64: 8, 128>}, {transform_indices = @transform_7, window_bounds = array<i64: 8, 256>}]} {
    %c0 = arith.constant 0 : index
    %c0_0 = arith.constant 0 : index
    %0 = vector.load %arg1[%c0, %c0_0] : memref<8x4608xbf16, #tpu.memory_space<vmem>>, vector<8x4480xbf16>
    %c0_1 = arith.constant 0 : index
    %c4480 = arith.constant 4480 : index
    %1 = vector.load %arg1[%c0_1, %c4480] : memref<8x4608xbf16, #tpu.memory_space<vmem>>, vector<8x128xbf16>
    %c0_2 = arith.constant 0 : index
    %c0_3 = arith.constant 0 : index
    %2 = vector.load %arg2[%c0_2, %c0_3] : memref<8x256xf32, #tpu.memory_space<vmem>>, vector<8x128xf32>
    %c0_4 = arith.constant 0 : index
    %c128 = arith.constant 128 : index
    %3 = vector.load %arg2[%c0_4, %c128] : memref<8x256xf32, #tpu.memory_space<vmem>>, vector<8x128xf32>
    %c0_5 = arith.constant 0 : index
    %c0_6 = arith.constant 0 : index
    %4 = vector.load %arg3[%c0_5, %c0_6] : memref<4480x64xbf16, #tpu.memory_space<vmem>>, vector<4480x64xbf16>
    %cst = arith.constant dense<0.000000e+00> : vector<8x64xf32>
    %5 = tpu.matmul %0, %4, %cst {dimension_numbers = #tpu.dot_dimension_numbers<[1], [0], [0], [1], [0, 0, 1, 1], [], []>} : vector<8x4480xbf16>, vector<4480x64xbf16>, vector<8x64xf32> -> vector<8x64xf32>
    %c19 = arith.constant 19 : index
    %c0_7 = arith.constant 0 : index
    %6 = vector.load %arg5[%c19, %c0_7] : memref<24x128xf32, #tpu.memory_space<vmem>>, vector<1x64xf32>
    %7 = vector.broadcast %6 : vector<1x64xf32> to vector<8x64xf32>
    %8 = arith.addf %5, %7 : vector<8x64xf32>
    %cst_8 = arith.constant 1.000000e-01 : f32
    %9 = vector.broadcast %cst_8 : f32 to vector<8x64xf32>
    %10 = arith.mulf %9, %8 : vector<8x64xf32>
    %11 = arith.maximumf %8, %10 : vector<8x64xf32>
    %cst_9 = arith.constant 0.000000e+00 : f32
    %12 = vector.broadcast %cst_9 : f32 to vector<8x64xf32>
    %13 = tpu.concatenate %11, %12 in 1 : vector<8x64xf32>, vector<8x64xf32> -> vector<8x128xf32>
    %14 = arith.truncf %13 : vector<8x128xf32> to vector<8x128xbf16>
    %c0_10 = arith.constant 0 : index
    %c0_11 = arith.constant 0 : index
    %c0_12 = arith.constant 0 : index
    %15 = vector.load %arg4[%c0_10, %c0_11, %c0_12] : memref<19x128x128xbf16, #tpu.memory_space<vmem>>, vector<1x128x128xbf16>
    %16 = vector.shape_cast %15 : vector<1x128x128xbf16> to vector<128x128xbf16>
    %cst_13 = arith.constant dense<0.000000e+00> : vector<8x128xf32>
    %17 = tpu.matmul %14, %16, %cst_13 {dimension_numbers = #tpu.dot_dimension_numbers<[1], [0], [0], [1], [0, 0, 1, 1], [], []>} : vector<8x128xbf16>, vector<128x128xbf16>, vector<8x128xf32> -> vector<8x128xf32>
    %c0_14 = arith.constant 0 : index
    %c0_15 = arith.constant 0 : index
    %18 = vector.load %arg5[%c0_14, %c0_15] : memref<24x128xf32, #tpu.memory_space<vmem>>, vector<1x128xf32>
    %19 = vector.broadcast %18 : vector<1x128xf32> to vector<8x128xf32>
    %20 = arith.addf %17, %19 : vector<8x128xf32>
    %cst_16 = arith.constant 1.000000e-01 : f32
    %21 = vector.broadcast %cst_16 : f32 to vector<8x128xf32>
    %22 = arith.mulf %21, %20 : vector<8x128xf32>
    %23 = arith.maximumf %20, %22 : vector<8x128xf32>
    %24 = arith.truncf %23 : vector<8x128xf32> to vector<8x128xbf16>
    %c1 = arith.constant 1 : index
    %c0_17 = arith.constant 0 : index
    %c0_18 = arith.constant 0 : index
    %25 = vector.load %arg4[%c1, %c0_17, %c0_18] : memref<19x128x128xbf16, #tpu.memory_space<vmem>>, vector<1x128x128xbf16>
    %26 = vector.shape_cast %25 : vector<1x128x128xbf16> to vector<128x128xbf16>
    %cst_19 = arith.constant dense<0.000000e+00> : vector<8x128xf32>
    %27 = tpu.matmul %24, %26, %cst_19 {dimension_numbers = #tpu.dot_dimension_numbers<[1], [0], [0], [1], [0, 0, 1, 1], [], []>} : vector<8x128xbf16>, vector<128x128xbf16>, vector<8x128xf32> -> vector<8x128xf32>
    %c1_20 = arith.constant 1 : index
    %c0_21 = arith.constant 0 : index
    %28 = vector.load %arg5[%c1_20, %c0_21] : memref<24x128xf32, #tpu.memory_space<vmem>>, vector<1x128xf32>
    %29 = vector.broadcast %28 : vector<1x128xf32> to vector<8x128xf32>
    %30 = arith.addf %27, %29 : vector<8x128xf32>
    %cst_22 = arith.constant 1.000000e-01 : f32
    %31 = vector.broadcast %cst_22 : f32 to vector<8x128xf32>
    %32 = arith.mulf %31, %30 : vector<8x128xf32>
    %33 = arith.maximumf %30, %32 : vector<8x128xf32>
    %34 = arith.truncf %33 : vector<8x128xf32> to vector<8x128xbf16>
    %c2 = arith.constant 2 : index
    %c0_23 = arith.constant 0 : index
    %c0_24 = arith.constant 0 : index
    %35 = vector.load %arg4[%c2, %c0_23, %c0_24] : memref<19x128x128xbf16, #tpu.memory_space<vmem>>, vector<1x128x128xbf16>
    %36 = vector.shape_cast %35 : vector<1x128x128xbf16> to vector<128x128xbf16>
    %cst_25 = arith.constant dense<0.000000e+00> : vector<8x128xf32>
    %37 = tpu.matmul %34, %36, %cst_25 {dimension_numbers = #tpu.dot_dimension_numbers<[1], [0], [0], [1], [0, 0, 1, 1], [], []>} : vector<8x128xbf16>, vector<128x128xbf16>, vector<8x128xf32> -> vector<8x128xf32>
    %c2_26 = arith.constant 2 : index
    %c0_27 = arith.constant 0 : index
    %38 = vector.load %arg5[%c2_26, %c0_27] : memref<24x128xf32, #tpu.memory_space<vmem>>, vector<1x128xf32>
    %39 = vector.broadcast %38 : vector<1x128xf32> to vector<8x128xf32>
    %40 = arith.addf %37, %39 : vector<8x128xf32>
    %cst_28 = arith.constant 1.000000e-01 : f32
    %41 = vector.broadcast %cst_28 : f32 to vector<8x128xf32>
    %42 = arith.mulf %41, %40 : vector<8x128xf32>
    %43 = arith.maximumf %40, %42 : vector<8x128xf32>
    %44 = arith.truncf %43 : vector<8x128xf32> to vector<8x128xbf16>
    %c3 = arith.constant 3 : index
    %c0_29 = arith.constant 0 : index
    %c0_30 = arith.constant 0 : index
    %45 = vector.load %arg4[%c3, %c0_29, %c0_30] : memref<19x128x128xbf16, #tpu.memory_space<vmem>>, vector<1x128x128xbf16>
    %46 = vector.shape_cast %45 : vector<1x128x128xbf16> to vector<128x128xbf16>
    %cst_31 = arith.constant dense<0.000000e+00> : vector<8x128xf32>
    %47 = tpu.matmul %44, %46, %cst_31 {dimension_numbers = #tpu.dot_dimension_numbers<[1], [0], [0], [1], [0, 0, 1, 1], [], []>} : vector<8x128xbf16>, vector<128x128xbf16>, vector<8x128xf32> -> vector<8x128xf32>
    %c3_32 = arith.constant 3 : index
    %c0_33 = arith.constant 0 : index
    %48 = vector.load %arg5[%c3_32, %c0_33] : memref<24x128xf32, #tpu.memory_space<vmem>>, vector<1x128xf32>
    %49 = vector.broadcast %48 : vector<1x128xf32> to vector<8x128xf32>
    %50 = arith.addf %47, %49 : vector<8x128xf32>
    %c4 = arith.constant 4 : index
    %c0_34 = arith.constant 0 : index
    %c0_35 = arith.constant 0 : index
    %51 = vector.load %arg4[%c4, %c0_34, %c0_35] : memref<19x128x128xbf16, #tpu.memory_space<vmem>>, vector<1x128x128xbf16>
    %52 = vector.shape_cast %51 : vector<1x128x128xbf16> to vector<128x128xbf16>
    %cst_36 = arith.constant dense<0.000000e+00> : vector<8x128xf32>
    %53 = tpu.matmul %44, %52, %cst_36 {dimension_numbers = #tpu.dot_dimension_numbers<[1], [0], [0], [1], [0, 0, 1, 1], [], []>} : vector<8x128xbf16>, vector<128x128xbf16>, vector<8x128xf32> -> vector<8x128xf32>
    %c4_37 = arith.constant 4 : index
    %c0_38 = arith.constant 0 : index
    %54 = vector.load %arg5[%c4_37, %c0_38] : memref<24x128xf32, #tpu.memory_space<vmem>>, vector<1x128xf32>
    %55 = vector.broadcast %54 : vector<1x128xf32> to vector<8x128xf32>
    %56 = arith.addf %53, %55 : vector<8x128xf32>
    %c5 = arith.constant 5 : index
    %c0_39 = arith.constant 0 : index
    %c0_40 = arith.constant 0 : index
    %57 = vector.load %arg4[%c5, %c0_39, %c0_40] : memref<19x128x128xbf16, #tpu.memory_space<vmem>>, vector<1x128x128xbf16>
    %58 = vector.shape_cast %57 : vector<1x128x128xbf16> to vector<128x128xbf16>
    %cst_41 = arith.constant dense<0.000000e+00> : vector<8x128xf32>
    %59 = tpu.matmul %1, %58, %cst_41 {dimension_numbers = #tpu.dot_dimension_numbers<[1], [0], [0], [1], [0, 0, 1, 1], [], []>} : vector<8x128xbf16>, vector<128x128xbf16>, vector<8x128xf32> -> vector<8x128xf32>
    %c5_42 = arith.constant 5 : index
    %c0_43 = arith.constant 0 : index
    %60 = vector.load %arg5[%c5_42, %c0_43] : memref<24x128xf32, #tpu.memory_space<vmem>>, vector<1x128xf32>
    %61 = vector.broadcast %60 : vector<1x128xf32> to vector<8x128xf32>
    %62 = arith.addf %59, %61 : vector<8x128xf32>
    %cst_44 = arith.constant 1.000000e-01 : f32
    %63 = vector.broadcast %cst_44 : f32 to vector<8x128xf32>
    %64 = arith.mulf %63, %62 : vector<8x128xf32>
    %65 = arith.maximumf %62, %64 : vector<8x128xf32>
    %66 = arith.truncf %65 : vector<8x128xf32> to vector<8x128xbf16>
    %c6 = arith.constant 6 : index
    %c0_45 = arith.constant 0 : index
    %c0_46 = arith.constant 0 : index
    %67 = vector.load %arg4[%c6, %c0_45, %c0_46] : memref<19x128x128xbf16, #tpu.memory_space<vmem>>, vector<1x128x128xbf16>
    %68 = vector.shape_cast %67 : vector<1x128x128xbf16> to vector<128x128xbf16>
    %cst_47 = arith.constant dense<0.000000e+00> : vector<8x128xf32>
    %69 = tpu.matmul %66, %68, %cst_47 {dimension_numbers = #tpu.dot_dimension_numbers<[1], [0], [0], [1], [0, 0, 1, 1], [], []>} : vector<8x128xbf16>, vector<128x128xbf16>, vector<8x128xf32> -> vector<8x128xf32>
    %c6_48 = arith.constant 6 : index
    %c0_49 = arith.constant 0 : index
    %70 = vector.load %arg5[%c6_48, %c0_49] : memref<24x128xf32, #tpu.memory_space<vmem>>, vector<1x128xf32>
    %71 = vector.broadcast %70 : vector<1x128xf32> to vector<8x128xf32>
    %72 = arith.addf %69, %71 : vector<8x128xf32>
    %cst_50 = arith.constant 1.000000e-01 : f32
    %73 = vector.broadcast %cst_50 : f32 to vector<8x128xf32>
    %74 = arith.mulf %73, %72 : vector<8x128xf32>
    %75 = arith.maximumf %72, %74 : vector<8x128xf32>
    %76 = arith.truncf %75 : vector<8x128xf32> to vector<8x128xbf16>
    %c7 = arith.constant 7 : index
    %c0_51 = arith.constant 0 : index
    %c0_52 = arith.constant 0 : index
    %77 = vector.load %arg4[%c7, %c0_51, %c0_52] : memref<19x128x128xbf16, #tpu.memory_space<vmem>>, vector<1x128x128xbf16>
    %78 = vector.shape_cast %77 : vector<1x128x128xbf16> to vector<128x128xbf16>
    %cst_53 = arith.constant dense<0.000000e+00> : vector<8x128xf32>
    %79 = tpu.matmul %76, %78, %cst_53 {dimension_numbers = #tpu.dot_dimension_numbers<[1], [0], [0], [1], [0, 0, 1, 1], [], []>} : vector<8x128xbf16>, vector<128x128xbf16>, vector<8x128xf32> -> vector<8x128xf32>
    %c7_54 = arith.constant 7 : index
    %c0_55 = arith.constant 0 : index
    %80 = vector.load %arg5[%c7_54, %c0_55] : memref<24x128xf32, #tpu.memory_space<vmem>>, vector<1x128xf32>
    %81 = vector.broadcast %80 : vector<1x128xf32> to vector<8x128xf32>
    %82 = arith.addf %79, %81 : vector<8x128xf32>
    %cst_56 = arith.constant 1.000000e-01 : f32
    %83 = vector.broadcast %cst_56 : f32 to vector<8x128xf32>
    %84 = arith.mulf %83, %82 : vector<8x128xf32>
    %85 = arith.maximumf %82, %84 : vector<8x128xf32>
    %86 = arith.truncf %85 : vector<8x128xf32> to vector<8x128xbf16>
    %c8 = arith.constant 8 : index
    %c0_57 = arith.constant 0 : index
    %c0_58 = arith.constant 0 : index
    %87 = vector.load %arg4[%c8, %c0_57, %c0_58] : memref<19x128x128xbf16, #tpu.memory_space<vmem>>, vector<1x128x128xbf16>
    %88 = vector.shape_cast %87 : vector<1x128x128xbf16> to vector<128x128xbf16>
    %cst_59 = arith.constant dense<0.000000e+00> : vector<8x128xf32>
    %89 = tpu.matmul %86, %88, %cst_59 {dimension_numbers = #tpu.dot_dimension_numbers<[1], [0], [0], [1], [0, 0, 1, 1], [], []>} : vector<8x128xbf16>, vector<128x128xbf16>, vector<8x128xf32> -> vector<8x128xf32>
    %c8_60 = arith.constant 8 : index
    %c0_61 = arith.constant 0 : index
    %90 = vector.load %arg5[%c8_60, %c0_61] : memref<24x128xf32, #tpu.memory_space<vmem>>, vector<1x128xf32>
    %91 = vector.broadcast %90 : vector<1x128xf32> to vector<8x128xf32>
    %92 = arith.addf %89, %91 : vector<8x128xf32>
    %c9 = arith.constant 9 : index
    %c0_62 = arith.constant 0 : index
    %c0_63 = arith.constant 0 : index
    %93 = vector.load %arg4[%c9, %c0_62, %c0_63] : memref<19x128x128xbf16, #tpu.memory_space<vmem>>, vector<1x128x128xbf16>
    %94 = vector.shape_cast %93 : vector<1x128x128xbf16> to vector<128x128xbf16>
    %cst_64 = arith.constant dense<0.000000e+00> : vector<8x128xf32>
    %95 = tpu.matmul %86, %94, %cst_64 {dimension_numbers = #tpu.dot_dimension_numbers<[1], [0], [0], [1], [0, 0, 1, 1], [], []>} : vector<8x128xbf16>, vector<128x128xbf16>, vector<8x128xf32> -> vector<8x128xf32>
    %c9_65 = arith.constant 9 : index
    %c0_66 = arith.constant 0 : index
    %96 = vector.load %arg5[%c9_65, %c0_66] : memref<24x128xf32, #tpu.memory_space<vmem>>, vector<1x128xf32>
    %97 = vector.broadcast %96 : vector<1x128xf32> to vector<8x128xf32>
    %98 = arith.addf %95, %97 : vector<8x128xf32>
    %cst_67 = arith.constant 5.000000e-01 : f32
    %99 = vector.broadcast %cst_67 : f32 to vector<8x128xf32>
    %100 = arith.mulf %99, %56 : vector<8x128xf32>
    %101 = math.exp %100 : vector<8x128xf32>
    %102 = arith.mulf %2, %101 : vector<8x128xf32>
    %103 = arith.addf %102, %50 : vector<8x128xf32>
    %104 = arith.truncf %103 : vector<8x128xf32> to vector<8x128xbf16>
    %cst_68 = arith.constant 5.000000e-01 : f32
    %105 = vector.broadcast %cst_68 : f32 to vector<8x128xf32>
    %106 = arith.mulf %105, %98 : vector<8x128xf32>
    %107 = math.exp %106 : vector<8x128xf32>
    %108 = arith.mulf %3, %107 : vector<8x128xf32>
    %109 = arith.addf %108, %92 : vector<8x128xf32>
    %110 = arith.truncf %109 : vector<8x128xf32> to vector<8x128xbf16>
    %c10 = arith.constant 10 : index
    %c0_69 = arith.constant 0 : index
    %c0_70 = arith.constant 0 : index
    %111 = vector.load %arg4[%c10, %c0_69, %c0_70] : memref<19x128x128xbf16, #tpu.memory_space<vmem>>, vector<1x128x128xbf16>
    %112 = vector.shape_cast %111 : vector<1x128x128xbf16> to vector<128x128xbf16>
    %cst_71 = arith.constant dense<0.000000e+00> : vector<8x128xf32>
    %113 = tpu.matmul %104, %112, %cst_71 {dimension_numbers = #tpu.dot_dimension_numbers<[1], [0], [0], [1], [0, 0, 1, 1], [], []>} : vector<8x128xbf16>, vector<128x128xbf16>, vector<8x128xf32> -> vector<8x128xf32>
    %c10_72 = arith.constant 10 : index
    %c0_73 = arith.constant 0 : index
    %114 = vector.load %arg5[%c10_72, %c0_73] : memref<24x128xf32, #tpu.memory_space<vmem>>, vector<1x128xf32>
    %115 = vector.broadcast %114 : vector<1x128xf32> to vector<8x128xf32>
    %116 = arith.addf %113, %115 : vector<8x128xf32>
    %cst_74 = arith.constant 1.000000e-01 : f32
    %117 = vector.broadcast %cst_74 : f32 to vector<8x128xf32>
    %118 = arith.mulf %117, %116 : vector<8x128xf32>
    %119 = arith.maximumf %116, %118 : vector<8x128xf32>
    %120 = arith.truncf %119 : vector<8x128xf32> to vector<8x128xbf16>
    %c11 = arith.constant 11 : index
    %c0_75 = arith.constant 0 : index
    %c0_76 = arith.constant 0 : index
    %121 = vector.load %arg4[%c11, %c0_75, %c0_76] : memref<19x128x128xbf16, #tpu.memory_space<vmem>>, vector<1x128x128xbf16>
    %122 = vector.shape_cast %121 : vector<1x128x128xbf16> to vector<128x128xbf16>
    %cst_77 = arith.constant dense<0.000000e+00> : vector<8x128xf32>
    %123 = tpu.matmul %120, %122, %cst_77 {dimension_numbers = #tpu.dot_dimension_numbers<[1], [0], [0], [1], [0, 0, 1, 1], [], []>} : vector<8x128xbf16>, vector<128x128xbf16>, vector<8x128xf32> -> vector<8x128xf32>
    %c11_78 = arith.constant 11 : index
    %c0_79 = arith.constant 0 : index
    %124 = vector.load %arg5[%c11_78, %c0_79] : memref<24x128xf32, #tpu.memory_space<vmem>>, vector<1x128xf32>
    %125 = vector.broadcast %124 : vector<1x128xf32> to vector<8x128xf32>
    %126 = arith.addf %123, %125 : vector<8x128xf32>
    %cst_80 = arith.constant 1.000000e-01 : f32
    %127 = vector.broadcast %cst_80 : f32 to vector<8x128xf32>
    %128 = arith.mulf %127, %126 : vector<8x128xf32>
    %129 = arith.maximumf %126, %128 : vector<8x128xf32>
    %130 = arith.truncf %129 : vector<8x128xf32> to vector<8x128xbf16>
    %c12 = arith.constant 12 : index
    %c0_81 = arith.constant 0 : index
    %c0_82 = arith.constant 0 : index
    %131 = vector.load %arg4[%c12, %c0_81, %c0_82] : memref<19x128x128xbf16, #tpu.memory_space<vmem>>, vector<1x128x128xbf16>
    %132 = vector.shape_cast %131 : vector<1x128x128xbf16> to vector<128x128xbf16>
    %cst_83 = arith.constant dense<0.000000e+00> : vector<8x128xf32>
    %133 = tpu.matmul %130, %132, %cst_83 {dimension_numbers = #tpu.dot_dimension_numbers<[1], [0], [0], [1], [0, 0, 1, 1], [], []>} : vector<8x128xbf16>, vector<128x128xbf16>, vector<8x128xf32> -> vector<8x128xf32>
    %c12_84 = arith.constant 12 : index
    %c0_85 = arith.constant 0 : index
    %134 = vector.load %arg5[%c12_84, %c0_85] : memref<24x128xf32, #tpu.memory_space<vmem>>, vector<1x128xf32>
    %135 = vector.broadcast %134 : vector<1x128xf32> to vector<8x128xf32>
    %136 = arith.addf %133, %135 : vector<8x128xf32>
    %cst_86 = arith.constant 1.000000e-01 : f32
    %137 = vector.broadcast %cst_86 : f32 to vector<8x128xf32>
    %138 = arith.mulf %137, %136 : vector<8x128xf32>
    %139 = arith.maximumf %136, %138 : vector<8x128xf32>
    %140 = arith.truncf %139 : vector<8x128xf32> to vector<8x128xbf16>
    %c13 = arith.constant 13 : index
    %c0_87 = arith.constant 0 : index
    %c0_88 = arith.constant 0 : index
    %141 = vector.load %arg4[%c13, %c0_87, %c0_88] : memref<19x128x128xbf16, #tpu.memory_space<vmem>>, vector<1x128x128xbf16>
    %142 = vector.shape_cast %141 : vector<1x128x128xbf16> to vector<128x128xbf16>
    %cst_89 = arith.constant dense<0.000000e+00> : vector<8x128xf32>
    %143 = tpu.matmul %140, %142, %cst_89 {dimension_numbers = #tpu.dot_dimension_numbers<[1], [0], [0], [1], [0, 0, 1, 1], [], []>} : vector<8x128xbf16>, vector<128x128xbf16>, vector<8x128xf32> -> vector<8x128xf32>
    %c13_90 = arith.constant 13 : index
    %c0_91 = arith.constant 0 : index
    %144 = vector.load %arg5[%c13_90, %c0_91] : memref<24x128xf32, #tpu.memory_space<vmem>>, vector<1x128xf32>
    %145 = vector.broadcast %144 : vector<1x128xf32> to vector<8x128xf32>
    %146 = arith.addf %143, %145 : vector<8x128xf32>
    %c10_92 = arith.constant 10 : index
    %c0_93 = arith.constant 0 : index
    %c0_94 = arith.constant 0 : index
    %147 = vector.load %arg4[%c10_92, %c0_93, %c0_94] : memref<19x128x128xbf16, #tpu.memory_space<vmem>>, vector<1x128x128xbf16>
    %148 = vector.shape_cast %147 : vector<1x128x128xbf16> to vector<128x128xbf16>
    %cst_95 = arith.constant dense<0.000000e+00> : vector<8x128xf32>
    %149 = tpu.matmul %110, %148, %cst_95 {dimension_numbers = #tpu.dot_dimension_numbers<[1], [0], [0], [1], [0, 0, 1, 1], [], []>} : vector<8x128xbf16>, vector<128x128xbf16>, vector<8x128xf32> -> vector<8x128xf32>
    %c10_96 = arith.constant 10 : index
    %c0_97 = arith.constant 0 : index
    %150 = vector.load %arg5[%c10_96, %c0_97] : memref<24x128xf32, #tpu.memory_space<vmem>>, vector<1x128xf32>
    %151 = vector.broadcast %150 : vector<1x128xf32> to vector<8x128xf32>
    %152 = arith.addf %149, %151 : vector<8x128xf32>
    %cst_98 = arith.constant 1.000000e-01 : f32
    %153 = vector.broadcast %cst_98 : f32 to vector<8x128xf32>
    %154 = arith.mulf %153, %152 : vector<8x128xf32>
    %155 = arith.maximumf %152, %154 : vector<8x128xf32>
    %156 = arith.truncf %155 : vector<8x128xf32> to vector<8x128xbf16>
    %c11_99 = arith.constant 11 : index
    %c0_100 = arith.constant 0 : index
    %c0_101 = arith.constant 0 : index
    %157 = vector.load %arg4[%c11_99, %c0_100, %c0_101] : memref<19x128x128xbf16, #tpu.memory_space<vmem>>, vector<1x128x128xbf16>
    %158 = vector.shape_cast %157 : vector<1x128x128xbf16> to vector<128x128xbf16>
    %cst_102 = arith.constant dense<0.000000e+00> : vector<8x128xf32>
    %159 = tpu.matmul %156, %158, %cst_102 {dimension_numbers = #tpu.dot_dimension_numbers<[1], [0], [0], [1], [0, 0, 1, 1], [], []>} : vector<8x128xbf16>, vector<128x128xbf16>, vector<8x128xf32> -> vector<8x128xf32>
    %c11_103 = arith.constant 11 : index
    %c0_104 = arith.constant 0 : index
    %160 = vector.load %arg5[%c11_103, %c0_104] : memref<24x128xf32, #tpu.memory_space<vmem>>, vector<1x128xf32>
    %161 = vector.broadcast %160 : vector<1x128xf32> to vector<8x128xf32>
    %162 = arith.addf %159, %161 : vector<8x128xf32>
    %cst_105 = arith.constant 1.000000e-01 : f32
    %163 = vector.broadcast %cst_105 : f32 to vector<8x128xf32>
    %164 = arith.mulf %163, %162 : vector<8x128xf32>
    %165 = arith.maximumf %162, %164 : vector<8x128xf32>
    %166 = arith.truncf %165 : vector<8x128xf32> to vector<8x128xbf16>
    %c12_106 = arith.constant 12 : index
    %c0_107 = arith.constant 0 : index
    %c0_108 = arith.constant 0 : index
    %167 = vector.load %arg4[%c12_106, %c0_107, %c0_108] : memref<19x128x128xbf16, #tpu.memory_space<vmem>>, vector<1x128x128xbf16>
    %168 = vector.shape_cast %167 : vector<1x128x128xbf16> to vector<128x128xbf16>
    %cst_109 = arith.constant dense<0.000000e+00> : vector<8x128xf32>
    %169 = tpu.matmul %166, %168, %cst_109 {dimension_numbers = #tpu.dot_dimension_numbers<[1], [0], [0], [1], [0, 0, 1, 1], [], []>} : vector<8x128xbf16>, vector<128x128xbf16>, vector<8x128xf32> -> vector<8x128xf32>
    %c12_110 = arith.constant 12 : index
    %c0_111 = arith.constant 0 : index
    %170 = vector.load %arg5[%c12_110, %c0_111] : memref<24x128xf32, #tpu.memory_space<vmem>>, vector<1x128xf32>
    %171 = vector.broadcast %170 : vector<1x128xf32> to vector<8x128xf32>
    %172 = arith.addf %169, %171 : vector<8x128xf32>
    %cst_112 = arith.constant 1.000000e-01 : f32
    %173 = vector.broadcast %cst_112 : f32 to vector<8x128xf32>
    %174 = arith.mulf %173, %172 : vector<8x128xf32>
    %175 = arith.maximumf %172, %174 : vector<8x128xf32>
    %176 = arith.truncf %175 : vector<8x128xf32> to vector<8x128xbf16>
    %c13_113 = arith.constant 13 : index
    %c0_114 = arith.constant 0 : index
    %c0_115 = arith.constant 0 : index
    %177 = vector.load %arg4[%c13_113, %c0_114, %c0_115] : memref<19x128x128xbf16, #tpu.memory_space<vmem>>, vector<1x128x128xbf16>
    %178 = vector.shape_cast %177 : vector<1x128x128xbf16> to vector<128x128xbf16>
    %cst_116 = arith.constant dense<0.000000e+00> : vector<8x128xf32>
    %179 = tpu.matmul %176, %178, %cst_116 {dimension_numbers = #tpu.dot_dimension_numbers<[1], [0], [0], [1], [0, 0, 1, 1], [], []>} : vector<8x128xbf16>, vector<128x128xbf16>, vector<8x128xf32> -> vector<8x128xf32>
    %c13_117 = arith.constant 13 : index
    %c0_118 = arith.constant 0 : index
    %180 = vector.load %arg5[%c13_117, %c0_118] : memref<24x128xf32, #tpu.memory_space<vmem>>, vector<1x128xf32>
    %181 = vector.broadcast %180 : vector<1x128xf32> to vector<8x128xf32>
    %182 = arith.addf %179, %181 : vector<8x128xf32>
    %c15 = arith.constant 15 : index
    %c0_119 = arith.constant 0 : index
    %c0_120 = arith.constant 0 : index
    %183 = vector.load %arg4[%c15, %c0_119, %c0_120] : memref<19x128x128xbf16, #tpu.memory_space<vmem>>, vector<1x128x128xbf16>
    %184 = vector.shape_cast %183 : vector<1x128x128xbf16> to vector<128x128xbf16>
    %cst_121 = arith.constant dense<0.000000e+00> : vector<8x128xf32>
    %185 = tpu.matmul %14, %184, %cst_121 {dimension_numbers = #tpu.dot_dimension_numbers<[1], [0], [0], [1], [0, 0, 1, 1], [], []>} : vector<8x128xbf16>, vector<128x128xbf16>, vector<8x128xf32> -> vector<8x128xf32>
    %c14 = arith.constant 14 : index
    %c0_122 = arith.constant 0 : index
    %c0_123 = arith.constant 0 : index
    %186 = vector.load %arg4[%c14, %c0_122, %c0_123] : memref<19x128x128xbf16, #tpu.memory_space<vmem>>, vector<1x128x128xbf16>
    %187 = vector.shape_cast %186 : vector<1x128x128xbf16> to vector<128x128xbf16>
    %cst_124 = arith.constant dense<0.000000e+00> : vector<8x128xf32>
    %188 = tpu.matmul %104, %187, %cst_124 {dimension_numbers = #tpu.dot_dimension_numbers<[1], [0], [0], [1], [0, 0, 1, 1], [], []>} : vector<8x128xbf16>, vector<128x128xbf16>, vector<8x128xf32> -> vector<8x128xf32>
    %189 = arith.addf %188, %185 : vector<8x128xf32>
    %c14_125 = arith.constant 14 : index
    %c0_126 = arith.constant 0 : index
    %190 = vector.load %arg5[%c14_125, %c0_126] : memref<24x128xf32, #tpu.memory_space<vmem>>, vector<1x128xf32>
    %191 = vector.broadcast %190 : vector<1x128xf32> to vector<8x128xf32>
    %192 = arith.addf %189, %191 : vector<8x128xf32>
    %cst_127 = arith.constant 1.000000e-01 : f32
    %193 = vector.broadcast %cst_127 : f32 to vector<8x128xf32>
    %194 = arith.mulf %193, %192 : vector<8x128xf32>
    %195 = arith.maximumf %192, %194 : vector<8x128xf32>
    %196 = arith.truncf %195 : vector<8x128xf32> to vector<8x128xbf16>
    %c16 = arith.constant 16 : index
    %c0_128 = arith.constant 0 : index
    %c0_129 = arith.constant 0 : index
    %197 = vector.load %arg4[%c16, %c0_128, %c0_129] : memref<19x128x128xbf16, #tpu.memory_space<vmem>>, vector<1x128x128xbf16>
    %198 = vector.shape_cast %197 : vector<1x128x128xbf16> to vector<128x128xbf16>
    %cst_130 = arith.constant dense<0.000000e+00> : vector<8x128xf32>
    %199 = tpu.matmul %196, %198, %cst_130 {dimension_numbers = #tpu.dot_dimension_numbers<[1], [0], [0], [1], [0, 0, 1, 1], [], []>} : vector<8x128xbf16>, vector<128x128xbf16>, vector<8x128xf32> -> vector<8x128xf32>
    %c16_131 = arith.constant 16 : index
    %c0_132 = arith.constant 0 : index
    %200 = vector.load %arg5[%c16_131, %c0_132] : memref<24x128xf32, #tpu.memory_space<vmem>>, vector<1x128xf32>
    %201 = vector.broadcast %200 : vector<1x128xf32> to vector<8x128xf32>
    %202 = arith.addf %199, %201 : vector<8x128xf32>
    %cst_133 = arith.constant 1.000000e-01 : f32
    %203 = vector.broadcast %cst_133 : f32 to vector<8x128xf32>
    %204 = arith.mulf %203, %202 : vector<8x128xf32>
    %205 = arith.maximumf %202, %204 : vector<8x128xf32>
    %206 = arith.truncf %205 : vector<8x128xf32> to vector<8x128xbf16>
    %c17 = arith.constant 17 : index
    %c0_134 = arith.constant 0 : index
    %c0_135 = arith.constant 0 : index
    %207 = vector.load %arg4[%c17, %c0_134, %c0_135] : memref<19x128x128xbf16, #tpu.memory_space<vmem>>, vector<1x128x128xbf16>
    %208 = vector.shape_cast %207 : vector<1x128x128xbf16> to vector<128x128xbf16>
    %cst_136 = arith.constant dense<0.000000e+00> : vector<8x128xf32>
    %209 = tpu.matmul %206, %208, %cst_136 {dimension_numbers = #tpu.dot_dimension_numbers<[1], [0], [0], [1], [0, 0, 1, 1], [], []>} : vector<8x128xbf16>, vector<128x128xbf16>, vector<8x128xf32> -> vector<8x128xf32>
    %c17_137 = arith.constant 17 : index
    %c0_138 = arith.constant 0 : index
    %210 = vector.load %arg5[%c17_137, %c0_138] : memref<24x128xf32, #tpu.memory_space<vmem>>, vector<1x128xf32>
    %211 = vector.broadcast %210 : vector<1x128xf32> to vector<8x128xf32>
    %212 = arith.addf %209, %211 : vector<8x128xf32>
    %cst_139 = arith.constant 1.000000e-01 : f32
    %213 = vector.broadcast %cst_139 : f32 to vector<8x128xf32>
    %214 = arith.mulf %213, %212 : vector<8x128xf32>
    %215 = arith.maximumf %212, %214 : vector<8x128xf32>
    %216 = arith.truncf %215 : vector<8x128xf32> to vector<8x128xbf16>
    %c18 = arith.constant 18 : index
    %c0_140 = arith.constant 0 : index
    %c0_141 = arith.constant 0 : index
    %217 = vector.load %arg4[%c18, %c0_140, %c0_141] : memref<19x128x128xbf16, #tpu.memory_space<vmem>>, vector<1x128x128xbf16>
    %218 = vector.shape_cast %217 : vector<1x128x128xbf16> to vector<128x128xbf16>
    %cst_142 = arith.constant dense<0.000000e+00> : vector<8x128xf32>
    %219 = tpu.matmul %216, %218, %cst_142 {dimension_numbers = #tpu.dot_dimension_numbers<[1], [0], [0], [1], [0, 0, 1, 1], [], []>} : vector<8x128xbf16>, vector<128x128xbf16>, vector<8x128xf32> -> vector<8x128xf32>
    %c18_143 = arith.constant 18 : index
    %c0_144 = arith.constant 0 : index
    %220 = vector.load %arg5[%c18_143, %c0_144] : memref<24x128xf32, #tpu.memory_space<vmem>>, vector<1x128xf32>
    %221 = vector.broadcast %220 : vector<1x128xf32> to vector<8x128xf32>
    %222 = arith.addf %219, %221 : vector<8x128xf32>
    %c14_145 = arith.constant 14 : index
    %c0_146 = arith.constant 0 : index
    %c0_147 = arith.constant 0 : index
    %223 = vector.load %arg4[%c14_145, %c0_146, %c0_147] : memref<19x128x128xbf16, #tpu.memory_space<vmem>>, vector<1x128x128xbf16>
    %224 = vector.shape_cast %223 : vector<1x128x128xbf16> to vector<128x128xbf16>
    %cst_148 = arith.constant dense<0.000000e+00> : vector<8x128xf32>
    %225 = tpu.matmul %110, %224, %cst_148 {dimension_numbers = #tpu.dot_dimension_numbers<[1], [0], [0], [1], [0, 0, 1, 1], [], []>} : vector<8x128xbf16>, vector<128x128xbf16>, vector<8x128xf32> -> vector<8x128xf32>
    %226 = arith.addf %225, %185 : vector<8x128xf32>
    %c14_149 = arith.constant 14 : index
    %c0_150 = arith.constant 0 : index
    %227 = vector.load %arg5[%c14_149, %c0_150] : memref<24x128xf32, #tpu.memory_space<vmem>>, vector<1x128xf32>
    %228 = vector.broadcast %227 : vector<1x128xf32> to vector<8x128xf32>
    %229 = arith.addf %226, %228 : vector<8x128xf32>
    %cst_151 = arith.constant 1.000000e-01 : f32
    %230 = vector.broadcast %cst_151 : f32 to vector<8x128xf32>
    %231 = arith.mulf %230, %229 : vector<8x128xf32>
    %232 = arith.maximumf %229, %231 : vector<8x128xf32>
    %233 = arith.truncf %232 : vector<8x128xf32> to vector<8x128xbf16>
    %c16_152 = arith.constant 16 : index
    %c0_153 = arith.constant 0 : index
    %c0_154 = arith.constant 0 : index
    %234 = vector.load %arg4[%c16_152, %c0_153, %c0_154] : memref<19x128x128xbf16, #tpu.memory_space<vmem>>, vector<1x128x128xbf16>
    %235 = vector.shape_cast %234 : vector<1x128x128xbf16> to vector<128x128xbf16>
    %cst_155 = arith.constant dense<0.000000e+00> : vector<8x128xf32>
    %236 = tpu.matmul %233, %235, %cst_155 {dimension_numbers = #tpu.dot_dimension_numbers<[1], [0], [0], [1], [0, 0, 1, 1], [], []>} : vector<8x128xbf16>, vector<128x128xbf16>, vector<8x128xf32> -> vector<8x128xf32>
    %c16_156 = arith.constant 16 : index
    %c0_157 = arith.constant 0 : index
    %237 = vector.load %arg5[%c16_156, %c0_157] : memref<24x128xf32, #tpu.memory_space<vmem>>, vector<1x128xf32>
    %238 = vector.broadcast %237 : vector<1x128xf32> to vector<8x128xf32>
    %239 = arith.addf %236, %238 : vector<8x128xf32>
    %cst_158 = arith.constant 1.000000e-01 : f32
    %240 = vector.broadcast %cst_158 : f32 to vector<8x128xf32>
    %241 = arith.mulf %240, %239 : vector<8x128xf32>
    %242 = arith.maximumf %239, %241 : vector<8x128xf32>
    %243 = arith.truncf %242 : vector<8x128xf32> to vector<8x128xbf16>
    %c17_159 = arith.constant 17 : index
    %c0_160 = arith.constant 0 : index
    %c0_161 = arith.constant 0 : index
    %244 = vector.load %arg4[%c17_159, %c0_160, %c0_161] : memref<19x128x128xbf16, #tpu.memory_space<vmem>>, vector<1x128x128xbf16>
    %245 = vector.shape_cast %244 : vector<1x128x128xbf16> to vector<128x128xbf16>
    %cst_162 = arith.constant dense<0.000000e+00> : vector<8x128xf32>
    %246 = tpu.matmul %243, %245, %cst_162 {dimension_numbers = #tpu.dot_dimension_numbers<[1], [0], [0], [1], [0, 0, 1, 1], [], []>} : vector<8x128xbf16>, vector<128x128xbf16>, vector<8x128xf32> -> vector<8x128xf32>
    %c17_163 = arith.constant 17 : index
    %c0_164 = arith.constant 0 : index
    %247 = vector.load %arg5[%c17_163, %c0_164] : memref<24x128xf32, #tpu.memory_space<vmem>>, vector<1x128xf32>
    %248 = vector.broadcast %247 : vector<1x128xf32> to vector<8x128xf32>
    %249 = arith.addf %246, %248 : vector<8x128xf32>
    %cst_165 = arith.constant 1.000000e-01 : f32
    %250 = vector.broadcast %cst_165 : f32 to vector<8x128xf32>
    %251 = arith.mulf %250, %249 : vector<8x128xf32>
    %252 = arith.maximumf %249, %251 : vector<8x128xf32>
    %253 = arith.truncf %252 : vector<8x128xf32> to vector<8x128xbf16>
    %c18_166 = arith.constant 18 : index
    %c0_167 = arith.constant 0 : index
    %c0_168 = arith.constant 0 : index
    %254 = vector.load %arg4[%c18_166, %c0_167, %c0_168] : memref<19x128x128xbf16, #tpu.memory_space<vmem>>, vector<1x128x128xbf16>
    %255 = vector.shape_cast %254 : vector<1x128x128xbf16> to vector<128x128xbf16>
    %cst_169 = arith.constant dense<0.000000e+00> : vector<8x128xf32>
    %256 = tpu.matmul %253, %255, %cst_169 {dimension_numbers = #tpu.dot_dimension_numbers<[1], [0], [0], [1], [0, 0, 1, 1], [], []>} : vector<8x128xbf16>, vector<128x128xbf16>, vector<8x128xf32> -> vector<8x128xf32>
    %c18_170 = arith.constant 18 : index
    %c0_171 = arith.constant 0 : index
    %257 = vector.load %arg5[%c18_170, %c0_171] : memref<24x128xf32, #tpu.memory_space<vmem>>, vector<1x128xf32>
    %258 = vector.broadcast %257 : vector<1x128xf32> to vector<8x128xf32>
    %259 = arith.addf %256, %258 : vector<8x128xf32>
    %260 = vector.extract_strided_slice %50 {offsets = [0, 0], sizes = [8, 16], strides = [1, 1]} : vector<8x128xf32> to vector<8x16xf32>
    %261 = vector.extract_strided_slice %56 {offsets = [0, 0], sizes = [8, 16], strides = [1, 1]} : vector<8x128xf32> to vector<8x16xf32>
    %262 = vector.extract_strided_slice %92 {offsets = [0, 0], sizes = [8, 16], strides = [1, 1]} : vector<8x128xf32> to vector<8x16xf32>
    %263 = vector.extract_strided_slice %98 {offsets = [0, 0], sizes = [8, 16], strides = [1, 1]} : vector<8x128xf32> to vector<8x16xf32>
    %264 = tpu.concatenate %11, %260, %261, %262, %263 in 1 : vector<8x64xf32>, vector<8x16xf32>, vector<8x16xf32>, vector<8x16xf32>, vector<8x16xf32> -> vector<8x128xf32>
    %c0_172 = arith.constant 0 : index
    %c0_173 = arith.constant 0 : index
    %265 = vector.load %arg6[%c0_172, %c0_173] : memref<8x128xf32, #tpu.memory_space<vmem>>, vector<8x128xf32>
    tpu.vector_store %arg6[%c0_172, %c0_173], %264 {strides = array<i32>} : memref<8x128xf32, #tpu.memory_space<vmem>>, vector<8x128xf32>,
    %266 = vector.extract_strided_slice %146 {offsets = [0, 0], sizes = [8, 64], strides = [1, 1]} : vector<8x128xf32> to vector<8x64xf32>
    %267 = vector.extract_strided_slice %182 {offsets = [0, 0], sizes = [8, 64], strides = [1, 1]} : vector<8x128xf32> to vector<8x64xf32>
    %268 = tpu.concatenate %266, %267 in 1 : vector<8x64xf32>, vector<8x64xf32> -> vector<8x128xf32>
    %c0_174 = arith.constant 0 : index
    %c0_175 = arith.constant 0 : index
    %269 = vector.load %arg7[%c0_174, %c0_175] : memref<8x128xf32, #tpu.memory_space<vmem>>, vector<8x128xf32>
    tpu.vector_store %arg7[%c0_174, %c0_175], %268 {strides = array<i32>} : memref<8x128xf32, #tpu.memory_space<vmem>>, vector<8x128xf32>,
    %270 = tpu.concatenate %222, %259 in 1 : vector<8x128xf32>, vector<8x128xf32> -> vector<8x256xf32>
    %c0_176 = arith.constant 0 : index
    %c0_177 = arith.constant 0 : index
    %271 = vector.load %arg8[%c0_176, %c0_177] : memref<8x256xf32, #tpu.memory_space<vmem>>, vector<8x256xf32>
    tpu.vector_store %arg8[%c0_176, %c0_177], %270 {strides = array<i32>} : memref<8x256xf32, #tpu.memory_space<vmem>>, vector<8x256xf32>,
    return
  }
  func.func @transform_0(%arg0: i32) -> (i32, i32) {
    %c0_i32 = arith.constant 0 : i32
    %c0_i32_0 = arith.constant 0 : i32
    return %arg0, %c0_i32 : i32, i32
  }
  func.func @transform_1(%arg0: i32) -> (i32, i32) {
    %c0_i32 = arith.constant 0 : i32
    %c0_i32_0 = arith.constant 0 : i32
    return %arg0, %c0_i32 : i32, i32
  }
  func.func @transform_2(%arg0: i32) -> (i32, i32) {
    %c0_i32 = arith.constant 0 : i32
    %c0_i32_0 = arith.constant 0 : i32
    %c0_i32_1 = arith.constant 0 : i32
    return %c0_i32, %c0_i32_0 : i32, i32
  }
  func.func @transform_3(%arg0: i32) -> (i32, i32, i32) {
    %c0_i32 = arith.constant 0 : i32
    %c0_i32_0 = arith.constant 0 : i32
    %c0_i32_1 = arith.constant 0 : i32
    %c0_i32_2 = arith.constant 0 : i32
    return %c0_i32, %c0_i32_0, %c0_i32_1 : i32, i32, i32
  }
  func.func @transform_4(%arg0: i32) -> (i32, i32) {
    %c0_i32 = arith.constant 0 : i32
    %c0_i32_0 = arith.constant 0 : i32
    %c0_i32_1 = arith.constant 0 : i32
    return %c0_i32, %c0_i32_0 : i32, i32
  }
  func.func @transform_5(%arg0: i32) -> (i32, i32) {
    %c0_i32 = arith.constant 0 : i32
    %c0_i32_0 = arith.constant 0 : i32
    return %arg0, %c0_i32 : i32, i32
  }
  func.func @transform_6(%arg0: i32) -> (i32, i32) {
    %c0_i32 = arith.constant 0 : i32
    %c0_i32_0 = arith.constant 0 : i32
    return %arg0, %c0_i32 : i32, i32
  }
  func.func @transform_7(%arg0: i32) -> (i32, i32) {
    %c0_i32 = arith.constant 0 : i32
    %c0_i32_0 = arith.constant 0 : i32
    return %arg0, %c0_i32 : i32, i32
  }
}

</mosaic_0001>

<llo_original>
// kernel: apfg_forward.1
$region0: #{apfg_forward.1}
  #allocation0 [shape = 'u32[]', space=smem, size = 0x4, offset = 0x4, fixed_abs, tag = 'smem constant byte address 0x4 - core index']
  #allocation1 [shape = 'u32[144,128]{1,0:T(1,128)}', space=vmem, size = 0x12000, scoped, tag = 'internal scratch']
  %s0 = inlined_call_operand.vmem [shape: bf16[8,4608], index: 0, kind: input, shape index: {}]
  %s1 = inlined_call_operand.vmem [shape: f32[8,256], index: 1, kind: input, shape index: {}]
  %s2 = inlined_call_operand.vmem [shape: bf16[4480,64], index: 2, kind: input, shape index: {}]
  %s3 = inlined_call_operand.vmem [shape: bf16[19,128,128], index: 3, kind: input, shape index: {}]
  %s4 = inlined_call_operand.vmem [shape: f32[24,128], index: 4, kind: input, shape index: {}]
  %s5 = inlined_call_operand.vmem [shape: f32[8,128], index: 5, kind: output, shape index: {0}]
  %s6 = inlined_call_operand.vmem [shape: f32[8,128], index: 6, kind: output, shape index: {1}]
  %s7 = inlined_call_operand.vmem [shape: f32[8,256], index: 7, kind: output, shape index: {2}]
  %8 = xla_tuple %s5, %s6, %s7
  %s9 = sld [smem:[#allocation0]]
  $region46: #{apfg_forward.1} parent=0
    _
  %s11 = ssub.s32 1, %s9
  %s12 = scalar_select 0, %s11, %s9
  // Predicated region
  $region2: #{apfg_forward.1} parent=0 // pred_check
    _
  $region3: #{apfg_forward.1} parent=0 // pred_check_branch
    %14 = sbr.rel (0) target = $region5
  $region4: #{apfg_forward.1} parent=0 // pred_region
    _
  $region5: #{apfg_forward.1} parent=0 // pred_fallthru
    _
  // Predicated region
  $region6: #{apfg_forward.1} parent=0 // pred_check
    _
  $region7: #{apfg_forward.1} parent=0 // pred_check_branch
    %16 = sbr.rel (0) target = $region9
  $region8: #{apfg_forward.1} parent=0 // pred_region
    _
  $region9: #{apfg_forward.1} parent=0 // pred_fallthru
    _
  // Predicated region
  $region10: #{apfg_forward.1} parent=0 // pred_check
    _
  $region11: #{apfg_forward.1} parent=0 // pred_check_branch
    %18 = sbr.rel (0) target = $region13
  $region12: #{apfg_forward.1} parent=0 // pred_region
    _
  $region13: #{apfg_forward.1} parent=0 // pred_fallthru
    _
  // Predicated region
  $region14: #{apfg_forward.1} parent=0 // pred_check
    _
  $region15: #{apfg_forward.1} parent=0 // pred_check_branch
    %20 = sbr.rel (0) target = $region17
  $region16: #{apfg_forward.1} parent=0 // pred_region
    _
  $region17: #{apfg_forward.1} parent=0 // pred_fallthru
    _
  // Predicated region
  $region18: #{apfg_forward.1} parent=0 // pred_check
    _
  $region19: #{apfg_forward.1} parent=0 // pred_check_branch
    %22 = sbr.rel (0) target = $region21
  $region20: #{apfg_forward.1} parent=0 // pred_region
    _
  $region21: #{apfg_forward.1} parent=0 // pred_fallthru
    _
  %v24 = vld [vmem:[%s0] sm:$0xff]
  %v25 = vld [vmem:[%s0 + $0x8] sm:$0xff]
  %v26 = vld [vmem:[%s0 + $0x10] sm:$0xff]
  %v27 = vld [vmem:[%s0 + $0x18] sm:$0xff]
  %v28 = vld [vmem:[%s0 + $0x20] sm:$0xff]
  %v29 = vld [vmem:[%s0 + $0x28] sm:$0xff]
  %v30 = vld [vmem:[%s0 + $0x30] sm:$0xff]
  %v31 = vld [vmem:[%s0 + $0x38] sm:$0xff]
  %v32 = vld [vmem:[%s0 + $0x40] sm:$0xff]
  %v33 = vld [vmem:[%s0 + $0x48] sm:$0xff]
  %v34 = vld [vmem:[%s0 + $0x50] sm:$0xff]
  %v35 = vld [vmem:[%s0 + $0x58] sm:$0xff]
  %v36 = vld [vmem:[%s0 + $0x60] sm:$0xff]
  %v37 = vld [vmem:[%s0 + $0x68] sm:$0xff]
  %v38 = vld [vmem:[%s0 + $0x70] sm:$0xff]
  %v39 = vld [vmem:[%s0 + $0x78] sm:$0xff]
  %v40 = vld [vmem:[%s0 + $0x80] sm:$0xff]
  %v41 = vld [vmem:[%s0 + $0x88] sm:$0xf]
  %v42 = vld [vmem:[%s0 + $0x8c] sm:$0xf]
  %v43 = vld [vmem:[%s1] sm:$0xff]
  %v44 = vld [vmem:[%s1 + $0x8] sm:$0xff]
  %v45 = vld [vmem:[%s2] sm:$0xf]
  %v46 = vld [vmem:[%s2 + $0x4] sm:$0xf]
  %v47 = vld [vmem:[%s2 + $0x8] sm:$0xf]
  %v48 = vld [vmem:[%s2 + $0xc] sm:$0xf]
  %v49 = vld [vmem:[%s2 + $0x10] sm:$0xf]
  %v50 = vld [vmem:[%s2 + $0x14] sm:$0xf]
  %v51 = vld [vmem:[%s2 + $0x18] sm:$0xf]
  %v52 = vld [vmem:[%s2 + $0x1c] sm:$0xf]
  %v53 = vld [vmem:[%s2 + $0x20] sm:$0xf]
  %v54 = vld [vmem:[%s2 + $0x24] sm:$0xf]
  %v55 = vld [vmem:[%s2 + $0x28] sm:$0xf]
  %v56 = vld [vmem:[%s2 + $0x2c] sm:$0xf]
  %v57 = vld [vmem:[%s2 + $0x30] sm:$0xf]
  %v58 = vld [vmem:[%s2 + $0x34] sm:$0xf]
  %v59 = vld [vmem:[%s2 + $0x38] sm:$0xf]
  %v60 = vld [vmem:[%s2 + $0x3c] sm:$0xf]
  %v61 = vld [vmem:[%s2 + $0x40] sm:$0xf]
  %v62 = vld [vmem:[%s2 + $0x44] sm:$0xf]
  %v63 = vld [vmem:[%s2 + $0x48] sm:$0xf]
  %v64 = vld [vmem:[%s2 + $0x4c] sm:$0xf]
  %v65 = vld [vmem:[%s2 + $0x50] sm:$0xf]
  %v66 = vld [vmem:[%s2 + $0x54] sm:$0xf]
  %v67 = vld [vmem:[%s2 + $0x58] sm:$0xf]
  %v68 = vld [vmem:[%s2 + $0x5c] sm:$0xf]
  %v69 = vld [vmem:[%s2 + $0x60] sm:$0xf]
  %v70 = vld [vmem:[%s2 + $0x64] sm:$0xf]
  %v71 = vld [vmem:[%s2 + $0x68] sm:$0xf]
  %v72 = vld [vmem:[%s2 + $0x6c] sm:$0xf]
  %v73 = vld [vmem:[%s2 + $0x70] sm:$0xf]
  %v74 = vld [vmem:[%s2 + $0x74] sm:$0xf]
  %v75 = vld [vmem:[%s2 + $0x78] sm:$0xf]
  %v76 = vld [vmem:[%s2 + $0x7c] sm:$0xf]
  %v77 = vld [vmem:[%s2 + $0x80] sm:$0xf]
  %v78 = vld [vmem:[%s2 + $0x84] sm:$0xf]
  %v79 = vld [vmem:[%s2 + $0x88] sm:$0xf]
  %v80 = vld [vmem:[%s2 + $0x8c] sm:$0xf]
  %v81 = vld [vmem:[%s2 + $0x90] sm:$0xf]
  %v82 = vld [vmem:[%s2 + $0x94] sm:$0xf]
  %v83 = vld [vmem:[%s2 + $0x98] sm:$0xf]
  %v84 = vld [vmem:[%s2 + $0x9c] sm:$0xf]
  %v85 = vld [vmem:[%s2 + $0xa0] sm:$0xf]
  %v86 = vld [vmem:[%s2 + $0xa4] sm:$0xf]
  %v87 = vld [vmem:[%s2 + $0xa8] sm:$0xf]
  %v88 = vld [vmem:[%s2 + $0xac] sm:$0xf]
  %v89 = vld [vmem:[%s2 + $0xb0] sm:$0xf]
  %v90 = vld [vmem:[%s2 + $0xb4] sm:$0xf]
  %v91 = vld [vmem:[%s2 + $0xb8] sm:$0xf]
  %v92 = vld [vmem:[%s2 + $0xbc] sm:$0xf]
  %v93 = vld [vmem:[%s2 + $0xc0] sm:$0xf]
  %v94 = vld [vmem:[%s2 + $0xc4] sm:$0xf]
  %v95 = vld [vmem:[%s2 + $0xc8] sm:$0xf]
  %v96 = vld [vmem:[%s2 + $0xcc] sm:$0xf]
  %v97 = vld [vmem:[%s2 + $0xd0] sm:$0xf]
  %v98 = vld [vmem:[%s2 + $0xd4] sm:$0xf]
  %v99 = vld [vmem:[%s2 + $0xd8] sm:$0xf]
  %v100 = vld [vmem:[%s2 + $0xdc] sm:$0xf]
  %v101 = vld [vmem:[%s2 + $0xe0] sm:$0xf]
  %v102 = vld [vmem:[%s2 + $0xe4] sm:$0xf]
  %v103 = vld [vmem:[%s2 + $0xe8] sm:$0xf]
  %v104 = vld [vmem:[%s2 + $0xec] sm:$0xf]
  %v105 = vld [vmem:[%s2 + $0xf0] sm:$0xf]
  %v106 = vld [vmem:[%s2 + $0xf4] sm:$0xf]
  %v107 = vld [vmem:[%s2 + $0xf8] sm:$0xf]
  %v108 = vld [vmem:[%s2 + $0xfc] sm:$0xf]
  %v109 = vld [vmem:[%s2 + $0x100] sm:$0xf]
  %v110 = vld [vmem:[%s2 + $0x104] sm:$0xf]
  %v111 = vld [vmem:[%s2 + $0x108] sm:$0xf]
  %v112 = vld [vmem:[%s2 + $0x10c] sm:$0xf]
  %v113 = vld [vmem:[%s2 + $0x110] sm:$0xf]
  %v114 = vld [vmem:[%s2 + $0x114] sm:$0xf]
  %v115 = vld [vmem:[%s2 + $0x118] sm:$0xf]
  %v116 = vld [vmem:[%s2 + $0x11c] sm:$0xf]
  %v117 = vld [vmem:[%s2 + $0x120] sm:$0xf]
  %v118 = vld [vmem:[%s2 + $0x124] sm:$0xf]
  %v119 = vld [vmem:[%s2 + $0x128] sm:$0xf]
  %v120 = vld [vmem:[%s2 + $0x12c] sm:$0xf]
  %v121 = vld [vmem:[%s2 + $0x130] sm:$0xf]
  %v122 = vld [vmem:[%s2 + $0x134] sm:$0xf]
  %v123 = vld [vmem:[%s2 + $0x138] sm:$0xf]
  %v124 = vld [vmem:[%s2 + $0x13c] sm:$0xf]
  %v125 = vld [vmem:[%s2 + $0x140] sm:$0xf]
  %v126 = vld [vmem:[%s2 + $0x144] sm:$0xf]
  %v127 = vld [vmem:[%s2 + $0x148] sm:$0xf]
  %v128 = vld [vmem:[%s2 + $0x14c] sm:$0xf]
  %v129 = vld [vmem:[%s2 + $0x150] sm:$0xf]
  %v130 = vld [vmem:[%s2 + $0x154] sm:$0xf]
  %v131 = vld [vmem:[%s2 + $0x158] sm:$0xf]
  %v132 = vld [vmem:[%s2 + $0x15c] sm:$0xf]
  %v133 = vld [vmem:[%s2 + $0x160] sm:$0xf]
  %v134 = vld [vmem:[%s2 + $0x164] sm:$0xf]
  %v135 = vld [vmem:[%s2 + $0x168] sm:$0xf]
  %v136 = vld [vmem:[%s2 + $0x16c] sm:$0xf]
  %v137 = vld [vmem:[%s2 + $0x170] sm:$0xf]
  %v138 = vld [vmem:[%s2 + $0x174] sm:$0xf]
  %v139 = vld [vmem:[%s2 + $0x178] sm:$0xf]
  %v140 = vld [vmem:[%s2 + $0x17c] sm:$0xf]
  %v141 = vld [vmem:[%s2 + $0x180] sm:$0xf]
  %v142 = vld [vmem:[%s2 + $0x184] sm:$0xf]
  %v143 = vld [vmem:[%s2 + $0x188] sm:$0xf]
  %v144 = vld [vmem:[%s2 + $0x18c] sm:$0xf]
  %v145 = vld [vmem:[%s2 + $0x190] sm:$0xf]
  %v146 = vld [vmem:[%s2 + $0x194] sm:$0xf]
  %v147 = vld [vmem:[%s2 + $0x198] sm:$0xf]
  %v148 = vld [vmem:[%s2 + $0x19c] sm:$0xf]
  %v149 = vld [vmem:[%s2 + $0x1a0] sm:$0xf]
  %v150 = vld [vmem:[%s2 + $0x1a4] sm:$0xf]
  %v151 = vld [vmem:[%s2 + $0x1a8] sm:$0xf]
  %v152 = vld [vmem:[%s2 + $0x1ac] sm:$0xf]
  %v153 = vld [vmem:[%s2 + $0x1b0] sm:$0xf]
  %v154 = vld [vmem:[%s2 + $0x1b4] sm:$0xf]
  %v155 = vld [vmem:[%s2 + $0x1b8] sm:$0xf]
  %v156 = vld [vmem:[%s2 + $0x1bc] sm:$0xf]
  %v157 = vld [vmem:[%s2 + $0x1c0] sm:$0xf]
  %v158 = vld [vmem:[%s2 + $0x1c4] sm:$0xf]
  %v159 = vld [vmem:[%s2 + $0x1c8] sm:$0xf]
  %v160 = vld [vmem:[%s2 + $0x1cc] sm:$0xf]
  %v161 = vld [vmem:[%s2 + $0x1d0] sm:$0xf]
  %v162 = vld [vmem:[%s2 + $0x1d4] sm:$0xf]
  %v163 = vld [vmem:[%s2 + $0x1d8] sm:$0xf]
  %v164 = vld [vmem:[%s2 + $0x1dc] sm:$0xf]
  %v165 = vld [vmem:[%s2 + $0x1e0] sm:$0xf]
  %v166 = vld [vmem:[%s2 + $0x1e4] sm:$0xf]
  %v167 = vld [vmem:[%s2 + $0x1e8] sm:$0xf]
  %v168 = vld [vmem:[%s2 + $0x1ec] sm:$0xf]
  %v169 = vld [vmem:[%s2 + $0x1f0] sm:$0xf]
  %v170 = vld [vmem:[%s2 + $0x1f4] sm:$0xf]
  %v171 = vld [vmem:[%s2 + $0x1f8] sm:$0xf]
  %v172 = vld [vmem:[%s2 + $0x1fc] sm:$0xf]
  %v173 = vld [vmem:[%s2 + $0x200] sm:$0xf]
  %v174 = vld [vmem:[%s2 + $0x204] sm:$0xf]
  %v175 = vld [vmem:[%s2 + $0x208] sm:$0xf]
  %v176 = vld [vmem:[%s2 + $0x20c] sm:$0xf]
  %v177 = vld [vmem:[%s2 + $0x210] sm:$0xf]
  %v178 = vld [vmem:[%s2 + $0x214] sm:$0xf]
  %v179 = vld [vmem:[%s2 + $0x218] sm:$0xf]
  %v180 = vld [vmem:[%s2 + $0x21c] sm:$0xf]
  %v181 = vld [vmem:[%s2 + $0x220] sm:$0xf]
  %v182 = vld [vmem:[%s2 + $0x224] sm:$0xf]
  %v183 = vld [vmem:[%s2 + $0x228] sm:$0xf]
  %v184 = vld [vmem:[%s2 + $0x22c] sm:$0xf]
  %v185 = vld [vmem:[%s2 + $0x230] sm:$0xf]
  %v186 = vld [vmem:[%s2 + $0x234] sm:$0xf]
  %v187 = vld [vmem:[%s2 + $0x238] sm:$0xf]
  %v188 = vld [vmem:[%s2 + $0x23c] sm:$0xf]
  %v189 = vld [vmem:[%s2 + $0x240] sm:$0xf]
  %v190 = vld [vmem:[%s2 + $0x244] sm:$0xf]
  %v191 = vld [vmem:[%s2 + $0x248] sm:$0xf]
  %v192 = vld [vmem:[%s2 + $0x24c] sm:$0xf]
  %v193 = vld [vmem:[%s2 + $0x250] sm:$0xf]
  %v194 = vld [vmem:[%s2 + $0x254] sm:$0xf]
  %v195 = vld [vmem:[%s2 + $0x258] sm:$0xf]
  %v196 = vld [vmem:[%s2 + $0x25c] sm:$0xf]
  %v197 = vld [vmem:[%s2 + $0x260] sm:$0xf]
  %v198 = vld [vmem:[%s2 + $0x264] sm:$0xf]
  %v199 = vld [vmem:[%s2 + $0x268] sm:$0xf]
  %v200 = vld [vmem:[%s2 + $0x26c] sm:$0xf]
  %v201 = vld [vmem:[%s2 + $0x270] sm:$0xf]
  %v202 = vld [vmem:[%s2 + $0x274] sm:$0xf]
  %v203 = vld [vmem:[%s2 + $0x278] sm:$0xf]
  %v204 = vld [vmem:[%s2 + $0x27c] sm:$0xf]
  %v205 = vld [vmem:[%s2 + $0x280] sm:$0xf]
  %v206 = vld [vmem:[%s2 + $0x284] sm:$0xf]
  %v207 = vld [vmem:[%s2 + $0x288] sm:$0xf]
  %v208 = vld [vmem:[%s2 + $0x28c] sm:$0xf]
  %v209 = vld [vmem:[%s2 + $0x290] sm:$0xf]
  %v210 = vld [vmem:[%s2 + $0x294] sm:$0xf]
  %v211 = vld [vmem:[%s2 + $0x298] sm:$0xf]
  %v212 = vld [vmem:[%s2 + $0x29c] sm:$0xf]
  %v213 = vld [vmem:[%s2 + $0x2a0] sm:$0xf]
  %v214 = vld [vmem:[%s2 + $0x2a4] sm:$0xf]
  %v215 = vld [vmem:[%s2 + $0x2a8] sm:$0xf]
  %v216 = vld [vmem:[%s2 + $0x2ac] sm:$0xf]
  %v217 = vld [vmem:[%s2 + $0x2b0] sm:$0xf]
  %v218 = vld [vmem:[%s2 + $0x2b4] sm:$0xf]
  %v219 = vld [vmem:[%s2 + $0x2b8] sm:$0xf]
  %v220 = vld [vmem:[%s2 + $0x2bc] sm:$0xf]
  %v221 = vld [vmem:[%s2 + $0x2c0] sm:$0xf]
  %v222 = vld [vmem:[%s2 + $0x2c4] sm:$0xf]
  %v223 = vld [vmem:[%s2 + $0x2c8] sm:$0xf]
  %v224 = vld [vmem:[%s2 + $0x2cc] sm:$0xf]
  %v225 = vld [vmem:[%s2 + $0x2d0] sm:$0xf]
  %v226 = vld [vmem:[%s2 + $0x2d4] sm:$0xf]
  %v227 = vld [vmem:[%s2 + $0x2d8] sm:$0xf]
  %v228 = vld [vmem:[%s2 + $0x2dc] sm:$0xf]
  %v229 = vld [vmem:[%s2 + $0x2e0] sm:$0xf]
  %v230 = vld [vmem:[%s2 + $0x2e4] sm:$0xf]
  %v231 = vld [vmem:[%s2 + $0x2e8] sm:$0xf]
  %v232 = vld [vmem:[%s2 + $0x2ec] sm:$0xf]
  %v233 = vld [vmem:[%s2 + $0x2f0] sm:$0xf]
  %v234 = vld [vmem:[%s2 + $0x2f4] sm:$0xf]
  %v235 = vld [vmem:[%s2 + $0x2f8] sm:$0xf]
  %v236 = vld [vmem:[%s2 + $0x2fc] sm:$0xf]
  %v237 = vld [vmem:[%s2 + $0x300] sm:$0xf]
  %v238 = vld [vmem:[%s2 + $0x304] sm:$0xf]
  %v239 = vld [vmem:[%s2 + $0x308] sm:$0xf]
  %v240 = vld [vmem:[%s2 + $0x30c] sm:$0xf]
  %v241 = vld [vmem:[%s2 + $0x310] sm:$0xf]
  %v242 = vld [vmem:[%s2 + $0x314] sm:$0xf]
  %v243 = vld [vmem:[%s2 + $0x318] sm:$0xf]
  %v244 = vld [vmem:[%s2 + $0x31c] sm:$0xf]
  %v245 = vld [vmem:[%s2 + $0x320] sm:$0xf]
  %v246 = vld [vmem:[%s2 + $0x324] sm:$0xf]
  %v247 = vld [vmem:[%s2 + $0x328] sm:$0xf]
  %v248 = vld [vmem:[%s2 + $0x32c] sm:$0xf]
  %v249 = vld [vmem:[%s2 + $0x330] sm:$0xf]
  %v250 = vld [vmem:[%s2 + $0x334] sm:$0xf]
  %v251 = vld [vmem:[%s2 + $0x338] sm:$0xf]
  %v252 = vld [vmem:[%s2 + $0x33c] sm:$0xf]
  %v253 = vld [vmem:[%s2 + $0x340] sm:$0xf]
  %v254 = vld [vmem:[%s2 + $0x344] sm:$0xf]
  %v255 = vld [vmem:[%s2 + $0x348] sm:$0xf]
  %v256 = vld [vmem:[%s2 + $0x34c] sm:$0xf]
  %v257 = vld [vmem:[%s2 + $0x350] sm:$0xf]
  %v258 = vld [vmem:[%s2 + $0x354] sm:$0xf]
  %v259 = vld [vmem:[%s2 + $0x358] sm:$0xf]
  %v260 = vld [vmem:[%s2 + $0x35c] sm:$0xf]
  %v261 = vld [vmem:[%s2 + $0x360] sm:$0xf]
  %v262 = vld [vmem:[%s2 + $0x364] sm:$0xf]
  %v263 = vld [vmem:[%s2 + $0x368] sm:$0xf]
  %v264 = vld [vmem:[%s2 + $0x36c] sm:$0xf]
  %v265 = vld [vmem:[%s2 + $0x370] sm:$0xf]
  %v266 = vld [vmem:[%s2 + $0x374] sm:$0xf]
  %v267 = vld [vmem:[%s2 + $0x378] sm:$0xf]
  %v268 = vld [vmem:[%s2 + $0x37c] sm:$0xf]
  %v269 = vld [vmem:[%s2 + $0x380] sm:$0xf]
  %v270 = vld [vmem:[%s2 + $0x384] sm:$0xf]
  %v271 = vld [vmem:[%s2 + $0x388] sm:$0xf]
  %v272 = vld [vmem:[%s2 + $0x38c] sm:$0xf]
  %v273 = vld [vmem:[%s2 + $0x390] sm:$0xf]
  %v274 = vld [vmem:[%s2 + $0x394] sm:$0xf]
  %v275 = vld [vmem:[%s2 + $0x398] sm:$0xf]
  %v276 = vld [vmem:[%s2 + $0x39c] sm:$0xf]
  %v277 = vld [vmem:[%s2 + $0x3a0] sm:$0xf]
  %v278 = vld [vmem:[%s2 + $0x3a4] sm:$0xf]
  %v279 = vld [vmem:[%s2 + $0x3a8] sm:$0xf]
  %v280 = vld [vmem:[%s2 + $0x3ac] sm:$0xf]
  %v281 = vld [vmem:[%s2 + $0x3b0] sm:$0xf]
  %v282 = vld [vmem:[%s2 + $0x3b4] sm:$0xf]
  %v283 = vld [vmem:[%s2 + $0x3b8] sm:$0xf]
  %v284 = vld [vmem:[%s2 + $0x3bc] sm:$0xf]
  %v285 = vld [vmem:[%s2 + $0x3c0] sm:$0xf]
  %v286 = vld [vmem:[%s2 + $0x3c4] sm:$0xf]
  %v287 = vld [vmem:[%s2 + $0x3c8] sm:$0xf]
  %v288 = vld [vmem:[%s2 + $0x3cc] sm:$0xf]
  %v289 = vld [vmem:[%s2 + $0x3d0] sm:$0xf]
  %v290 = vld [vmem:[%s2 + $0x3d4] sm:$0xf]
  %v291 = vld [vmem:[%s2 + $0x3d8] sm:$0xf]
  %v292 = vld [vmem:[%s2 + $0x3dc] sm:$0xf]
  %v293 = vld [vmem:[%s2 + $0x3e0] sm:$0xf]
  %v294 = vld [vmem:[%s2 + $0x3e4] sm:$0xf]
  %v295 = vld [vmem:[%s2 + $0x3e8] sm:$0xf]
  %v296 = vld [vmem:[%s2 + $0x3ec] sm:$0xf]
  %v297 = vld [vmem:[%s2 + $0x3f0] sm:$0xf]
  %v298 = vld [vmem:[%s2 + $0x3f4] sm:$0xf]
  %v299 = vld [vmem:[%s2 + $0x3f8] sm:$0xf]
  %v300 = vld [vmem:[%s2 + $0x3fc] sm:$0xf]
  %v301 = vld [vmem:[%s2 + $0x400] sm:$0xf]
  %v302 = vld [vmem:[%s2 + $0x404] sm:$0xf]
  %v303 = vld [vmem:[%s2 + $0x408] sm:$0xf]
  %v304 = vld [vmem:[%s2 + $0x40c] sm:$0xf]
  %v305 = vld [vmem:[%s2 + $0x410] sm:$0xf]
  %v306 = vld [vmem:[%s2 + $0x414] sm:$0xf]
  %v307 = vld [vmem:[%s2 + $0x418] sm:$0xf]
  %v308 = vld [vmem:[%s2 + $0x41c] sm:$0xf]
  %v309 = vld [vmem:[%s2 + $0x420] sm:$0xf]
  %v310 = vld [vmem:[%s2 + $0x424] sm:$0xf]
  %v311 = vld [vmem:[%s2 + $0x428] sm:$0xf]
  %v312 = vld [vmem:[%s2 + $0x42c] sm:$0xf]
  %v313 = vld [vmem:[%s2 + $0x430] sm:$0xf]
  %v314 = vld [vmem:[%s2 + $0x434] sm:$0xf]
  %v315 = vld [vmem:[%s2 + $0x438] sm:$0xf]
  %v316 = vld [vmem:[%s2 + $0x43c] sm:$0xf]
  %v317 = vld [vmem:[%s2 + $0x440] sm:$0xf]
  %v318 = vld [vmem:[%s2 + $0x444] sm:$0xf]
  %v319 = vld [vmem:[%s2 + $0x448] sm:$0xf]
  %v320 = vld [vmem:[%s2 + $0x44c] sm:$0xf]
  %v321 = vld [vmem:[%s2 + $0x450] sm:$0xf]
  %v322 = vld [vmem:[%s2 + $0x454] sm:$0xf]
  %v323 = vld [vmem:[%s2 + $0x458] sm:$0xf]
  %v324 = vld [vmem:[%s2 + $0x45c] sm:$0xf]
  %v325 = vld [vmem:[%s2 + $0x460] sm:$0xf]
  %v326 = vld [vmem:[%s2 + $0x464] sm:$0xf]
  %v327 = vld [vmem:[%s2 + $0x468] sm:$0xf]
  %v328 = vld [vmem:[%s2 + $0x46c] sm:$0xf]
  %v329 = vld [vmem:[%s2 + $0x470] sm:$0xf]
  %v330 = vld [vmem:[%s2 + $0x474] sm:$0xf]
  %v331 = vld [vmem:[%s2 + $0x478] sm:$0xf]
  %v332 = vld [vmem:[%s2 + $0x47c] sm:$0xf]
  %v333 = vld [vmem:[%s2 + $0x480] sm:$0xf]
  %v334 = vld [vmem:[%s2 + $0x484] sm:$0xf]
  %v335 = vld [vmem:[%s2 + $0x488] sm:$0xf]
  %v336 = vld [vmem:[%s2 + $0x48c] sm:$0xf]
  %v337 = vld [vmem:[%s2 + $0x490] sm:$0xf]
  %v338 = vld [vmem:[%s2 + $0x494] sm:$0xf]
  %v339 = vld [vmem:[%s2 + $0x498] sm:$0xf]
  %v340 = vld [vmem:[%s2 + $0x49c] sm:$0xf]
  %v341 = vld [vmem:[%s2 + $0x4a0] sm:$0xf]
  %v342 = vld [vmem:[%s2 + $0x4a4] sm:$0xf]
  %v343 = vld [vmem:[%s2 + $0x4a8] sm:$0xf]
  %v344 = vld [vmem:[%s2 + $0x4ac] sm:$0xf]
  %v345 = vld [vmem:[%s2 + $0x4b0] sm:$0xf]
  %v346 = vld [vmem:[%s2 + $0x4b4] sm:$0xf]
  %v347 = vld [vmem:[%s2 + $0x4b8] sm:$0xf]
  %v348 = vld [vmem:[%s2 + $0x4bc] sm:$0xf]
  %v349 = vld [vmem:[%s2 + $0x4c0] sm:$0xf]
  %v350 = vld [vmem:[%s2 + $0x4c4] sm:$0xf]
  %v351 = vld [vmem:[%s2 + $0x4c8] sm:$0xf]
  %v352 = vld [vmem:[%s2 + $0x4cc] sm:$0xf]
  %v353 = vld [vmem:[%s2 + $0x4d0] sm:$0xf]
  %v354 = vld [vmem:[%s2 + $0x4d4] sm:$0xf]
  %v355 = vld [vmem:[%s2 + $0x4d8] sm:$0xf]
  %v356 = vld [vmem:[%s2 + $0x4dc] sm:$0xf]
  %v357 = vld [vmem:[%s2 + $0x4e0] sm:$0xf]
  %v358 = vld [vmem:[%s2 + $0x4e4] sm:$0xf]
  %v359 = vld [vmem:[%s2 + $0x4e8] sm:$0xf]
  %v360 = vld [vmem:[%s2 + $0x4ec] sm:$0xf]
  %v361 = vld [vmem:[%s2 + $0x4f0] sm:$0xf]
  %v362 = vld [vmem:[%s2 + $0x4f4] sm:$0xf]
  %v363 = vld [vmem:[%s2 + $0x4f8] sm:$0xf]
  %v364 = vld [vmem:[%s2 + $0x4fc] sm:$0xf]
  %v365 = vld [vmem:[%s2 + $0x500] sm:$0xf]
  %v366 = vld [vmem:[%s2 + $0x504] sm:$0xf]
  %v367 = vld [vmem:[%s2 + $0x508] sm:$0xf]
  %v368 = vld [vmem:[%s2 + $0x50c] sm:$0xf]
  %v369 = vld [vmem:[%s2 + $0x510] sm:$0xf]
  %v370 = vld [vmem:[%s2 + $0x514] sm:$0xf]
  %v371 = vld [vmem:[%s2 + $0x518] sm:$0xf]
  %v372 = vld [vmem:[%s2 + $0x51c] sm:$0xf]
  %v373 = vld [vmem:[%s2 + $0x520] sm:$0xf]
  %v374 = vld [vmem:[%s2 + $0x524] sm:$0xf]
  %v375 = vld [vmem:[%s2 + $0x528] sm:$0xf]
  %v376 = vld [vmem:[%s2 + $0x52c] sm:$0xf]
  %v377 = vld [vmem:[%s2 + $0x530] sm:$0xf]
  %v378 = vld [vmem:[%s2 + $0x534] sm:$0xf]
  %v379 = vld [vmem:[%s2 + $0x538] sm:$0xf]
  %v380 = vld [vmem:[%s2 + $0x53c] sm:$0xf]
  %v381 = vld [vmem:[%s2 + $0x540] sm:$0xf]
  %v382 = vld [vmem:[%s2 + $0x544] sm:$0xf]
  %v383 = vld [vmem:[%s2 + $0x548] sm:$0xf]
  %v384 = vld [vmem:[%s2 + $0x54c] sm:$0xf]
  %v385 = vld [vmem:[%s2 + $0x550] sm:$0xf]
  %v386 = vld [vmem:[%s2 + $0x554] sm:$0xf]
  %v387 = vld [vmem:[%s2 + $0x558] sm:$0xf]
  %v388 = vld [vmem:[%s2 + $0x55c] sm:$0xf]
  %v389 = vld [vmem:[%s2 + $0x560] sm:$0xf]
  %v390 = vld [vmem:[%s2 + $0x564] sm:$0xf]
  %v391 = vld [vmem:[%s2 + $0x568] sm:$0xf]
  %v392 = vld [vmem:[%s2 + $0x56c] sm:$0xf]
  %v393 = vld [vmem:[%s2 + $0x570] sm:$0xf]
  %v394 = vld [vmem:[%s2 + $0x574] sm:$0xf]
  %v395 = vld [vmem:[%s2 + $0x578] sm:$0xf]
  %v396 = vld [vmem:[%s2 + $0x57c] sm:$0xf]
  %v397 = vld [vmem:[%s2 + $0x580] sm:$0xf]
  %v398 = vld [vmem:[%s2 + $0x584] sm:$0xf]
  %v399 = vld [vmem:[%s2 + $0x588] sm:$0xf]
  %v400 = vld [vmem:[%s2 + $0x58c] sm:$0xf]
  %v401 = vld [vmem:[%s2 + $0x590] sm:$0xf]
  %v402 = vld [vmem:[%s2 + $0x594] sm:$0xf]
  %v403 = vld [vmem:[%s2 + $0x598] sm:$0xf]
  %v404 = vld [vmem:[%s2 + $0x59c] sm:$0xf]
  %v405 = vld [vmem:[%s2 + $0x5a0] sm:$0xf]
  %v406 = vld [vmem:[%s2 + $0x5a4] sm:$0xf]
  %v407 = vld [vmem:[%s2 + $0x5a8] sm:$0xf]
  %v408 = vld [vmem:[%s2 + $0x5ac] sm:$0xf]
  %v409 = vld [vmem:[%s2 + $0x5b0] sm:$0xf]
  %v410 = vld [vmem:[%s2 + $0x5b4] sm:$0xf]
  %v411 = vld [vmem:[%s2 + $0x5b8] sm:$0xf]
  %v412 = vld [vmem:[%s2 + $0x5bc] sm:$0xf]
  %v413 = vld [vmem:[%s2 + $0x5c0] sm:$0xf]
  %v414 = vld [vmem:[%s2 + $0x5c4] sm:$0xf]
  %v415 = vld [vmem:[%s2 + $0x5c8] sm:$0xf]
  %v416 = vld [vmem:[%s2 + $0x5cc] sm:$0xf]
  %v417 = vld [vmem:[%s2 + $0x5d0] sm:$0xf]
  %v418 = vld [vmem:[%s2 + $0x5d4] sm:$0xf]
  %v419 = vld [vmem:[%s2 + $0x5d8] sm:$0xf]
  %v420 = vld [vmem:[%s2 + $0x5dc] sm:$0xf]
  %v421 = vld [vmem:[%s2 + $0x5e0] sm:$0xf]
  %v422 = vld [vmem:[%s2 + $0x5e4] sm:$0xf]
  %v423 = vld [vmem:[%s2 + $0x5e8] sm:$0xf]
  %v424 = vld [vmem:[%s2 + $0x5ec] sm:$0xf]
  %v425 = vld [vmem:[%s2 + $0x5f0] sm:$0xf]
  %v426 = vld [vmem:[%s2 + $0x5f4] sm:$0xf]
  %v427 = vld [vmem:[%s2 + $0x5f8] sm:$0xf]
  %v428 = vld [vmem:[%s2 + $0x5fc] sm:$0xf]
  %v429 = vld [vmem:[%s2 + $0x600] sm:$0xf]
  %v430 = vld [vmem:[%s2 + $0x604] sm:$0xf]
  %v431 = vld [vmem:[%s2 + $0x608] sm:$0xf]
  %v432 = vld [vmem:[%s2 + $0x60c] sm:$0xf]
  %v433 = vld [vmem:[%s2 + $0x610] sm:$0xf]
  %v434 = vld [vmem:[%s2 + $0x614] sm:$0xf]
  %v435 = vld [vmem:[%s2 + $0x618] sm:$0xf]
  %v436 = vld [vmem:[%s2 + $0x61c] sm:$0xf]
  %v437 = vld [vmem:[%s2 + $0x620] sm:$0xf]
  %v438 = vld [vmem:[%s2 + $0x624] sm:$0xf]
  %v439 = vld [vmem:[%s2 + $0x628] sm:$0xf]
  %v440 = vld [vmem:[%s2 + $0x62c] sm:$0xf]
  %v441 = vld [vmem:[%s2 + $0x630] sm:$0xf]
  %v442 = vld [vmem:[%s2 + $0x634] sm:$0xf]
  %v443 = vld [vmem:[%s2 + $0x638] sm:$0xf]
  %v444 = vld [vmem:[%s2 + $0x63c] sm:$0xf]
  %v445 = vld [vmem:[%s2 + $0x640] sm:$0xf]
  %v446 = vld [vmem:[%s2 + $0x644] sm:$0xf]
  %v447 = vld [vmem:[%s2 + $0x648] sm:$0xf]
  %v448 = vld [vmem:[%s2 + $0x64c] sm:$0xf]
  %v449 = vld [vmem:[%s2 + $0x650] sm:$0xf]
  %v450 = vld [vmem:[%s2 + $0x654] sm:$0xf]
  %v451 = vld [vmem:[%s2 + $0x658] sm:$0xf]
  %v452 = vld [vmem:[%s2 + $0x65c] sm:$0xf]
  %v453 = vld [vmem:[%s2 + $0x660] sm:$0xf]
  %v454 = vld [vmem:[%s2 + $0x664] sm:$0xf]
  %v455 = vld [vmem:[%s2 + $0x668] sm:$0xf]
  %v456 = vld [vmem:[%s2 + $0x66c] sm:$0xf]
  %v457 = vld [vmem:[%s2 + $0x670] sm:$0xf]
  %v458 = vld [vmem:[%s2 + $0x674] sm:$0xf]
  %v459 = vld [vmem:[%s2 + $0x678] sm:$0xf]
  %v460 = vld [vmem:[%s2 + $0x67c] sm:$0xf]
  %v461 = vld [vmem:[%s2 + $0x680] sm:$0xf]
  %v462 = vld [vmem:[%s2 + $0x684] sm:$0xf]
  %v463 = vld [vmem:[%s2 + $0x688] sm:$0xf]
  %v464 = vld [vmem:[%s2 + $0x68c] sm:$0xf]
  %v465 = vld [vmem:[%s2 + $0x690] sm:$0xf]
  %v466 = vld [vmem:[%s2 + $0x694] sm:$0xf]
  %v467 = vld [vmem:[%s2 + $0x698] sm:$0xf]
  %v468 = vld [vmem:[%s2 + $0x69c] sm:$0xf]
  %v469 = vld [vmem:[%s2 + $0x6a0] sm:$0xf]
  %v470 = vld [vmem:[%s2 + $0x6a4] sm:$0xf]
  %v471 = vld [vmem:[%s2 + $0x6a8] sm:$0xf]
  %v472 = vld [vmem:[%s2 + $0x6ac] sm:$0xf]
  %v473 = vld [vmem:[%s2 + $0x6b0] sm:$0xf]
  %v474 = vld [vmem:[%s2 + $0x6b4] sm:$0xf]
  %v475 = vld [vmem:[%s2 + $0x6b8] sm:$0xf]
  %v476 = vld [vmem:[%s2 + $0x6bc] sm:$0xf]
  %v477 = vld [vmem:[%s2 + $0x6c0] sm:$0xf]
  %v478 = vld [vmem:[%s2 + $0x6c4] sm:$0xf]
  %v479 = vld [vmem:[%s2 + $0x6c8] sm:$0xf]
  %v480 = vld [vmem:[%s2 + $0x6cc] sm:$0xf]
  %v481 = vld [vmem:[%s2 + $0x6d0] sm:$0xf]
  %v482 = vld [vmem:[%s2 + $0x6d4] sm:$0xf]
  %v483 = vld [vmem:[%s2 + $0x6d8] sm:$0xf]
  %v484 = vld [vmem:[%s2 + $0x6dc] sm:$0xf]
  %v485 = vld [vmem:[%s2 + $0x6e0] sm:$0xf]
  %v486 = vld [vmem:[%s2 + $0x6e4] sm:$0xf]
  %v487 = vld [vmem:[%s2 + $0x6e8] sm:$0xf]
  %v488 = vld [vmem:[%s2 + $0x6ec] sm:$0xf]
  %v489 = vld [vmem:[%s2 + $0x6f0] sm:$0xf]
  %v490 = vld [vmem:[%s2 + $0x6f4] sm:$0xf]
  %v491 = vld [vmem:[%s2 + $0x6f8] sm:$0xf]
  %v492 = vld [vmem:[%s2 + $0x6fc] sm:$0xf]
  %v493 = vld [vmem:[%s2 + $0x700] sm:$0xf]
  %v494 = vld [vmem:[%s2 + $0x704] sm:$0xf]
  %v495 = vld [vmem:[%s2 + $0x708] sm:$0xf]
  %v496 = vld [vmem:[%s2 + $0x70c] sm:$0xf]
  %v497 = vld [vmem:[%s2 + $0x710] sm:$0xf]
  %v498 = vld [vmem:[%s2 + $0x714] sm:$0xf]
  %v499 = vld [vmem:[%s2 + $0x718] sm:$0xf]
  %v500 = vld [vmem:[%s2 + $0x71c] sm:$0xf]
  %v501 = vld [vmem:[%s2 + $0x720] sm:$0xf]
  %v502 = vld [vmem:[%s2 + $0x724] sm:$0xf]
  %v503 = vld [vmem:[%s2 + $0x728] sm:$0xf]
  %v504 = vld [vmem:[%s2 + $0x72c] sm:$0xf]
  %v505 = vld [vmem:[%s2 + $0x730] sm:$0xf]
  %v506 = vld [vmem:[%s2 + $0x734] sm:$0xf]
  %v507 = vld [vmem:[%s2 + $0x738] sm:$0xf]
  %v508 = vld [vmem:[%s2 + $0x73c] sm:$0xf]
  %v509 = vld [vmem:[%s2 + $0x740] sm:$0xf]
  %v510 = vld [vmem:[%s2 + $0x744] sm:$0xf]
  %v511 = vld [vmem:[%s2 + $0x748] sm:$0xf]
  %v512 = vld [vmem:[%s2 + $0x74c] sm:$0xf]
  %v513 = vld [vmem:[%s2 + $0x750] sm:$0xf]
  %v514 = vld [vmem:[%s2 + $0x754] sm:$0xf]
  %v515 = vld [vmem:[%s2 + $0x758] sm:$0xf]
  %v516 = vld [vmem:[%s2 + $0x75c] sm:$0xf]
  %v517 = vld [vmem:[%s2 + $0x760] sm:$0xf]
  %v518 = vld [vmem:[%s2 + $0x764] sm:$0xf]
  %v519 = vld [vmem:[%s2 + $0x768] sm:$0xf]
  %v520 = vld [vmem:[%s2 + $0x76c] sm:$0xf]
  %v521 = vld [vmem:[%s2 + $0x770] sm:$0xf]
  %v522 = vld [vmem:[%s2 + $0x774] sm:$0xf]
  %v523 = vld [vmem:[%s2 + $0x778] sm:$0xf]
  %v524 = vld [vmem:[%s2 + $0x77c] sm:$0xf]
  %v525 = vld [vmem:[%s2 + $0x780] sm:$0xf]
  %v526 = vld [vmem:[%s2 + $0x784] sm:$0xf]
  %v527 = vld [vmem:[%s2 + $0x788] sm:$0xf]
  %v528 = vld [vmem:[%s2 + $0x78c] sm:$0xf]
  %v529 = vld [vmem:[%s2 + $0x790] sm:$0xf]
  %v530 = vld [vmem:[%s2 + $0x794] sm:$0xf]
  %v531 = vld [vmem:[%s2 + $0x798] sm:$0xf]
  %v532 = vld [vmem:[%s2 + $0x79c] sm:$0xf]
  %v533 = vld [vmem:[%s2 + $0x7a0] sm:$0xf]
  %v534 = vld [vmem:[%s2 + $0x7a4] sm:$0xf]
  %v535 = vld [vmem:[%s2 + $0x7a8] sm:$0xf]
  %v536 = vld [vmem:[%s2 + $0x7ac] sm:$0xf]
  %v537 = vld [vmem:[%s2 + $0x7b0] sm:$0xf]
  %v538 = vld [vmem:[%s2 + $0x7b4] sm:$0xf]
  %v539 = vld [vmem:[%s2 + $0x7b8] sm:$0xf]
  %v540 = vld [vmem:[%s2 + $0x7bc] sm:$0xf]
  %v541 = vld [vmem:[%s2 + $0x7c0] sm:$0xf]
  %v542 = vld [vmem:[%s2 + $0x7c4] sm:$0xf]
  %v543 = vld [vmem:[%s2 + $0x7c8] sm:$0xf]
  %v544 = vld [vmem:[%s2 + $0x7cc] sm:$0xf]
  %v545 = vld [vmem:[%s2 + $0x7d0] sm:$0xf]
  %v546 = vld [vmem:[%s2 + $0x7d4] sm:$0xf]
  %v547 = vld [vmem:[%s2 + $0x7d8] sm:$0xf]
  %v548 = vld [vmem:[%s2 + $0x7dc] sm:$0xf]
  %v549 = vld [vmem:[%s2 + $0x7e0] sm:$0xf]
  %v550 = vld [vmem:[%s2 + $0x7e4] sm:$0xf]
  %v551 = vld [vmem:[%s2 + $0x7e8] sm:$0xf]
  %v552 = vld [vmem:[%s2 + $0x7ec] sm:$0xf]
  %v553 = vld [vmem:[%s2 + $0x7f0] sm:$0xf]
  %v554 = vld [vmem:[%s2 + $0x7f4] sm:$0xf]
  %v555 = vld [vmem:[%s2 + $0x7f8] sm:$0xf]
  %v556 = vld [vmem:[%s2 + $0x7fc] sm:$0xf]
  %v557 = vld [vmem:[%s2 + $0x800] sm:$0xf]
  %v558 = vld [vmem:[%s2 + $0x804] sm:$0xf]
  %v559 = vld [vmem:[%s2 + $0x808] sm:$0xf]
  %v560 = vld [vmem:[%s2 + $0x80c] sm:$0xf]
  %v561 = vld [vmem:[%s2 + $0x810] sm:$0xf]
  %v562 = vld [vmem:[%s2 + $0x814] sm:$0xf]
  %v563 = vld [vmem:[%s2 + $0x818] sm:$0xf]
  %v564 = vld [vmem:[%s2 + $0x81c] sm:$0xf]
  %v565 = vld [vmem:[%s2 + $0x820] sm:$0xf]
  %v566 = vld [vmem:[%s2 + $0x824] sm:$0xf]
  %v567 = vld [vmem:[%s2 + $0x828] sm:$0xf]
  %v568 = vld [vmem:[%s2 + $0x82c] sm:$0xf]
  %v569 = vld [vmem:[%s2 + $0x830] sm:$0xf]
  %v570 = vld [vmem:[%s2 + $0x834] sm:$0xf]
  %v571 = vld [vmem:[%s2 + $0x838] sm:$0xf]
  %v572 = vld [vmem:[%s2 + $0x83c] sm:$0xf]
  %v573 = vld [vmem:[%s2 + $0x840] sm:$0xf]
  %v574 = vld [vmem:[%s2 + $0x844] sm:$0xf]
  %v575 = vld [vmem:[%s2 + $0x848] sm:$0xf]
  %v576 = vld [vmem:[%s2 + $0x84c] sm:$0xf]
  %v577 = vld [vmem:[%s2 + $0x850] sm:$0xf]
  %v578 = vld [vmem:[%s2 + $0x854] sm:$0xf]
  %v579 = vld [vmem:[%s2 + $0x858] sm:$0xf]
  %v580 = vld [vmem:[%s2 + $0x85c] sm:$0xf]
  %v581 = vld [vmem:[%s2 + $0x860] sm:$0xf]
  %v582 = vld [vmem:[%s2 + $0x864] sm:$0xf]
  %v583 = vld [vmem:[%s2 + $0x868] sm:$0xf]
  %v584 = vld [vmem:[%s2 + $0x86c] sm:$0xf]
  %v585 = vld [vmem:[%s2 + $0x870] sm:$0xf]
  %v586 = vld [vmem:[%s2 + $0x874] sm:$0xf]
  %v587 = vld [vmem:[%s2 + $0x878] sm:$0xf]
  %v588 = vld [vmem:[%s2 + $0x87c] sm:$0xf]
  %v589 = vld [vmem:[%s2 + $0x880] sm:$0xf]
  %v590 = vld [vmem:[%s2 + $0x884] sm:$0xf]
  %v591 = vld [vmem:[%s2 + $0x888] sm:$0xf]
  %v592 = vld [vmem:[%s2 + $0x88c] sm:$0xf]
  %v593 = vld [vmem:[%s2 + $0x890] sm:$0xf]
  %v594 = vld [vmem:[%s2 + $0x894] sm:$0xf]
  %v595 = vld [vmem:[%s2 + $0x898] sm:$0xf]
  %v596 = vld [vmem:[%s2 + $0x89c] sm:$0xf]
  %v597 = vld [vmem:[%s2 + $0x8a0] sm:$0xf]
  %v598 = vld [vmem:[%s2 + $0x8a4] sm:$0xf]
  %v599 = vld [vmem:[%s2 + $0x8a8] sm:$0xf]
  %v600 = vld [vmem:[%s2 + $0x8ac] sm:$0xf]
  %v601 = vld [vmem:[%s2 + $0x8b0] sm:$0xf]
  %v602 = vld [vmem:[%s2 + $0x8b4] sm:$0xf]
  %v603 = vld [vmem:[%s2 + $0x8b8] sm:$0xf]
  %v604 = vld [vmem:[%s2 + $0x8bc] sm:$0xf]
  %v605 = vld [vmem:[%s4 + $0x13] sm:$0x1]
  %v606 = vlaneseq
  %v607 = vshrl.u32 %v606, 7
  %v608 = vsub.s32 0, %v607
  %v609 = vrot.slane %v605, %v608
  %v628 = vunpack.c.l.b16 %v24
  %v629 = vunpack.c.h.b16 %v24
  %v630 = vunpack.c.l.b16 %v25
  %v631 = vunpack.c.h.b16 %v25
  %v632 = vunpack.c.l.b16 %v26
  %v633 = vunpack.c.h.b16 %v26
  %v634 = vunpack.c.l.b16 %v27
  %v635 = vunpack.c.h.b16 %v27
  %v636 = vunpack.c.l.b16 %v28
  %v637 = vunpack.c.h.b16 %v28
  %v638 = vunpack.c.l.b16 %v29
  %v639 = vunpack.c.h.b16 %v29
  %v640 = vunpack.c.l.b16 %v30
  %v641 = vunpack.c.h.b16 %v30
  %v642 = vunpack.c.l.b16 %v31
  %v643 = vunpack.c.h.b16 %v31
  %v644 = vunpack.c.l.b16 %v32
  %v645 = vunpack.c.h.b16 %v32
  %v646 = vunpack.c.l.b16 %v33
  %v647 = vunpack.c.h.b16 %v33
  %v648 = vunpack.c.l.b16 %v34
  %v649 = vunpack.c.h.b16 %v34
  %v650 = vunpack.c.l.b16 %v35
  %v651 = vunpack.c.h.b16 %v35
  %v652 = vunpack.c.l.b16 %v36
  %v653 = vunpack.c.h.b16 %v36
  %v654 = vunpack.c.l.b16 %v37
  %v655 = vunpack.c.h.b16 %v37
  %v656 = vunpack.c.l.b16 %v38
  %v657 = vunpack.c.h.b16 %v38
  %v658 = vunpack.c.l.b16 %v39
  %v659 = vunpack.c.h.b16 %v39
  %v660 = vunpack.c.l.b16 %v40
  %v661 = vunpack.c.h.b16 %v40
  %v662 = vunpack.c.l.b16 %v41
  %v663 = vpack.c.b16 %v628, %v628
  %v664 = vpack.c.b16 %v629, %v629
  %v665 = vpack.c.b16 %v630, %v630
  %v666 = vpack.c.b16 %v631, %v631
  %v667 = vpack.c.b16 %v632, %v632
  %v668 = vpack.c.b16 %v633, %v633
  %v669 = vpack.c.b16 %v634, %v634
  %v670 = vpack.c.b16 %v635, %v635
  %v671 = vpack.c.b16 %v636, %v636
  %v672 = vpack.c.b16 %v637, %v637
  %v673 = vpack.c.b16 %v638, %v638
  %v674 = vpack.c.b16 %v639, %v639
  %v675 = vpack.c.b16 %v640, %v640
  %v676 = vpack.c.b16 %v641, %v641
  %v677 = vpack.c.b16 %v642, %v642
  %v678 = vpack.c.b16 %v643, %v643
  %v679 = vpack.c.b16 %v644, %v644
  %v680 = vpack.c.b16 %v645, %v645
  %v681 = vpack.c.b16 %v646, %v646
  %v682 = vpack.c.b16 %v647, %v647
  %v683 = vpack.c.b16 %v648, %v648
  %v684 = vpack.c.b16 %v649, %v649
  %v685 = vpack.c.b16 %v650, %v650
  %v686 = vpack.c.b16 %v651, %v651
  %v687 = vpack.c.b16 %v652, %v652
  %v688 = vpack.c.b16 %v653, %v653
  %v689 = vpack.c.b16 %v654, %v654
  %v690 = vpack.c.b16 %v655, %v655
  %v691 = vpack.c.b16 %v656, %v656
  %v692 = vpack.c.b16 %v657, %v657
  %v693 = vpack.c.b16 %v658, %v658
  %v694 = vpack.c.b16 %v659, %v659
  %v695 = vpack.c.b16 %v660, %v660
  %v696 = vpack.c.b16 %v661, %v661
  %v697 = vpack.c.b16 %v662, %v662
  %v1293 = vunpack.c.l.b16 %v45
  %v1294 = vunpack.c.l.b16 %v46
  %v1295 = vunpack.c.l.b16 %v47
  %v1296 = vunpack.c.l.b16 %v48
  %v1297 = vunpack.c.l.b16 %v49
  %v1298 = vunpack.c.l.b16 %v50
  %v1299 = vunpack.c.l.b16 %v51
  %v1300 = vunpack.c.l.b16 %v52
  %v1301 = vunpack.c.l.b16 %v53
  %v1302 = vunpack.c.l.b16 %v54
  %v1303 = vunpack.c.l.b16 %v55
  %v1304 = vunpack.c.l.b16 %v56
  %v1305 = vunpack.c.l.b16 %v57
  %v1306 = vunpack.c.l.b16 %v58
  %v1307 = vunpack.c.l.b16 %v59
  %v1308 = vunpack.c.l.b16 %v60
  %v1309 = vunpack.c.l.b16 %v61
  %v1310 = vunpack.c.l.b16 %v62
  %v1311 = vunpack.c.l.b16 %v63
  %v1312 = vunpack.c.l.b16 %v64
  %v1313 = vunpack.c.l.b16 %v65
  %v1314 = vunpack.c.l.b16 %v66
  %v1315 = vunpack.c.l.b16 %v67
  %v1316 = vunpack.c.l.b16 %v68
  %v1317 = vunpack.c.l.b16 %v69
  %v1318 = vunpack.c.l.b16 %v70
  %v1319 = vunpack.c.l.b16 %v71
  %v1320 = vunpack.c.l.b16 %v72
  %v1321 = vunpack.c.l.b16 %v73
  %v1322 = vunpack.c.l.b16 %v74
  %v1323 = vunpack.c.l.b16 %v75
  %v1324 = vunpack.c.l.b16 %v76
  %v1325 = vunpack.c.l.b16 %v77
  %v1326 = vunpack.c.l.b16 %v78
  %v1327 = vunpack.c.l.b16 %v79
  %v1328 = vunpack.c.l.b16 %v80
  %v1329 = vunpack.c.l.b16 %v81
  %v1330 = vunpack.c.l.b16 %v82
  %v1331 = vunpack.c.l.b16 %v83
  %v1332 = vunpack.c.l.b16 %v84
  %v1333 = vunpack.c.l.b16 %v85
  %v1334 = vunpack.c.l.b16 %v86
  %v1335 = vunpack.c.l.b16 %v87
  %v1336 = vunpack.c.l.b16 %v88
  %v1337 = vunpack.c.l.b16 %v89
  %v1338 = vunpack.c.l.b16 %v90
  %v1339 = vunpack.c.l.b16 %v91
  %v1340 = vunpack.c.l.b16 %v92
  %v1341 = vunpack.c.l.b16 %v93
  %v1342 = vunpack.c.l.b16 %v94
  %v1343 = vunpack.c.l.b16 %v95
  %v1344 = vunpack.c.l.b16 %v96
  %v1345 = vunpack.c.l.b16 %v97
  %v1346 = vunpack.c.l.b16 %v98
  %v1347 = vunpack.c.l.b16 %v99
  %v1348 = vunpack.c.l.b16 %v100
  %v1349 = vunpack.c.l.b16 %v101
  %v1350 = vunpack.c.l.b16 %v102
  %v1351 = vunpack.c.l.b16 %v103
  %v1352 = vunpack.c.l.b16 %v104
  %v1353 = vunpack.c.l.b16 %v105
  %v1354 = vunpack.c.l.b16 %v106
  %v1355 = vunpack.c.l.b16 %v107
  %v1356 = vunpack.c.l.b16 %v108
  %v1357 = vunpack.c.l.b16 %v109
  %v1358 = vunpack.c.l.b16 %v110
  %v1359 = vunpack.c.l.b16 %v111
  %v1360 = vunpack.c.l.b16 %v112
  %v1361 = vunpack.c.l.b16 %v113
  %v1362 = vunpack.c.l.b16 %v114
  %v1363 = vunpack.c.l.b16 %v115
  %v1364 = vunpack.c.l.b16 %v116
  %v1365 = vunpack.c.l.b16 %v117
  %v1366 = vunpack.c.l.b16 %v118
  %v1367 = vunpack.c.l.b16 %v119
  %v1368 = vunpack.c.l.b16 %v120
  %v1369 = vunpack.c.l.b16 %v121
  %v1370 = vunpack.c.l.b16 %v122
  %v1371 = vunpack.c.l.b16 %v123
  %v1372 = vunpack.c.l.b16 %v124
  %v1373 = vunpack.c.l.b16 %v125
  %v1374 = vunpack.c.l.b16 %v126
  %v1375 = vunpack.c.l.b16 %v127
  %v1376 = vunpack.c.l.b16 %v128
  %v1377 = vunpack.c.l.b16 %v129
  %v1378 = vunpack.c.l.b16 %v130
  %v1379 = vunpack.c.l.b16 %v131
  %v1380 = vunpack.c.l.b16 %v132
  %v1381 = vunpack.c.l.b16 %v133
  %v1382 = vunpack.c.l.b16 %v134
  %v1383 = vunpack.c.l.b16 %v135
  %v1384 = vunpack.c.l.b16 %v136
  %v1385 = vunpack.c.l.b16 %v137
  %v1386 = vunpack.c.l.b16 %v138
  %v1387 = vunpack.c.l.b16 %v139
  %v1388 = vunpack.c.l.b16 %v140
  %v1389 = vunpack.c.l.b16 %v141
  %v1390 = vunpack.c.l.b16 %v142
  %v1391 = vunpack.c.l.b16 %v143
  %v1392 = vunpack.c.l.b16 %v144
  %v1393 = vunpack.c.l.b16 %v145
  %v1394 = vunpack.c.l.b16 %v146
  %v1395 = vunpack.c.l.b16 %v147
  %v1396 = vunpack.c.l.b16 %v148
  %v1397 = vunpack.c.l.b16 %v149
  %v1398 = vunpack.c.l.b16 %v150
  %v1399 = vunpack.c.l.b16 %v151
  %v1400 = vunpack.c.l.b16 %v152
  %v1401 = vunpack.c.l.b16 %v153
  %v1402 = vunpack.c.l.b16 %v154
  %v1403 = vunpack.c.l.b16 %v155
  %v1404 = vunpack.c.l.b16 %v156
  %v1405 = vunpack.c.l.b16 %v157
  %v1406 = vunpack.c.l.b16 %v158
  %v1407 = vunpack.c.l.b16 %v159
  %v1408 = vunpack.c.l.b16 %v160
  %v1409 = vunpack.c.l.b16 %v161
  %v1410 = vunpack.c.l.b16 %v162
  %v1411 = vunpack.c.l.b16 %v163
  %v1412 = vunpack.c.l.b16 %v164
  %v1413 = vunpack.c.l.b16 %v165
  %v1414 = vunpack.c.l.b16 %v166
  %v1415 = vunpack.c.l.b16 %v167
  %v1416 = vunpack.c.l.b16 %v168
  %v1417 = vunpack.c.l.b16 %v169
  %v1418 = vunpack.c.l.b16 %v170
  %v1419 = vunpack.c.l.b16 %v171
  %v1420 = vunpack.c.l.b16 %v172
  %v1421 = vunpack.c.l.b16 %v173
  %v1422 = vunpack.c.l.b16 %v174
  %v1423 = vunpack.c.l.b16 %v175
  %v1424 = vunpack.c.l.b16 %v176
  %v1425 = vunpack.c.l.b16 %v177
  %v1426 = vunpack.c.l.b16 %v178
  %v1427 = vunpack.c.l.b16 %v179
  %v1428 = vunpack.c.l.b16 %v180
  %v1429 = vunpack.c.l.b16 %v181
  %v1430 = vunpack.c.l.b16 %v182
  %v1431 = vunpack.c.l.b16 %v183
  %v1432 = vunpack.c.l.b16 %v184
  %v1433 = vunpack.c.l.b16 %v185
  %v1434 = vunpack.c.l.b16 %v186
  %v1435 = vunpack.c.l.b16 %v187
  %v1436 = vunpack.c.l.b16 %v188
  %v1437 = vunpack.c.l.b16 %v189
  %v1438 = vunpack.c.l.b16 %v190
  %v1439 = vunpack.c.l.b16 %v191
  %v1440 = vunpack.c.l.b16 %v192
  %v1441 = vunpack.c.l.b16 %v193
  %v1442 = vunpack.c.l.b16 %v194
  %v1443 = vunpack.c.l.b16 %v195
  %v1444 = vunpack.c.l.b16 %v196
  %v1445 = vunpack.c.l.b16 %v197
  %v1446 = vunpack.c.l.b16 %v198
  %v1447 = vunpack.c.l.b16 %v199
  %v1448 = vunpack.c.l.b16 %v200
  %v1449 = vunpack.c.l.b16 %v201
  %v1450 = vunpack.c.l.b16 %v202
  %v1451 = vunpack.c.l.b16 %v203
  %v1452 = vunpack.c.l.b16 %v204
  %v1453 = vunpack.c.l.b16 %v205
  %v1454 = vunpack.c.l.b16 %v206
  %v1455 = vunpack.c.l.b16 %v207
  %v1456 = vunpack.c.l.b16 %v208
  %v1457 = vunpack.c.l.b16 %v209
  %v1458 = vunpack.c.l.b16 %v210
  %v1459 = vunpack.c.l.b16 %v211
  %v1460 = vunpack.c.l.b16 %v212
  %v1461 = vunpack.c.l.b16 %v213
  %v1462 = vunpack.c.l.b16 %v214
  %v1463 = vunpack.c.l.b16 %v215
  %v1464 = vunpack.c.l.b16 %v216
  %v1465 = vunpack.c.l.b16 %v217
  %v1466 = vunpack.c.l.b16 %v218
  %v1467 = vunpack.c.l.b16 %v219
  %v1468 = vunpack.c.l.b16 %v220
  %v1469 = vunpack.c.l.b16 %v221
  %v1470 = vunpack.c.l.b16 %v222
  %v1471 = vunpack.c.l.b16 %v223
  %v1472 = vunpack.c.l.b16 %v224
  %v1473 = vunpack.c.l.b16 %v225
  %v1474 = vunpack.c.l.b16 %v226
  %v1475 = vunpack.c.l.b16 %v227
  %v1476 = vunpack.c.l.b16 %v228
  %v1477 = vunpack.c.l.b16 %v229
  %v1478 = vunpack.c.l.b16 %v230
  %v1479 = vunpack.c.l.b16 %v231
  %v1480 = vunpack.c.l.b16 %v232
  %v1481 = vunpack.c.l.b16 %v233
  %v1482 = vunpack.c.l.b16 %v234
  %v1483 = vunpack.c.l.b16 %v235
  %v1484 = vunpack.c.l.b16 %v236
  %v1485 = vunpack.c.l.b16 %v237
  %v1486 = vunpack.c.l.b16 %v238
  %v1487 = vunpack.c.l.b16 %v239
  %v1488 = vunpack.c.l.b16 %v240
  %v1489 = vunpack.c.l.b16 %v241
  %v1490 = vunpack.c.l.b16 %v242
  %v1491 = vunpack.c.l.b16 %v243
  %v1492 = vunpack.c.l.b16 %v244
  %v1493 = vunpack.c.l.b16 %v245
  %v1494 = vunpack.c.l.b16 %v246
  %v1495 = vunpack.c.l.b16 %v247
  %v1496 = vunpack.c.l.b16 %v248
  %v1497 = vunpack.c.l.b16 %v249
  %v1498 = vunpack.c.l.b16 %v250
  %v1499 = vunpack.c.l.b16 %v251
  %v1500 = vunpack.c.l.b16 %v252
  %v1501 = vunpack.c.l.b16 %v253
  %v1502 = vunpack.c.l.b16 %v254
  %v1503 = vunpack.c.l.b16 %v255
  %v1504 = vunpack.c.l.b16 %v256
  %v1505 = vunpack.c.l.b16 %v257
  %v1506 = vunpack.c.l.b16 %v258
  %v1507 = vunpack.c.l.b16 %v259
  %v1508 = vunpack.c.l.b16 %v260
  %v1509 = vunpack.c.l.b16 %v261
  %v1510 = vunpack.c.l.b16 %v262
  %v1511 = vunpack.c.l.b16 %v263
  %v1512 = vunpack.c.l.b16 %v264
  %v1513 = vunpack.c.l.b16 %v265
  %v1514 = vunpack.c.l.b16 %v266
  %v1515 = vunpack.c.l.b16 %v267
  %v1516 = vunpack.c.l.b16 %v268
  %v1517 = vunpack.c.l.b16 %v269
  %v1518 = vunpack.c.l.b16 %v270
  %v1519 = vunpack.c.l.b16 %v271
  %v1520 = vunpack.c.l.b16 %v272
  %v1521 = vunpack.c.l.b16 %v273
  %v1522 = vunpack.c.l.b16 %v274
  %v1523 = vunpack.c.l.b16 %v275
  %v1524 = vunpack.c.l.b16 %v276
  %v1525 = vunpack.c.l.b16 %v277
  %v1526 = vunpack.c.l.b16 %v278
  %v1527 = vunpack.c.l.b16 %v279
  %v1528 = vunpack.c.l.b16 %v280
  %v1529 = vunpack.c.l.b16 %v281
  %v1530 = vunpack.c.l.b16 %v282
  %v1531 = vunpack.c.l.b16 %v283
  %v1532 = vunpack.c.l.b16 %v284
  %v1533 = vunpack.c.l.b16 %v285
  %v1534 = vunpack.c.l.b16 %v286
  %v1535 = vunpack.c.l.b16 %v287
  %v1536 = vunpack.c.l.b16 %v288
  %v1537 = vunpack.c.l.b16 %v289
  %v1538 = vunpack.c.l.b16 %v290
  %v1539 = vunpack.c.l.b16 %v291
  %v1540 = vunpack.c.l.b16 %v292
  %v1541 = vunpack.c.l.b16 %v293
  %v1542 = vunpack.c.l.b16 %v294
  %v1543 = vunpack.c.l.b16 %v295
  %v1544 = vunpack.c.l.b16 %v296
  %v1545 = vunpack.c.l.b16 %v297
  %v1546 = vunpack.c.l.b16 %v298
  %v1547 = vunpack.c.l.b16 %v299
  %v1548 = vunpack.c.l.b16 %v300
  %v1549 = vunpack.c.l.b16 %v301
  %v1550 = vunpack.c.l.b16 %v302
  %v1551 = vunpack.c.l.b16 %v303
  %v1552 = vunpack.c.l.b16 %v304
  %v1553 = vunpack.c.l.b16 %v305
  %v1554 = vunpack.c.l.b16 %v306
  %v1555 = vunpack.c.l.b16 %v307
  %v1556 = vunpack.c.l.b16 %v308
  %v1557 = vunpack.c.l.b16 %v309
  %v1558 = vunpack.c.l.b16 %v310
  %v1559 = vunpack.c.l.b16 %v311
  %v1560 = vunpack.c.l.b16 %v312
  %v1561 = vunpack.c.l.b16 %v313
  %v1562 = vunpack.c.l.b16 %v314
  %v1563 = vunpack.c.l.b16 %v315
  %v1564 = vunpack.c.l.b16 %v316
  %v1565 = vunpack.c.l.b16 %v317
  %v1566 = vunpack.c.l.b16 %v318
  %v1567 = vunpack.c.l.b16 %v319
  %v1568 = vunpack.c.l.b16 %v320
  %v1569 = vunpack.c.l.b16 %v321
  %v1570 = vunpack.c.l.b16 %v322
  %v1571 = vunpack.c.l.b16 %v323
  %v1572 = vunpack.c.l.b16 %v324
  %v1573 = vunpack.c.l.b16 %v325
  %v1574 = vunpack.c.l.b16 %v326
  %v1575 = vunpack.c.l.b16 %v327
  %v1576 = vunpack.c.l.b16 %v328
  %v1577 = vunpack.c.l.b16 %v329
  %v1578 = vunpack.c.l.b16 %v330
  %v1579 = vunpack.c.l.b16 %v331
  %v1580 = vunpack.c.l.b16 %v332
  %v1581 = vunpack.c.l.b16 %v333
  %v1582 = vunpack.c.l.b16 %v334
  %v1583 = vunpack.c.l.b16 %v335
  %v1584 = vunpack.c.l.b16 %v336
  %v1585 = vunpack.c.l.b16 %v337
  %v1586 = vunpack.c.l.b16 %v338
  %v1587 = vunpack.c.l.b16 %v339
  %v1588 = vunpack.c.l.b16 %v340
  %v1589 = vunpack.c.l.b16 %v341
  %v1590 = vunpack.c.l.b16 %v342
  %v1591 = vunpack.c.l.b16 %v343
  %v1592 = vunpack.c.l.b16 %v344
  %v1593 = vunpack.c.l.b16 %v345
  %v1594 = vunpack.c.l.b16 %v346
  %v1595 = vunpack.c.l.b16 %v347
  %v1596 = vunpack.c.l.b16 %v348
  %v1597 = vunpack.c.l.b16 %v349
  %v1598 = vunpack.c.l.b16 %v350
  %v1599 = vunpack.c.l.b16 %v351
  %v1600 = vunpack.c.l.b16 %v352
  %v1601 = vunpack.c.l.b16 %v353
  %v1602 = vunpack.c.l.b16 %v354
  %v1603 = vunpack.c.l.b16 %v355
  %v1604 = vunpack.c.l.b16 %v356
  %v1605 = vunpack.c.l.b16 %v357
  %v1606 = vunpack.c.l.b16 %v358
  %v1607 = vunpack.c.l.b16 %v359
  %v1608 = vunpack.c.l.b16 %v360
  %v1609 = vunpack.c.l.b16 %v361
  %v1610 = vunpack.c.l.b16 %v362
  %v1611 = vunpack.c.l.b16 %v363
  %v1612 = vunpack.c.l.b16 %v364
  %v1613 = vunpack.c.l.b16 %v365
  %v1614 = vunpack.c.l.b16 %v366
  %v1615 = vunpack.c.l.b16 %v367
  %v1616 = vunpack.c.l.b16 %v368
  %v1617 = vunpack.c.l.b16 %v369
  %v1618 = vunpack.c.l.b16 %v370
  %v1619 = vunpack.c.l.b16 %v371
  %v1620 = vunpack.c.l.b16 %v372
  %v1621 = vunpack.c.l.b16 %v373
  %v1622 = vunpack.c.l.b16 %v374
  %v1623 = vunpack.c.l.b16 %v375
  %v1624 = vunpack.c.l.b16 %v376
  %v1625 = vunpack.c.l.b16 %v377
  %v1626 = vunpack.c.l.b16 %v378
  %v1627 = vunpack.c.l.b16 %v379
  %v1628 = vunpack.c.l.b16 %v380
  %v1629 = vunpack.c.l.b16 %v381
  %v1630 = vunpack.c.l.b16 %v382
  %v1631 = vunpack.c.l.b16 %v383
  %v1632 = vunpack.c.l.b16 %v384
  %v1633 = vunpack.c.l.b16 %v385
  %v1634 = vunpack.c.l.b16 %v386
  %v1635 = vunpack.c.l.b16 %v387
  %v1636 = vunpack.c.l.b16 %v388
  %v1637 = vunpack.c.l.b16 %v389
  %v1638 = vunpack.c.l.b16 %v390
  %v1639 = vunpack.c.l.b16 %v391
  %v1640 = vunpack.c.l.b16 %v392
  %v1641 = vunpack.c.l.b16 %v393
  %v1642 = vunpack.c.l.b16 %v394
  %v1643 = vunpack.c.l.b16 %v395
  %v1644 = vunpack.c.l.b16 %v396
  %v1645 = vunpack.c.l.b16 %v397
  %v1646 = vunpack.c.l.b16 %v398
  %v1647 = vunpack.c.l.b16 %v399
  %v1648 = vunpack.c.l.b16 %v400
  %v1649 = vunpack.c.l.b16 %v401
  %v1650 = vunpack.c.l.b16 %v402
  %v1651 = vunpack.c.l.b16 %v403
  %v1652 = vunpack.c.l.b16 %v404
  %v1653 = vunpack.c.l.b16 %v405
  %v1654 = vunpack.c.l.b16 %v406
  %v1655 = vunpack.c.l.b16 %v407
  %v1656 = vunpack.c.l.b16 %v408
  %v1657 = vunpack.c.l.b16 %v409
  %v1658 = vunpack.c.l.b16 %v410
  %v1659 = vunpack.c.l.b16 %v411
  %v1660 = vunpack.c.l.b16 %v412
  %v1661 = vunpack.c.l.b16 %v413
  %v1662 = vunpack.c.l.b16 %v414
  %v1663 = vunpack.c.l.b16 %v415
  %v1664 = vunpack.c.l.b16 %v416
  %v1665 = vunpack.c.l.b16 %v417
  %v1666 = vunpack.c.l.b16 %v418
  %v1667 = vunpack.c.l.b16 %v419
  %v1668 = vunpack.c.l.b16 %v420
  %v1669 = vunpack.c.l.b16 %v421
  %v1670 = vunpack.c.l.b16 %v422
  %v1671 = vunpack.c.l.b16 %v423
  %v1672 = vunpack.c.l.b16 %v424
  %v1673 = vunpack.c.l.b16 %v425
  %v1674 = vunpack.c.l.b16 %v426
  %v1675 = vunpack.c.l.b16 %v427
  %v1676 = vunpack.c.l.b16 %v428
  %v1677 = vunpack.c.l.b16 %v429
  %v1678 = vunpack.c.l.b16 %v430
  %v1679 = vunpack.c.l.b16 %v431
  %v1680 = vunpack.c.l.b16 %v432
  %v1681 = vunpack.c.l.b16 %v433
  %v1682 = vunpack.c.l.b16 %v434
  %v1683 = vunpack.c.l.b16 %v435
  %v1684 = vunpack.c.l.b16 %v436
  %v1685 = vunpack.c.l.b16 %v437
  %v1686 = vunpack.c.l.b16 %v438
  %v1687 = vunpack.c.l.b16 %v439
  %v1688 = vunpack.c.l.b16 %v440
  %v1689 = vunpack.c.l.b16 %v441
  %v1690 = vunpack.c.l.b16 %v442
  %v1691 = vunpack.c.l.b16 %v443
  %v1692 = vunpack.c.l.b16 %v444
  %v1693 = vunpack.c.l.b16 %v445
  %v1694 = vunpack.c.l.b16 %v446
  %v1695 = vunpack.c.l.b16 %v447
  %v1696 = vunpack.c.l.b16 %v448
  %v1697 = vunpack.c.l.b16 %v449
  %v1698 = vunpack.c.l.b16 %v450
  %v1699 = vunpack.c.l.b16 %v451
  %v1700 = vunpack.c.l.b16 %v452
  %v1701 = vunpack.c.l.b16 %v453
  %v1702 = vunpack.c.l.b16 %v454
  %v1703 = vunpack.c.l.b16 %v455
  %v1704 = vunpack.c.l.b16 %v456
  %v1705 = vunpack.c.l.b16 %v457
  %v1706 = vunpack.c.l.b16 %v458
  %v1707 = vunpack.c.l.b16 %v459
  %v1708 = vunpack.c.l.b16 %v460
  %v1709 = vunpack.c.l.b16 %v461
  %v1710 = vunpack.c.l.b16 %v462
  %v1711 = vunpack.c.l.b16 %v463
  %v1712 = vunpack.c.l.b16 %v464
  %v1713 = vunpack.c.l.b16 %v465
  %v1714 = vunpack.c.l.b16 %v466
  %v1715 = vunpack.c.l.b16 %v467
  %v1716 = vunpack.c.l.b16 %v468
  %v1717 = vunpack.c.l.b16 %v469
  %v1718 = vunpack.c.l.b16 %v470
  %v1719 = vunpack.c.l.b16 %v471
  %v1720 = vunpack.c.l.b16 %v472
  %v1721 = vunpack.c.l.b16 %v473
  %v1722 = vunpack.c.l.b16 %v474
  %v1723 = vunpack.c.l.b16 %v475
  %v1724 = vunpack.c.l.b16 %v476
  %v1725 = vunpack.c.l.b16 %v477
  %v1726 = vunpack.c.l.b16 %v478
  %v1727 = vunpack.c.l.b16 %v479
  %v1728 = vunpack.c.l.b16 %v480
  %v1729 = vunpack.c.l.b16 %v481
  %v1730 = vunpack.c.l.b16 %v482
  %v1731 = vunpack.c.l.b16 %v483
  %v1732 = vunpack.c.l.b16 %v484
  %v1733 = vunpack.c.l.b16 %v485
  %v1734 = vunpack.c.l.b16 %v486
  %v1735 = vunpack.c.l.b16 %v487
  %v1736 = vunpack.c.l.b16 %v488
  %v1737 = vunpack.c.l.b16 %v489
  %v1738 = vunpack.c.l.b16 %v490
  %v1739 = vunpack.c.l.b16 %v491
  %v1740 = vunpack.c.l.b16 %v492
  %v1741 = vunpack.c.l.b16 %v493
  %v1742 = vunpack.c.l.b16 %v494
  %v1743 = vunpack.c.l.b16 %v495
  %v1744 = vunpack.c.l.b16 %v496
  %v1745 = vunpack.c.l.b16 %v497
  %v1746 = vunpack.c.l.b16 %v498
  %v1747 = vunpack.c.l.b16 %v499
  %v1748 = vunpack.c.l.b16 %v500
  %v1749 = vunpack.c.l.b16 %v501
  %v1750 = vunpack.c.l.b16 %v502
  %v1751 = vunpack.c.l.b16 %v503
  %v1752 = vunpack.c.l.b16 %v504
  %v1753 = vunpack.c.l.b16 %v505
  %v1754 = vunpack.c.l.b16 %v506
  %v1755 = vunpack.c.l.b16 %v507
  %v1756 = vunpack.c.l.b16 %v508
  %v1757 = vunpack.c.l.b16 %v509
  %v1758 = vunpack.c.l.b16 %v510
  %v1759 = vunpack.c.l.b16 %v511
  %v1760 = vunpack.c.l.b16 %v512
  %v1761 = vunpack.c.l.b16 %v513
  %v1762 = vunpack.c.l.b16 %v514
  %v1763 = vunpack.c.l.b16 %v515
  %v1764 = vunpack.c.l.b16 %v516
  %v1765 = vunpack.c.l.b16 %v517
  %v1766 = vunpack.c.l.b16 %v518
  %v1767 = vunpack.c.l.b16 %v519
  %v1768 = vunpack.c.l.b16 %v520
  %v1769 = vunpack.c.l.b16 %v521
  %v1770 = vunpack.c.l.b16 %v522
  %v1771 = vunpack.c.l.b16 %v523
  %v1772 = vunpack.c.l.b16 %v524
  %v1773 = vunpack.c.l.b16 %v525
  %v1774 = vunpack.c.l.b16 %v526
  %v1775 = vunpack.c.l.b16 %v527
  %v1776 = vunpack.c.l.b16 %v528
  %v1777 = vunpack.c.l.b16 %v529
  %v1778 = vunpack.c.l.b16 %v530
  %v1779 = vunpack.c.l.b16 %v531
  %v1780 = vunpack.c.l.b16 %v532
  %v1781 = vunpack.c.l.b16 %v533
  %v1782 = vunpack.c.l.b16 %v534
  %v1783 = vunpack.c.l.b16 %v535
  %v1784 = vunpack.c.l.b16 %v536
  %v1785 = vunpack.c.l.b16 %v537
  %v1786 = vunpack.c.l.b16 %v538
  %v1787 = vunpack.c.l.b16 %v539
  %v1788 = vunpack.c.l.b16 %v540
  %v1789 = vunpack.c.l.b16 %v541
  %v1790 = vunpack.c.l.b16 %v542
  %v1791 = vunpack.c.l.b16 %v543
  %v1792 = vunpack.c.l.b16 %v544
  %v1793 = vunpack.c.l.b16 %v545
  %v1794 = vunpack.c.l.b16 %v546
  %v1795 = vunpack.c.l.b16 %v547
  %v1796 = vunpack.c.l.b16 %v548
  %v1797 = vunpack.c.l.b16 %v549
  %v1798 = vunpack.c.l.b16 %v550
  %v1799 = vunpack.c.l.b16 %v551
  %v1800 = vunpack.c.l.b16 %v552
  %v1801 = vunpack.c.l.b16 %v553
  %v1802 = vunpack.c.l.b16 %v554
  %v1803 = vunpack.c.l.b16 %v555
  %v1804 = vunpack.c.l.b16 %v556
  %v1805 = vunpack.c.l.b16 %v557
  %v1806 = vunpack.c.l.b16 %v558
  %v1807 = vunpack.c.l.b16 %v559
  %v1808 = vunpack.c.l.b16 %v560
  %v1809 = vunpack.c.l.b16 %v561
  %v1810 = vunpack.c.l.b16 %v562
  %v1811 = vunpack.c.l.b16 %v563
  %v1812 = vunpack.c.l.b16 %v564
  %v1813 = vunpack.c.l.b16 %v565
  %v1814 = vunpack.c.l.b16 %v566
  %v1815 = vunpack.c.l.b16 %v567
  %v1816 = vunpack.c.l.b16 %v568
  %v1817 = vunpack.c.l.b16 %v569
  %v1818 = vunpack.c.l.b16 %v570
  %v1819 = vunpack.c.l.b16 %v571
  %v1820 = vunpack.c.l.b16 %v572
  %v1821 = vunpack.c.l.b16 %v573
  %v1822 = vunpack.c.l.b16 %v574
  %v1823 = vunpack.c.l.b16 %v575
  %v1824 = vunpack.c.l.b16 %v576
  %v1825 = vunpack.c.l.b16 %v577
  %v1826 = vunpack.c.l.b16 %v578
  %v1827 = vunpack.c.l.b16 %v579
  %v1828 = vunpack.c.l.b16 %v580
  %v1829 = vunpack.c.l.b16 %v581
  %v1830 = vunpack.c.l.b16 %v582
  %v1831 = vunpack.c.l.b16 %v583
  %v1832 = vunpack.c.l.b16 %v584
  %v1833 = vunpack.c.l.b16 %v585
  %v1834 = vunpack.c.l.b16 %v586
  %v1835 = vunpack.c.l.b16 %v587
  %v1836 = vunpack.c.l.b16 %v588
  %v1837 = vunpack.c.l.b16 %v589
  %v1838 = vunpack.c.l.b16 %v590
  %v1839 = vunpack.c.l.b16 %v591
  %v1840 = vunpack.c.l.b16 %v592
  %v1841 = vunpack.c.l.b16 %v593
  %v1842 = vunpack.c.l.b16 %v594
  %v1843 = vunpack.c.l.b16 %v595
  %v1844 = vunpack.c.l.b16 %v596
  %v1845 = vunpack.c.l.b16 %v597
  %v1846 = vunpack.c.l.b16 %v598
  %v1847 = vunpack.c.l.b16 %v599
  %v1848 = vunpack.c.l.b16 %v600
  %v1849 = vunpack.c.l.b16 %v601
  %v1850 = vunpack.c.l.b16 %v602
  %v1851 = vunpack.c.l.b16 %v603
  %v1852 = vunpack.c.l.b16 %v604
  %v1853 = vpack.c.b16 %v1294, %v1293
  %v1854 = vpack.c.b16 %v1296, %v1295
  %v1855 = vpack.c.b16 %v1298, %v1297
  %v1856 = vpack.c.b16 %v1300, %v1299
  %v1857 = vpack.c.b16 %v1302, %v1301
  %v1858 = vpack.c.b16 %v1304, %v1303
  %v1859 = vpack.c.b16 %v1306, %v1305
  %v1860 = vpack.c.b16 %v1308, %v1307
  %v1861 = vpack.c.b16 %v1310, %v1309
  %v1862 = vpack.c.b16 %v1312, %v1311
  %v1863 = vpack.c.b16 %v1314, %v1313
  %v1864 = vpack.c.b16 %v1316, %v1315
  %v1865 = vpack.c.b16 %v1318, %v1317
  %v1866 = vpack.c.b16 %v1320, %v1319
  %v1867 = vpack.c.b16 %v1322, %v1321
  %v1868 = vpack.c.b16 %v1324, %v1323
  %v1869 = vpack.c.b16 %v1326, %v1325
  %v1870 = vpack.c.b16 %v1328, %v1327
  %v1871 = vpack.c.b16 %v1330, %v1329
  %v1872 = vpack.c.b16 %v1332, %v1331
  %v1873 = vpack.c.b16 %v1334, %v1333
  %v1874 = vpack.c.b16 %v1336, %v1335
  %v1875 = vpack.c.b16 %v1338, %v1337
  %v1876 = vpack.c.b16 %v1340, %v1339
  %v1877 = vpack.c.b16 %v1342, %v1341
  %v1878 = vpack.c.b16 %v1344, %v1343
  %v1879 = vpack.c.b16 %v1346, %v1345
  %v1880 = vpack.c.b16 %v1348, %v1347
  %v1881 = vpack.c.b16 %v1350, %v1349
  %v1882 = vpack.c.b16 %v1352, %v1351
  %v1883 = vpack.c.b16 %v1354, %v1353
  %v1884 = vpack.c.b16 %v1356, %v1355
  %v1885 = vpack.c.b16 %v1358, %v1357
  %v1886 = vpack.c.b16 %v1360, %v1359
  %v1887 = vpack.c.b16 %v1362, %v1361
  %v1888 = vpack.c.b16 %v1364, %v1363
  %v1889 = vpack.c.b16 %v1366, %v1365
  %v1890 = vpack.c.b16 %v1368, %v1367
  %v1891 = vpack.c.b16 %v1370, %v1369
  %v1892 = vpack.c.b16 %v1372, %v1371
  %v1893 = vpack.c.b16 %v1374, %v1373
  %v1894 = vpack.c.b16 %v1376, %v1375
  %v1895 = vpack.c.b16 %v1378, %v1377
  %v1896 = vpack.c.b16 %v1380, %v1379
  %v1897 = vpack.c.b16 %v1382, %v1381
  %v1898 = vpack.c.b16 %v1384, %v1383
  %v1899 = vpack.c.b16 %v1386, %v1385
  %v1900 = vpack.c.b16 %v1388, %v1387
  %v1901 = vpack.c.b16 %v1390, %v1389
  %v1902 = vpack.c.b16 %v1392, %v1391
  %v1903 = vpack.c.b16 %v1394, %v1393
  %v1904 = vpack.c.b16 %v1396, %v1395
  %v1905 = vpack.c.b16 %v1398, %v1397
  %v1906 = vpack.c.b16 %v1400, %v1399
  %v1907 = vpack.c.b16 %v1402, %v1401
  %v1908 = vpack.c.b16 %v1404, %v1403
  %v1909 = vpack.c.b16 %v1406, %v1405
  %v1910 = vpack.c.b16 %v1408, %v1407
  %v1911 = vpack.c.b16 %v1410, %v1409
  %v1912 = vpack.c.b16 %v1412, %v1411
  %v1913 = vpack.c.b16 %v1414, %v1413
  %v1914 = vpack.c.b16 %v1416, %v1415
  %v1915 = vpack.c.b16 %v1418, %v1417
  %v1916 = vpack.c.b16 %v1420, %v1419
  %v1917 = vpack.c.b16 %v1422, %v1421
  %v1918 = vpack.c.b16 %v1424, %v1423
  %v1919 = vpack.c.b16 %v1426, %v1425
  %v1920 = vpack.c.b16 %v1428, %v1427
  %v1921 = vpack.c.b16 %v1430, %v1429
  %v1922 = vpack.c.b16 %v1432, %v1431
  %v1923 = vpack.c.b16 %v1434, %v1433
  %v1924 = vpack.c.b16 %v1436, %v1435
  %v1925 = vpack.c.b16 %v1438, %v1437
  %v1926 = vpack.c.b16 %v1440, %v1439
  %v1927 = vpack.c.b16 %v1442, %v1441
  %v1928 = vpack.c.b16 %v1444, %v1443
  %v1929 = vpack.c.b16 %v1446, %v1445
  %v1930 = vpack.c.b16 %v1448, %v1447
  %v1931 = vpack.c.b16 %v1450, %v1449
  %v1932 = vpack.c.b16 %v1452, %v1451
  %v1933 = vpack.c.b16 %v1454, %v1453
  %v1934 = vpack.c.b16 %v1456, %v1455
  %v1935 = vpack.c.b16 %v1458, %v1457
  %v1936 = vpack.c.b16 %v1460, %v1459
  %v1937 = vpack.c.b16 %v1462, %v1461
  %v1938 = vpack.c.b16 %v1464, %v1463
  %v1939 = vpack.c.b16 %v1466, %v1465
  %v1940 = vpack.c.b16 %v1468, %v1467
  %v1941 = vpack.c.b16 %v1470, %v1469
  %v1942 = vpack.c.b16 %v1472, %v1471
  %v1943 = vpack.c.b16 %v1474, %v1473
  %v1944 = vpack.c.b16 %v1476, %v1475
  %v1945 = vpack.c.b16 %v1478, %v1477
  %v1946 = vpack.c.b16 %v1480, %v1479
  %v1947 = vpack.c.b16 %v1482, %v1481
  %v1948 = vpack.c.b16 %v1484, %v1483
  %v1949 = vpack.c.b16 %v1486, %v1485
  %v1950 = vpack.c.b16 %v1488, %v1487
  %v1951 = vpack.c.b16 %v1490, %v1489
  %v1952 = vpack.c.b16 %v1492, %v1491
  %v1953 = vpack.c.b16 %v1494, %v1493
  %v1954 = vpack.c.b16 %v1496, %v1495
  %v1955 = vpack.c.b16 %v1498, %v1497
  %v1956 = vpack.c.b16 %v1500, %v1499
  %v1957 = vpack.c.b16 %v1502, %v1501
  %v1958 = vpack.c.b16 %v1504, %v1503
  %v1959 = vpack.c.b16 %v1506, %v1505
  %v1960 = vpack.c.b16 %v1508, %v1507
  %v1961 = vpack.c.b16 %v1510, %v1509
  %v1962 = vpack.c.b16 %v1512, %v1511
  %v1963 = vpack.c.b16 %v1514, %v1513
  %v1964 = vpack.c.b16 %v1516, %v1515
  %v1965 = vpack.c.b16 %v1518, %v1517
  %v1966 = vpack.c.b16 %v1520, %v1519
  %v1967 = vpack.c.b16 %v1522, %v1521
  %v1968 = vpack.c.b16 %v1524, %v1523
  %v1969 = vpack.c.b16 %v1526, %v1525
  %v1970 = vpack.c.b16 %v1528, %v1527
  %v1971 = vpack.c.b16 %v1530, %v1529
  %v1972 = vpack.c.b16 %v1532, %v1531
  %v1973 = vpack.c.b16 %v1534, %v1533
  %v1974 = vpack.c.b16 %v1536, %v1535
  %v1975 = vpack.c.b16 %v1538, %v1537
  %v1976 = vpack.c.b16 %v1540, %v1539
  %v1977 = vpack.c.b16 %v1542, %v1541
  %v1978 = vpack.c.b16 %v1544, %v1543
  %v1979 = vpack.c.b16 %v1546, %v1545
  %v1980 = vpack.c.b16 %v1548, %v1547
  %v1981 = vpack.c.b16 %v1550, %v1549
  %v1982 = vpack.c.b16 %v1552, %v1551
  %v1983 = vpack.c.b16 %v1554, %v1553
  %v1984 = vpack.c.b16 %v1556, %v1555
  %v1985 = vpack.c.b16 %v1558, %v1557
  %v1986 = vpack.c.b16 %v1560, %v1559
  %v1987 = vpack.c.b16 %v1562, %v1561
  %v1988 = vpack.c.b16 %v1564, %v1563
  %v1989 = vpack.c.b16 %v1566, %v1565
  %v1990 = vpack.c.b16 %v1568, %v1567
  %v1991 = vpack.c.b16 %v1570, %v1569
  %v1992 = vpack.c.b16 %v1572, %v1571
  %v1993 = vpack.c.b16 %v1574, %v1573
  %v1994 = vpack.c.b16 %v1576, %v1575
  %v1995 = vpack.c.b16 %v1578, %v1577
  %v1996 = vpack.c.b16 %v1580, %v1579
  %v1997 = vpack.c.b16 %v1582, %v1581
  %v1998 = vpack.c.b16 %v1584, %v1583
  %v1999 = vpack.c.b16 %v1586, %v1585
  %v2000 = vpack.c.b16 %v1588, %v1587
  %v2001 = vpack.c.b16 %v1590, %v1589
  %v2002 = vpack.c.b16 %v1592, %v1591
  %v2003 = vpack.c.b16 %v1594, %v1593
  %v2004 = vpack.c.b16 %v1596, %v1595
  %v2005 = vpack.c.b16 %v1598, %v1597
  %v2006 = vpack.c.b16 %v1600, %v1599
  %v2007 = vpack.c.b16 %v1602, %v1601
  %v2008 = vpack.c.b16 %v1604, %v1603
  %v2009 = vpack.c.b16 %v1606, %v1605
  %v2010 = vpack.c.b16 %v1608, %v1607
  %v2011 = vpack.c.b16 %v1610, %v1609
  %v2012 = vpack.c.b16 %v1612, %v1611
  %v2013 = vpack.c.b16 %v1614, %v1613
  %v2014 = vpack.c.b16 %v1616, %v1615
  %v2015 = vpack.c.b16 %v1618, %v1617
  %v2016 = vpack.c.b16 %v1620, %v1619
  %v2017 = vpack.c.b16 %v1622, %v1621
  %v2018 = vpack.c.b16 %v1624, %v1623
  %v2019 = vpack.c.b16 %v1626, %v1625
  %v2020 = vpack.c.b16 %v1628, %v1627
  %v2021 = vpack.c.b16 %v1630, %v1629
  %v2022 = vpack.c.b16 %v1632, %v1631
  %v2023 = vpack.c.b16 %v1634, %v1633
  %v2024 = vpack.c.b16 %v1636, %v1635
  %v2025 = vpack.c.b16 %v1638, %v1637
  %v2026 = vpack.c.b16 %v1640, %v1639
  %v2027 = vpack.c.b16 %v1642, %v1641
  %v2028 = vpack.c.b16 %v1644, %v1643
  %v2029 = vpack.c.b16 %v1646, %v1645
  %v2030 = vpack.c.b16 %v1648, %v1647
  %v2031 = vpack.c.b16 %v1650, %v1649
  %v2032 = vpack.c.b16 %v1652, %v1651
  %v2033 = vpack.c.b16 %v1654, %v1653
  %v2034 = vpack.c.b16 %v1656, %v1655
  %v2035 = vpack.c.b16 %v1658, %v1657
  %v2036 = vpack.c.b16 %v1660, %v1659
  %v2037 = vpack.c.b16 %v1662, %v1661
  %v2038 = vpack.c.b16 %v1664, %v1663
  %v2039 = vpack.c.b16 %v1666, %v1665
  %v2040 = vpack.c.b16 %v1668, %v1667
  %v2041 = vpack.c.b16 %v1670, %v1669
  %v2042 = vpack.c.b16 %v1672, %v1671
  %v2043 = vpack.c.b16 %v1674, %v1673
  %v2044 = vpack.c.b16 %v1676, %v1675
  %v2045 = vpack.c.b16 %v1678, %v1677
  %v2046 = vpack.c.b16 %v1680, %v1679
  %v2047 = vpack.c.b16 %v1682, %v1681
  %v2048 = vpack.c.b16 %v1684, %v1683
  %v2049 = vpack.c.b16 %v1686, %v1685
  %v2050 = vpack.c.b16 %v1688, %v1687
  %v2051 = vpack.c.b16 %v1690, %v1689
  %v2052 = vpack.c.b16 %v1692, %v1691
  %v2053 = vpack.c.b16 %v1694, %v1693
  %v2054 = vpack.c.b16 %v1696, %v1695
  %v2055 = vpack.c.b16 %v1698, %v1697
  %v2056 = vpack.c.b16 %v1700, %v1699
  %v2057 = vpack.c.b16 %v1702, %v1701
  %v2058 = vpack.c.b16 %v1704, %v1703
  %v2059 = vpack.c.b16 %v1706, %v1705
  %v2060 = vpack.c.b16 %v1708, %v1707
  %v2061 = vpack.c.b16 %v1710, %v1709
  %v2062 = vpack.c.b16 %v1712, %v1711
  %v2063 = vpack.c.b16 %v1714, %v1713
  %v2064 = vpack.c.b16 %v1716, %v1715
  %v2065 = vpack.c.b16 %v1718, %v1717
  %v2066 = vpack.c.b16 %v1720, %v1719
  %v2067 = vpack.c.b16 %v1722, %v1721
  %v2068 = vpack.c.b16 %v1724, %v1723
  %v2069 = vpack.c.b16 %v1726, %v1725
  %v2070 = vpack.c.b16 %v1728, %v1727
  %v2071 = vpack.c.b16 %v1730, %v1729
  %v2072 = vpack.c.b16 %v1732, %v1731
  %v2073 = vpack.c.b16 %v1734, %v1733
  %v2074 = vpack.c.b16 %v1736, %v1735
  %v2075 = vpack.c.b16 %v1738, %v1737
  %v2076 = vpack.c.b16 %v1740, %v1739
  %v2077 = vpack.c.b16 %v1742, %v1741
  %v2078 = vpack.c.b16 %v1744, %v1743
  %v2079 = vpack.c.b16 %v1746, %v1745
  %v2080 = vpack.c.b16 %v1748, %v1747
  %v2081 = vpack.c.b16 %v1750, %v1749
  %v2082 = vpack.c.b16 %v1752, %v1751
  %v2083 = vpack.c.b16 %v1754, %v1753
  %v2084 = vpack.c.b16 %v1756, %v1755
  %v2085 = vpack.c.b16 %v1758, %v1757
  %v2086 = vpack.c.b16 %v1760, %v1759
  %v2087 = vpack.c.b16 %v1762, %v1761
  %v2088 = vpack.c.b16 %v1764, %v1763
  %v2089 = vpack.c.b16 %v1766, %v1765
  %v2090 = vpack.c.b16 %v1768, %v1767
  %v2091 = vpack.c.b16 %v1770, %v1769
  %v2092 = vpack.c.b16 %v1772, %v1771
  %v2093 = vpack.c.b16 %v1774, %v1773
  %v2094 = vpack.c.b16 %v1776, %v1775
  %v2095 = vpack.c.b16 %v1778, %v1777
  %v2096 = vpack.c.b16 %v1780, %v1779
  %v2097 = vpack.c.b16 %v1782, %v1781
  %v2098 = vpack.c.b16 %v1784, %v1783
  %v2099 = vpack.c.b16 %v1786, %v1785
  %v2100 = vpack.c.b16 %v1788, %v1787
  %v2101 = vpack.c.b16 %v1790, %v1789
  %v2102 = vpack.c.b16 %v1792, %v1791
  %v2103 = vpack.c.b16 %v1794, %v1793
  %v2104 = vpack.c.b16 %v1796, %v1795
  %v2105 = vpack.c.b16 %v1798, %v1797
  %v2106 = vpack.c.b16 %v1800, %v1799
  %v2107 = vpack.c.b16 %v1802, %v1801
  %v2108 = vpack.c.b16 %v1804, %v1803
  %v2109 = vpack.c.b16 %v1806, %v1805
  %v2110 = vpack.c.b16 %v1808, %v1807
  %v2111 = vpack.c.b16 %v1810, %v1809
  %v2112 = vpack.c.b16 %v1812, %v1811
  %v2113 = vpack.c.b16 %v1814, %v1813
  %v2114 = vpack.c.b16 %v1816, %v1815
  %v2115 = vpack.c.b16 %v1818, %v1817
  %v2116 = vpack.c.b16 %v1820, %v1819
  %v2117 = vpack.c.b16 %v1822, %v1821
  %v2118 = vpack.c.b16 %v1824, %v1823
  %v2119 = vpack.c.b16 %v1826, %v1825
  %v2120 = vpack.c.b16 %v1828, %v1827
  %v2121 = vpack.c.b16 %v1830, %v1829
  %v2122 = vpack.c.b16 %v1832, %v1831
  %v2123 = vpack.c.b16 %v1834, %v1833
  %v2124 = vpack.c.b16 %v1836, %v1835
  %v2125 = vpack.c.b16 %v1838, %v1837
  %v2126 = vpack.c.b16 %v1840, %v1839
  %v2127 = vpack.c.b16 %v1842, %v1841
  %v2128 = vpack.c.b16 %v1844, %v1843
  %v2129 = vpack.c.b16 %v1846, %v1845
  %v2130 = vpack.c.b16 %v1848, %v1847
  %v2131 = vpack.c.b16 %v1850, %v1849
  %v2132 = vpack.c.b16 %v1852, %v1851
  %2413 = vmatprep.subr.bf16.mxu0 0
  %2414 = vmatpush1.bf16.msra.mxu0 %v1853
  %2415 = vmatprep.subr.bf16.mxu0 0
  %2416 = vmatpush1.bf16.msra.mxu0 %v1854
  %2417 = vmatprep.subr.bf16.mxu0 0
  %2418 = vmatpush1.bf16.msra.mxu0 %v1855
  %2419 = vmatprep.subr.bf16.mxu0 0
  %2420 = vmatpush1.bf16.msra.mxu0 %v1856
  %2421 = vmatprep.subr.bf16.mxu0 0
  %2422 = vmatpush1.bf16.msra.mxu0 %v1857
  %2423 = vmatprep.subr.bf16.mxu0 0
  %2424 = vmatpush1.bf16.msra.mxu0 %v1858
  %2425 = vmatprep.subr.bf16.mxu0 0
  %2426 = vmatpush1.bf16.msra.mxu0 %v1859
  %2427 = vmatprep.subr.bf16.mxu0 0
  %2428 = vmatpush1.bf16.msra.mxu0 %v1860
  %2429 = vmatprep.subr.bf16.mxu0 0
  %2430 = vmatpush1.bf16.msra.mxu0 %v1861
  %2431 = vmatprep.subr.bf16.mxu0 0
  %2432 = vmatpush1.bf16.msra.mxu0 %v1862
  %2433 = vmatprep.subr.bf16.mxu0 0
  %2434 = vmatpush1.bf16.msra.mxu0 %v1863
  %2435 = vmatprep.subr.bf16.mxu0 0
  %2436 = vmatpush1.bf16.msra.mxu0 %v1864
  %2437 = vmatprep.subr.bf16.mxu0 0
  %2438 = vmatpush1.bf16.msra.mxu0 %v1865
  %2439 = vmatprep.subr.bf16.mxu0 0
  %2440 = vmatpush1.bf16.msra.mxu0 %v1866
  %2441 = vmatprep.subr.bf16.mxu0 0
  %2442 = vmatpush1.bf16.msra.mxu0 %v1867
  %2443 = vmatprep.subr.bf16.mxu0 0
  %2444 = vmatpush1.bf16.msra.mxu0 %v1868
  %2445 = vmatprep.mubr.bf16.mxu0 %v664
  %2446 = vmatmul.mubr.bf16.gmra.mrb[0].mxu0 %v663
  %v2447 = vpop.f32.mrb[0].mxu0
  %v2448 = vadd.f32 %v609, %v2447
  %v2449 = vpop.f32.mrb[0].mxu0
  %v2450 = vpop.f32.mrb[0].mxu0
  %v2451 = vpop.f32.mrb[0].mxu0
  %2452 = vdwg.mxu0
  %2453 = vmatprep.subr.bf16.mxu0 0
  %2454 = vmatpush1.bf16.msra.mxu0 %v1869
  %2455 = vmatprep.subr.bf16.mxu0 0
  %2456 = vmatpush1.bf16.msra.mxu0 %v1870
  %2457 = vmatprep.subr.bf16.mxu0 0
  %2458 = vmatpush1.bf16.msra.mxu0 %v1871
  %2459 = vmatprep.subr.bf16.mxu0 0
  %2460 = vmatpush1.bf16.msra.mxu0 %v1872
  %2461 = vmatprep.subr.bf16.mxu0 0
  %2462 = vmatpush1.bf16.msra.mxu0 %v1873
  %2463 = vmatprep.subr.bf16.mxu0 0
  %2464 = vmatpush1.bf16.msra.mxu0 %v1874
  %2465 = vmatprep.subr.bf16.mxu0 0
  %2466 = vmatpush1.bf16.msra.mxu0 %v1875
  %2467 = vmatprep.subr.bf16.mxu0 0
  %2468 = vmatpush1.bf16.msra.mxu0 %v1876
  %2469 = vmatprep.subr.bf16.mxu0 0
  %2470 = vmatpush1.bf16.msra.mxu0 %v1877
  %2471 = vmatprep.subr.bf16.mxu0 0
  %2472 = vmatpush1.bf16.msra.mxu0 %v1878
  %2473 = vmatprep.subr.bf16.mxu0 0
  %2474 = vmatpush1.bf16.msra.mxu0 %v1879
  %2475 = vmatprep.subr.bf16.mxu0 0
  %2476 = vmatpush1.bf16.msra.mxu0 %v1880
  %2477 = vmatprep.subr.bf16.mxu0 0
  %2478 = vmatpush1.bf16.msra.mxu0 %v1881
  %2479 = vmatprep.subr.bf16.mxu0 0
  %2480 = vmatpush1.bf16.msra.mxu0 %v1882
  %2481 = vmatprep.subr.bf16.mxu0 0
  %2482 = vmatpush1.bf16.msra.mxu0 %v1883
  %2483 = vmatprep.subr.bf16.mxu0 0
  %2484 = vmatpush1.bf16.msra.mxu0 %v1884
  %2485 = vmatprep.mubr.bf16.mxu0 %v666
  %2486 = vmatmul.mubr.bf16.gmra.mrb[0].mxu0 %v665
  %v2487 = vpop.f32.mrb[0].mxu0
  %v2488 = vadd.f32 %v2448, %v2487
  %v2489 = vpop.f32.mrb[0].mxu0
  %v2490 = vpop.f32.mrb[0].mxu0
  %v2491 = vpop.f32.mrb[0].mxu0
  %2492 = vdwg.mxu0
  %2493 = vmatprep.subr.bf16.mxu0 0
  %2494 = vmatpush1.bf16.msra.mxu0 %v1885
  %2495 = vmatprep.subr.bf16.mxu0 0
  %2496 = vmatpush1.bf16.msra.mxu0 %v1886
  %2497 = vmatprep.subr.bf16.mxu0 0
  %2498 = vmatpush1.bf16.msra.mxu0 %v1887
  %2499 = vmatprep.subr.bf16.mxu0 0
  %2500 = vmatpush1.bf16.msra.mxu0 %v1888
  %2501 = vmatprep.subr.bf16.mxu0 0
  %2502 = vmatpush1.bf16.msra.mxu0 %v1889
  %2503 = vmatprep.subr.bf16.mxu0 0
  %2504 = vmatpush1.bf16.msra.mxu0 %v1890
  %2505 = vmatprep.subr.bf16.mxu0 0
  %2506 = vmatpush1.bf16.msra.mxu0 %v1891
  %2507 = vmatprep.subr.bf16.mxu0 0
  %2508 = vmatpush1.bf16.msra.mxu0 %v1892
  %2509 = vmatprep.subr.bf16.mxu0 0
  %2510 = vmatpush1.bf16.msra.mxu0 %v1893
  %2511 = vmatprep.subr.bf16.mxu0 0
  %2512 = vmatpush1.bf16.msra.mxu0 %v1894
  %2513 = vmatprep.subr.bf16.mxu0 0
  %2514 = vmatpush1.bf16.msra.mxu0 %v1895
  %2515 = vmatprep.subr.bf16.mxu0 0
  %2516 = vmatpush1.bf16.msra.mxu0 %v1896
  %2517 = vmatprep.subr.bf16.mxu0 0
  %2518 = vmatpush1.bf16.msra.mxu0 %v1897
  %2519 = vmatprep.subr.bf16.mxu0 0
  %2520 = vmatpush1.bf16.msra.mxu0 %v1898
  %2521 = vmatprep.subr.bf16.mxu0 0
  %2522 = vmatpush1.bf16.msra.mxu0 %v1899
  %2523 = vmatprep.subr.bf16.mxu0 0
  %2524 = vmatpush1.bf16.msra.mxu0 %v1900
  %2525 = vmatprep.mubr.bf16.mxu0 %v668
  %2526 = vmatmul.mubr.bf16.gmra.mrb[0].mxu0 %v667
  %v2527 = vpop.f32.mrb[0].mxu0
  %v2528 = vadd.f32 %v2488, %v2527
  %v2529 = vpop.f32.mrb[0].mxu0
  %v2530 = vpop.f32.mrb[0].mxu0
  %v2531 = vpop.f32.mrb[0].mxu0
  %2532 = vdwg.mxu0
  %2533 = vmatprep.subr.bf16.mxu0 0
  %2534 = vmatpush1.bf16.msra.mxu0 %v1901
  %2535 = vmatprep.subr.bf16.mxu0 0
  %2536 = vmatpush1.bf16.msra.mxu0 %v1902
  %2537 = vmatprep.subr.bf16.mxu0 0
  %2538 = vmatpush1.bf16.msra.mxu0 %v1903
  %2539 = vmatprep.subr.bf16.mxu0 0
  %2540 = vmatpush1.bf16.msra.mxu0 %v1904
  %2541 = vmatprep.subr.bf16.mxu0 0
  %2542 = vmatpush1.bf16.msra.mxu0 %v1905
  %2543 = vmatprep.subr.bf16.mxu0 0
  %2544 = vmatpush1.bf16.msra.mxu0 %v1906
  %2545 = vmatprep.subr.bf16.mxu0 0
  %2546 = vmatpush1.bf16.msra.mxu0 %v1907
  %2547 = vmatprep.subr.bf16.mxu0 0
  %2548 = vmatpush1.bf16.msra.mxu0 %v1908
  %2549 = vmatprep.subr.bf16.mxu0 0
  %2550 = vmatpush1.bf16.msra.mxu0 %v1909
  %2551 = vmatprep.subr.bf16.mxu0 0
  %2552 = vmatpush1.bf16.msra.mxu0 %v1910
  %2553 = vmatprep.subr.bf16.mxu0 0
  %2554 = vmatpush1.bf16.msra.mxu0 %v1911
  %2555 = vmatprep.subr.bf16.mxu0 0
  %2556 = vmatpush1.bf16.msra.mxu0 %v1912
  %2557 = vmatprep.subr.bf16.mxu0 0
  %2558 = vmatpush1.bf16.msra.mxu0 %v1913
  %2559 = vmatprep.subr.bf16.mxu0 0
  %2560 = vmatpush1.bf16.msra.mxu0 %v1914
  %2561 = vmatprep.subr.bf16.mxu0 0
  %2562 = vmatpush1.bf16.msra.mxu0 %v1915
  %2563 = vmatprep.subr.bf16.mxu0 0
  %2564 = vmatpush1.bf16.msra.mxu0 %v1916
  %2565 = vmatprep.mubr.bf16.mxu0 %v670
  %2566 = vmatmul.mubr.bf16.gmra.mrb[0].mxu0 %v669
  %v2567 = vpop.f32.mrb[0].mxu0
  %v2568 = vadd.f32 %v2528, %v2567
  %v2569 = vpop.f32.mrb[0].mxu0
  %v2570 = vpop.f32.mrb[0].mxu0
  %v2571 = vpop.f32.mrb[0].mxu0
  %2572 = vdwg.mxu0
  %2573 = vmatprep.subr.bf16.mxu0 0
  %2574 = vmatpush1.bf16.msra.mxu0 %v1917
  %2575 = vmatprep.subr.bf16.mxu0 0
  %2576 = vmatpush1.bf16.msra.mxu0 %v1918
  %2577 = vmatprep.subr.bf16.mxu0 0
  %2578 = vmatpush1.bf16.msra.mxu0 %v1919
  %2579 = vmatprep.subr.bf16.mxu0 0
  %2580 = vmatpush1.bf16.msra.mxu0 %v1920
  %2581 = vmatprep.subr.bf16.mxu0 0
  %2582 = vmatpush1.bf16.msra.mxu0 %v1921
  %2583 = vmatprep.subr.bf16.mxu0 0
  %2584 = vmatpush1.bf16.msra.mxu0 %v1922
  %2585 = vmatprep.subr.bf16.mxu0 0
  %2586 = vmatpush1.bf16.msra.mxu0 %v1923
  %2587 = vmatprep.subr.bf16.mxu0 0
  %2588 = vmatpush1.bf16.msra.mxu0 %v1924
  %2589 = vmatprep.subr.bf16.mxu0 0
  %2590 = vmatpush1.bf16.msra.mxu0 %v1925
  %2591 = vmatprep.subr.bf16.mxu0 0
  %2592 = vmatpush1.bf16.msra.mxu0 %v1926
  %2593 = vmatprep.subr.bf16.mxu0 0
  %2594 = vmatpush1.bf16.msra.mxu0 %v1927
  %2595 = vmatprep.subr.bf16.mxu0 0
  %2596 = vmatpush1.bf16.msra.mxu0 %v1928
  %2597 = vmatprep.subr.bf16.mxu0 0
  %2598 = vmatpush1.bf16.msra.mxu0 %v1929
  %2599 = vmatprep.subr.bf16.mxu0 0
  %2600 = vmatpush1.bf16.msra.mxu0 %v1930
  %2601 = vmatprep.subr.bf16.mxu0 0
  %2602 = vmatpush1.bf16.msra.mxu0 %v1931
  %2603 = vmatprep.subr.bf16.mxu0 0
  %2604 = vmatpush1.bf16.msra.mxu0 %v1932
  %2605 = vmatprep.mubr.bf16.mxu0 %v672
  %2606 = vmatmul.mubr.bf16.gmra.mrb[0].mxu0 %v671
  %v2607 = vpop.f32.mrb[0].mxu0
  %v2608 = vadd.f32 %v2568, %v2607
  %v2609 = vpop.f32.mrb[0].mxu0
  %v2610 = vpop.f32.mrb[0].mxu0
  %v2611 = vpop.f32.mrb[0].mxu0
  %2612 = vdwg.mxu0
  %2613 = vmatprep.subr.bf16.mxu0 0
  %2614 = vmatpush1.bf16.msra.mxu0 %v1933
  %2615 = vmatprep.subr.bf16.mxu0 0
  %2616 = vmatpush1.bf16.msra.mxu0 %v1934
  %2617 = vmatprep.subr.bf16.mxu0 0
  %2618 = vmatpush1.bf16.msra.mxu0 %v1935
  %2619 = vmatprep.subr.bf16.mxu0 0
  %2620 = vmatpush1.bf16.msra.mxu0 %v1936
  %2621 = vmatprep.subr.bf16.mxu0 0
  %2622 = vmatpush1.bf16.msra.mxu0 %v1937
  %2623 = vmatprep.subr.bf16.mxu0 0
  %2624 = vmatpush1.bf16.msra.mxu0 %v1938
  %2625 = vmatprep.subr.bf16.mxu0 0
  %2626 = vmatpush1.bf16.msra.mxu0 %v1939
  %2627 = vmatprep.subr.bf16.mxu0 0
  %2628 = vmatpush1.bf16.msra.mxu0 %v1940
  %2629 = vmatprep.subr.bf16.mxu0 0
  %2630 = vmatpush1.bf16.msra.mxu0 %v1941
  %2631 = vmatprep.subr.bf16.mxu0 0
  %2632 = vmatpush1.bf16.msra.mxu0 %v1942
  %2633 = vmatprep.subr.bf16.mxu0 0
  %2634 = vmatpush1.bf16.msra.mxu0 %v1943
  %2635 = vmatprep.subr.bf16.mxu0 0
  %2636 = vmatpush1.bf16.msra.mxu0 %v1944
  %2637 = vmatprep.subr.bf16.mxu0 0
  %2638 = vmatpush1.bf16.msra.mxu0 %v1945
  %2639 = vmatprep.subr.bf16.mxu0 0
  %2640 = vmatpush1.bf16.msra.mxu0 %v1946
  %2641 = vmatprep.subr.bf16.mxu0 0
  %2642 = vmatpush1.bf16.msra.mxu0 %v1947
  %2643 = vmatprep.subr.bf16.mxu0 0
  %2644 = vmatpush1.bf16.msra.mxu0 %v1948
  %2645 = vmatprep.mubr.bf16.mxu0 %v674
  %2646 = vmatmul.mubr.bf16.gmra.mrb[0].mxu0 %v673
  %v2647 = vpop.f32.mrb[0].mxu0
  %v2648 = vadd.f32 %v2608, %v2647
  %v2649 = vpop.f32.mrb[0].mxu0
  %v2650 = vpop.f32.mrb[0].mxu0
  %v2651 = vpop.f32.mrb[0].mxu0
  %2652 = vdwg.mxu0
  %2653 = vmatprep.subr.bf16.mxu0 0
  %2654 = vmatpush1.bf16.msra.mxu0 %v1949
  %2655 = vmatprep.subr.bf16.mxu0 0
  %2656 = vmatpush1.bf16.msra.mxu0 %v1950
  %2657 = vmatprep.subr.bf16.mxu0 0
  %2658 = vmatpush1.bf16.msra.mxu0 %v1951
  %2659 = vmatprep.subr.bf16.mxu0 0
  %2660 = vmatpush1.bf16.msra.mxu0 %v1952
  %2661 = vmatprep.subr.bf16.mxu0 0
  %2662 = vmatpush1.bf16.msra.mxu0 %v1953
  %2663 = vmatprep.subr.bf16.mxu0 0
  %2664 = vmatpush1.bf16.msra.mxu0 %v1954
  %2665 = vmatprep.subr.bf16.mxu0 0
  %2666 = vmatpush1.bf16.msra.mxu0 %v1955
  %2667 = vmatprep.subr.bf16.mxu0 0
  %2668 = vmatpush1.bf16.msra.mxu0 %v1956
  %2669 = vmatprep.subr.bf16.mxu0 0
  %2670 = vmatpush1.bf16.msra.mxu0 %v1957
  %2671 = vmatprep.subr.bf16.mxu0 0
  %2672 = vmatpush1.bf16.msra.mxu0 %v1958
  %2673 = vmatprep.subr.bf16.mxu0 0
  %2674 = vmatpush1.bf16.msra.mxu0 %v1959
  %2675 = vmatprep.subr.bf16.mxu0 0
  %2676 = vmatpush1.bf16.msra.mxu0 %v1960
  %2677 = vmatprep.subr.bf16.mxu0 0
  %2678 = vmatpush1.bf16.msra.mxu0 %v1961
  %2679 = vmatprep.subr.bf16.mxu0 0
  %2680 = vmatpush1.bf16.msra.mxu0 %v1962
  %2681 = vmatprep.subr.bf16.mxu0 0
  %2682 = vmatpush1.bf16.msra.mxu0 %v1963
  %2683 = vmatprep.subr.bf16.mxu0 0
  %2684 = vmatpush1.bf16.msra.mxu0 %v1964
  %2685 = vmatprep.mubr.bf16.mxu0 %v676
  %2686 = vmatmul.mubr.bf16.gmra.mrb[0].mxu0 %v675
  %v2687 = vpop.f32.mrb[0].mxu0
  %v2688 = vadd.f32 %v2648, %v2687
  %v2689 = vpop.f32.mrb[0].mxu0
  %v2690 = vpop.f32.mrb[0].mxu0
  %v2691 = vpop.f32.mrb[0].mxu0
  %2692 = vdwg.mxu0
  %2693 = vmatprep.subr.bf16.mxu0 0
  %2694 = vmatpush1.bf16.msra.mxu0 %v1965
  %2695 = vmatprep.subr.bf16.mxu0 0
  %2696 = vmatpush1.bf16.msra.mxu0 %v1966
  %2697 = vmatprep.subr.bf16.mxu0 0
  %2698 = vmatpush1.bf16.msra.mxu0 %v1967
  %2699 = vmatprep.subr.bf16.mxu0 0
  %2700 = vmatpush1.bf16.msra.mxu0 %v1968
  %2701 = vmatprep.subr.bf16.mxu0 0
  %2702 = vmatpush1.bf16.msra.mxu0 %v1969
  %2703 = vmatprep.subr.bf16.mxu0 0
  %2704 = vmatpush1.bf16.msra.mxu0 %v1970
  %2705 = vmatprep.subr.bf16.mxu0 0
  %2706 = vmatpush1.bf16.msra.mxu0 %v1971
  %2707 = vmatprep.subr.bf16.mxu0 0
  %2708 = vmatpush1.bf16.msra.mxu0 %v1972
  %2709 = vmatprep.subr.bf16.mxu0 0
  %2710 = vmatpush1.bf16.msra.mxu0 %v1973
  %2711 = vmatprep.subr.bf16.mxu0 0
  %2712 = vmatpush1.bf16.msra.mxu0 %v1974
  %2713 = vmatprep.subr.bf16.mxu0 0
  %2714 = vmatpush1.bf16.msra.mxu0 %v1975
  %2715 = vmatprep.subr.bf16.mxu0 0
  %2716 = vmatpush1.bf16.msra.mxu0 %v1976
  %2717 = vmatprep.subr.bf16.mxu0 0
  %2718 = vmatpush1.bf16.msra.mxu0 %v1977
  %2719 = vmatprep.subr.bf16.mxu0 0
  %2720 = vmatpush1.bf16.msra.mxu0 %v1978
  %2721 = vmatprep.subr.bf16.mxu0 0
  %2722 = vmatpush1.bf16.msra.mxu0 %v1979
  %2723 = vmatprep.subr.bf16.mxu0 0
  %2724 = vmatpush1.bf16.msra.mxu0 %v1980
  %2725 = vmatprep.mubr.bf16.mxu0 %v678
  %2726 = vmatmul.mubr.bf16.gmra.mrb[0].mxu0 %v677
  %v2727 = vpop.f32.mrb[0].mxu0
  %v2728 = vadd.f32 %v2688, %v2727
  %v2729 = vpop.f32.mrb[0].mxu0
  %v2730 = vpop.f32.mrb[0].mxu0
  %v2731 = vpop.f32.mrb[0].mxu0
  %2732 = vdwg.mxu0
  %2733 = vmatprep.subr.bf16.mxu0 0
  %2734 = vmatpush1.bf16.msra.mxu0 %v1981
  %2735 = vmatprep.subr.bf16.mxu0 0
  %2736 = vmatpush1.bf16.msra.mxu0 %v1982
  %2737 = vmatprep.subr.bf16.mxu0 0
  %2738 = vmatpush1.bf16.msra.mxu0 %v1983
  %2739 = vmatprep.subr.bf16.mxu0 0
  %2740 = vmatpush1.bf16.msra.mxu0 %v1984
  %2741 = vmatprep.subr.bf16.mxu0 0
  %2742 = vmatpush1.bf16.msra.mxu0 %v1985
  %2743 = vmatprep.subr.bf16.mxu0 0
  %2744 = vmatpush1.bf16.msra.mxu0 %v1986
  %2745 = vmatprep.subr.bf16.mxu0 0
  %2746 = vmatpush1.bf16.msra.mxu0 %v1987
  %2747 = vmatprep.subr.bf16.mxu0 0
  %2748 = vmatpush1.bf16.msra.mxu0 %v1988
  %2749 = vmatprep.subr.bf16.mxu0 0
  %2750 = vmatpush1.bf16.msra.mxu0 %v1989
  %2751 = vmatprep.subr.bf16.mxu0 0
  %2752 = vmatpush1.bf16.msra.mxu0 %v1990
  %2753 = vmatprep.subr.bf16.mxu0 0
  %2754 = vmatpush1.bf16.msra.mxu0 %v1991
  %2755 = vmatprep.subr.bf16.mxu0 0
  %2756 = vmatpush1.bf16.msra.mxu0 %v1992
  %2757 = vmatprep.subr.bf16.mxu0 0
  %2758 = vmatpush1.bf16.msra.mxu0 %v1993
  %2759 = vmatprep.subr.bf16.mxu0 0
  %2760 = vmatpush1.bf16.msra.mxu0 %v1994
  %2761 = vmatprep.subr.bf16.mxu0 0
  %2762 = vmatpush1.bf16.msra.mxu0 %v1995
  %2763 = vmatprep.subr.bf16.mxu0 0
  %2764 = vmatpush1.bf16.msra.mxu0 %v1996
  %2765 = vmatprep.mubr.bf16.mxu0 %v680
  %2766 = vmatmul.mubr.bf16.gmra.mrb[0].mxu0 %v679
  %v2767 = vpop.f32.mrb[0].mxu0
  %v2768 = vadd.f32 %v2728, %v2767
  %v2769 = vpop.f32.mrb[0].mxu0
  %v2770 = vpop.f32.mrb[0].mxu0
  %v2771 = vpop.f32.mrb[0].mxu0
  %2772 = vdwg.mxu0
  %2773 = vmatprep.subr.bf16.mxu0 0
  %2774 = vmatpush1.bf16.msra.mxu0 %v1997
  %2775 = vmatprep.subr.bf16.mxu0 0
  %2776 = vmatpush1.bf16.msra.mxu0 %v1998
  %2777 = vmatprep.subr.bf16.mxu0 0
  %2778 = vmatpush1.bf16.msra.mxu0 %v1999
  %2779 = vmatprep.subr.bf16.mxu0 0
  %2780 = vmatpush1.bf16.msra.mxu0 %v2000
  %2781 = vmatprep.subr.bf16.mxu0 0
  %2782 = vmatpush1.bf16.msra.mxu0 %v2001
  %2783 = vmatprep.subr.bf16.mxu0 0
  %2784 = vmatpush1.bf16.msra.mxu0 %v2002
  %2785 = vmatprep.subr.bf16.mxu0 0
  %2786 = vmatpush1.bf16.msra.mxu0 %v2003
  %2787 = vmatprep.subr.bf16.mxu0 0
  %2788 = vmatpush1.bf16.msra.mxu0 %v2004
  %2789 = vmatprep.subr.bf16.mxu0 0
  %2790 = vmatpush1.bf16.msra.mxu0 %v2005
  %2791 = vmatprep.subr.bf16.mxu0 0
  %2792 = vmatpush1.bf16.msra.mxu0 %v2006
  %2793 = vmatprep.subr.bf16.mxu0 0
  %2794 = vmatpush1.bf16.msra.mxu0 %v2007
  %2795 = vmatprep.subr.bf16.mxu0 0
  %2796 = vmatpush1.bf16.msra.mxu0 %v2008
  %2797 = vmatprep.subr.bf16.mxu0 0
  %2798 = vmatpush1.bf16.msra.mxu0 %v2009
  %2799 = vmatprep.subr.bf16.mxu0 0
  %2800 = vmatpush1.bf16.msra.mxu0 %v2010
  %2801 = vmatprep.subr.bf16.mxu0 0
  %2802 = vmatpush1.bf16.msra.mxu0 %v2011
  %2803 = vmatprep.subr.bf16.mxu0 0
  %2804 = vmatpush1.bf16.msra.mxu0 %v2012
  %2805 = vmatprep.mubr.bf16.mxu0 %v682
  %2806 = vmatmul.mubr.bf16.gmra.mrb[0].mxu0 %v681
  %v2807 = vpop.f32.mrb[0].mxu0
  %v2808 = vadd.f32 %v2768, %v2807
  %v2809 = vpop.f32.mrb[0].mxu0
  %v2810 = vpop.f32.mrb[0].mxu0
  %v2811 = vpop.f32.mrb[0].mxu0
  %2812 = vdwg.mxu0
  %2813 = vmatprep.subr.bf16.mxu0 0
  %2814 = vmatpush1.bf16.msra.mxu0 %v2013
  %2815 = vmatprep.subr.bf16.mxu0 0
  %2816 = vmatpush1.bf16.msra.mxu0 %v2014
  %2817 = vmatprep.subr.bf16.mxu0 0
  %2818 = vmatpush1.bf16.msra.mxu0 %v2015
  %2819 = vmatprep.subr.bf16.mxu0 0
  %2820 = vmatpush1.bf16.msra.mxu0 %v2016
  %2821 = vmatprep.subr.bf16.mxu0 0
  %2822 = vmatpush1.bf16.msra.mxu0 %v2017
  %2823 = vmatprep.subr.bf16.mxu0 0
  %2824 = vmatpush1.bf16.msra.mxu0 %v2018
  %2825 = vmatprep.subr.bf16.mxu0 0
  %2826 = vmatpush1.bf16.msra.mxu0 %v2019
  %2827 = vmatprep.subr.bf16.mxu0 0
  %2828 = vmatpush1.bf16.msra.mxu0 %v2020
  %2829 = vmatprep.subr.bf16.mxu0 0
  %2830 = vmatpush1.bf16.msra.mxu0 %v2021
  %2831 = vmatprep.subr.bf16.mxu0 0
  %2832 = vmatpush1.bf16.msra.mxu0 %v2022
  %2833 = vmatprep.subr.bf16.mxu0 0
  %2834 = vmatpush1.bf16.msra.mxu0 %v2023
  %2835 = vmatprep.subr.bf16.mxu0 0
  %2836 = vmatpush1.bf16.msra.mxu0 %v2024
  %2837 = vmatprep.subr.bf16.mxu0 0
  %2838 = vmatpush1.bf16.msra.mxu0 %v2025
  %2839 = vmatprep.subr.bf16.mxu0 0
  %2840 = vmatpush1.bf16.msra.mxu0 %v2026
  %2841 = vmatprep.subr.bf16.mxu0 0
  %2842 = vmatpush1.bf16.msra.mxu0 %v2027
  %2843 = vmatprep.subr.bf16.mxu0 0
  %2844 = vmatpush1.bf16.msra.mxu0 %v2028
  %2845 = vmatprep.mubr.bf16.mxu0 %v684
  %2846 = vmatmul.mubr.bf16.gmra.mrb[0].mxu0 %v683
  %v2847 = vpop.f32.mrb[0].mxu0
  %v2848 = vadd.f32 %v2808, %v2847
  %v2849 = vpop.f32.mrb[0].mxu0
  %v2850 = vpop.f32.mrb[0].mxu0
  %v2851 = vpop.f32.mrb[0].mxu0
  %2852 = vdwg.mxu0
  %2853 = vmatprep.subr.bf16.mxu0 0
  %2854 = vmatpush1.bf16.msra.mxu0 %v2029
  %2855 = vmatprep.subr.bf16.mxu0 0
  %2856 = vmatpush1.bf16.msra.mxu0 %v2030
  %2857 = vmatprep.subr.bf16.mxu0 0
  %2858 = vmatpush1.bf16.msra.mxu0 %v2031
  %2859 = vmatprep.subr.bf16.mxu0 0
  %2860 = vmatpush1.bf16.msra.mxu0 %v2032
  %2861 = vmatprep.subr.bf16.mxu0 0
  %2862 = vmatpush1.bf16.msra.mxu0 %v2033
  %2863 = vmatprep.subr.bf16.mxu0 0
  %2864 = vmatpush1.bf16.msra.mxu0 %v2034
  %2865 = vmatprep.subr.bf16.mxu0 0
  %2866 = vmatpush1.bf16.msra.mxu0 %v2035
  %2867 = vmatprep.subr.bf16.mxu0 0
  %2868 = vmatpush1.bf16.msra.mxu0 %v2036
  %2869 = vmatprep.subr.bf16.mxu0 0
  %2870 = vmatpush1.bf16.msra.mxu0 %v2037
  %2871 = vmatprep.subr.bf16.mxu0 0
  %2872 = vmatpush1.bf16.msra.mxu0 %v2038
  %2873 = vmatprep.subr.bf16.mxu0 0
  %2874 = vmatpush1.bf16.msra.mxu0 %v2039
  %2875 = vmatprep.subr.bf16.mxu0 0
  %2876 = vmatpush1.bf16.msra.mxu0 %v2040
  %2877 = vmatprep.subr.bf16.mxu0 0
  %2878 = vmatpush1.bf16.msra.mxu0 %v2041
  %2879 = vmatprep.subr.bf16.mxu0 0
  %2880 = vmatpush1.bf16.msra.mxu0 %v2042
  %2881 = vmatprep.subr.bf16.mxu0 0
  %2882 = vmatpush1.bf16.msra.mxu0 %v2043
  %2883 = vmatprep.subr.bf16.mxu0 0
  %2884 = vmatpush1.bf16.msra.mxu0 %v2044
  %2885 = vmatprep.mubr.bf16.mxu0 %v686
  %2886 = vmatmul.mubr.bf16.gmra.mrb[0].mxu0 %v685
  %v2887 = vpop.f32.mrb[0].mxu0
  %v2888 = vadd.f32 %v2848, %v2887
  %v2889 = vpop.f32.mrb[0].mxu0
  %v2890 = vpop.f32.mrb[0].mxu0
  %v2891 = vpop.f32.mrb[0].mxu0
  %2892 = vdwg.mxu0
  %2893 = vmatprep.subr.bf16.mxu0 0
  %2894 = vmatpush1.bf16.msra.mxu0 %v2045
  %2895 = vmatprep.subr.bf16.mxu0 0
  %2896 = vmatpush1.bf16.msra.mxu0 %v2046
  %2897 = vmatprep.subr.bf16.mxu0 0
  %2898 = vmatpush1.bf16.msra.mxu0 %v2047
  %2899 = vmatprep.subr.bf16.mxu0 0
  %2900 = vmatpush1.bf16.msra.mxu0 %v2048
  %2901 = vmatprep.subr.bf16.mxu0 0
  %2902 = vmatpush1.bf16.msra.mxu0 %v2049
  %2903 = vmatprep.subr.bf16.mxu0 0
  %2904 = vmatpush1.bf16.msra.mxu0 %v2050
  %2905 = vmatprep.subr.bf16.mxu0 0
  %2906 = vmatpush1.bf16.msra.mxu0 %v2051
  %2907 = vmatprep.subr.bf16.mxu0 0
  %2908 = vmatpush1.bf16.msra.mxu0 %v2052
  %2909 = vmatprep.subr.bf16.mxu0 0
  %2910 = vmatpush1.bf16.msra.mxu0 %v2053
  %2911 = vmatprep.subr.bf16.mxu0 0
  %2912 = vmatpush1.bf16.msra.mxu0 %v2054
  %2913 = vmatprep.subr.bf16.mxu0 0
  %2914 = vmatpush1.bf16.msra.mxu0 %v2055
  %2915 = vmatprep.subr.bf16.mxu0 0
  %2916 = vmatpush1.bf16.msra.mxu0 %v2056
  %2917 = vmatprep.subr.bf16.mxu0 0
  %2918 = vmatpush1.bf16.msra.mxu0 %v2057
  %2919 = vmatprep.subr.bf16.mxu0 0
  %2920 = vmatpush1.bf16.msra.mxu0 %v2058
  %2921 = vmatprep.subr.bf16.mxu0 0
  %2922 = vmatpush1.bf16.msra.mxu0 %v2059
  %2923 = vmatprep.subr.bf16.mxu0 0
  %2924 = vmatpush1.bf16.msra.mxu0 %v2060
  %2925 = vmatprep.mubr.bf16.mxu0 %v688
  %2926 = vmatmul.mubr.bf16.gmra.mrb[0].mxu0 %v687
  %v2927 = vpop.f32.mrb[0].mxu0
  %v2928 = vadd.f32 %v2888, %v2927
  %v2929 = vpop.f32.mrb[0].mxu0
  %v2930 = vpop.f32.mrb[0].mxu0
  %v2931 = vpop.f32.mrb[0].mxu0
  %2932 = vdwg.mxu0
  %2933 = vmatprep.subr.bf16.mxu0 0
  %2934 = vmatpush1.bf16.msra.mxu0 %v2061
  %2935 = vmatprep.subr.bf16.mxu0 0
  %2936 = vmatpush1.bf16.msra.mxu0 %v2062
  %2937 = vmatprep.subr.bf16.mxu0 0
  %2938 = vmatpush1.bf16.msra.mxu0 %v2063
  %2939 = vmatprep.subr.bf16.mxu0 0
  %2940 = vmatpush1.bf16.msra.mxu0 %v2064
  %2941 = vmatprep.subr.bf16.mxu0 0
  %2942 = vmatpush1.bf16.msra.mxu0 %v2065
  %2943 = vmatprep.subr.bf16.mxu0 0
  %2944 = vmatpush1.bf16.msra.mxu0 %v2066
  %2945 = vmatprep.subr.bf16.mxu0 0
  %2946 = vmatpush1.bf16.msra.mxu0 %v2067
  %2947 = vmatprep.subr.bf16.mxu0 0
  %2948 = vmatpush1.bf16.msra.mxu0 %v2068
  %2949 = vmatprep.subr.bf16.mxu0 0
  %2950 = vmatpush1.bf16.msra.mxu0 %v2069
  %2951 = vmatprep.subr.bf16.mxu0 0
  %2952 = vmatpush1.bf16.msra.mxu0 %v2070
  %2953 = vmatprep.subr.bf16.mxu0 0
  %2954 = vmatpush1.bf16.msra.mxu0 %v2071
  %2955 = vmatprep.subr.bf16.mxu0 0
  %2956 = vmatpush1.bf16.msra.mxu0 %v2072
  %2957 = vmatprep.subr.bf16.mxu0 0
  %2958 = vmatpush1.bf16.msra.mxu0 %v2073
  %2959 = vmatprep.subr.bf16.mxu0 0
  %2960 = vmatpush1.bf16.msra.mxu0 %v2074
  %2961 = vmatprep.subr.bf16.mxu0 0
  %2962 = vmatpush1.bf16.msra.mxu0 %v2075
  %2963 = vmatprep.subr.bf16.mxu0 0
  %2964 = vmatpush1.bf16.msra.mxu0 %v2076
  %2965 = vmatprep.mubr.bf16.mxu0 %v690
  %2966 = vmatmul.mubr.bf16.gmra.mrb[0].mxu0 %v689
  %v2967 = vpop.f32.mrb[0].mxu0
  %v2968 = vadd.f32 %v2928, %v2967
  %v2969 = vpop.f32.mrb[0].mxu0
  %v2970 = vpop.f32.mrb[0].mxu0
  %v2971 = vpop.f32.mrb[0].mxu0
  %2972 = vdwg.mxu0
  %2973 = vmatprep.subr.bf16.mxu0 0
  %2974 = vmatpush1.bf16.msra.mxu0 %v2077
  %2975 = vmatprep.subr.bf16.mxu0 0
  %2976 = vmatpush1.bf16.msra.mxu0 %v2078
  %2977 = vmatprep.subr.bf16.mxu0 0
  %2978 = vmatpush1.bf16.msra.mxu0 %v2079
  %2979 = vmatprep.subr.bf16.mxu0 0
  %2980 = vmatpush1.bf16.msra.mxu0 %v2080
  %2981 = vmatprep.subr.bf16.mxu0 0
  %2982 = vmatpush1.bf16.msra.mxu0 %v2081
  %2983 = vmatprep.subr.bf16.mxu0 0
  %2984 = vmatpush1.bf16.msra.mxu0 %v2082
  %2985 = vmatprep.subr.bf16.mxu0 0
  %2986 = vmatpush1.bf16.msra.mxu0 %v2083
  %2987 = vmatprep.subr.bf16.mxu0 0
  %2988 = vmatpush1.bf16.msra.mxu0 %v2084
  %2989 = vmatprep.subr.bf16.mxu0 0
  %2990 = vmatpush1.bf16.msra.mxu0 %v2085
  %2991 = vmatprep.subr.bf16.mxu0 0
  %2992 = vmatpush1.bf16.msra.mxu0 %v2086
  %2993 = vmatprep.subr.bf16.mxu0 0
  %2994 = vmatpush1.bf16.msra.mxu0 %v2087
  %2995 = vmatprep.subr.bf16.mxu0 0
  %2996 = vmatpush1.bf16.msra.mxu0 %v2088
  %2997 = vmatprep.subr.bf16.mxu0 0
  %2998 = vmatpush1.bf16.msra.mxu0 %v2089
  %2999 = vmatprep.subr.bf16.mxu0 0
  %3000 = vmatpush1.bf16.msra.mxu0 %v2090
  %3001 = vmatprep.subr.bf16.mxu0 0
  %3002 = vmatpush1.bf16.msra.mxu0 %v2091
  %3003 = vmatprep.subr.bf16.mxu0 0
  %3004 = vmatpush1.bf16.msra.mxu0 %v2092
  %3005 = vmatprep.mubr.bf16.mxu0 %v692
  %3006 = vmatmul.mubr.bf16.gmra.mrb[0].mxu0 %v691
  %v3007 = vpop.f32.mrb[0].mxu0
  %v3008 = vadd.f32 %v2968, %v3007
  %v3009 = vpop.f32.mrb[0].mxu0
  %v3010 = vpop.f32.mrb[0].mxu0
  %v3011 = vpop.f32.mrb[0].mxu0
  %3012 = vdwg.mxu0
  %3013 = vmatprep.subr.bf16.mxu0 0
  %3014 = vmatpush1.bf16.msra.mxu0 %v2093
  %3015 = vmatprep.subr.bf16.mxu0 0
  %3016 = vmatpush1.bf16.msra.mxu0 %v2094
  %3017 = vmatprep.subr.bf16.mxu0 0
  %3018 = vmatpush1.bf16.msra.mxu0 %v2095
  %3019 = vmatprep.subr.bf16.mxu0 0
  %3020 = vmatpush1.bf16.msra.mxu0 %v2096
  %3021 = vmatprep.subr.bf16.mxu0 0
  %3022 = vmatpush1.bf16.msra.mxu0 %v2097
  %3023 = vmatprep.subr.bf16.mxu0 0
  %3024 = vmatpush1.bf16.msra.mxu0 %v2098
  %3025 = vmatprep.subr.bf16.mxu0 0
  %3026 = vmatpush1.bf16.msra.mxu0 %v2099
  %3027 = vmatprep.subr.bf16.mxu0 0
  %3028 = vmatpush1.bf16.msra.mxu0 %v2100
  %3029 = vmatprep.subr.bf16.mxu0 0
  %3030 = vmatpush1.bf16.msra.mxu0 %v2101
  %3031 = vmatprep.subr.bf16.mxu0 0
  %3032 = vmatpush1.bf16.msra.mxu0 %v2102
  %3033 = vmatprep.subr.bf16.mxu0 0
  %3034 = vmatpush1.bf16.msra.mxu0 %v2103
  %3035 = vmatprep.subr.bf16.mxu0 0
  %3036 = vmatpush1.bf16.msra.mxu0 %v2104
  %3037 = vmatprep.subr.bf16.mxu0 0
  %3038 = vmatpush1.bf16.msra.mxu0 %v2105
  %3039 = vmatprep.subr.bf16.mxu0 0
  %3040 = vmatpush1.bf16.msra.mxu0 %v2106
  %3041 = vmatprep.subr.bf16.mxu0 0
  %3042 = vmatpush1.bf16.msra.mxu0 %v2107
  %3043 = vmatprep.subr.bf16.mxu0 0
  %3044 = vmatpush1.bf16.msra.mxu0 %v2108
  %3045 = vmatprep.mubr.bf16.mxu0 %v694
  %3046 = vmatmul.mubr.bf16.gmra.mrb[0].mxu0 %v693
  %v3047 = vpop.f32.mrb[0].mxu0
  %v3048 = vadd.f32 %v3008, %v3047
  %v3049 = vpop.f32.mrb[0].mxu0
  %v3050 = vpop.f32.mrb[0].mxu0
  %v3051 = vpop.f32.mrb[0].mxu0
  %3052 = vdwg.mxu0
  %3053 = vmatprep.subr.bf16.mxu0 0
  %3054 = vmatpush1.bf16.msra.mxu0 %v2109
  %3055 = vmatprep.subr.bf16.mxu0 0
  %3056 = vmatpush1.bf16.msra.mxu0 %v2110
  %3057 = vmatprep.subr.bf16.mxu0 0
  %3058 = vmatpush1.bf16.msra.mxu0 %v2111
  %3059 = vmatprep.subr.bf16.mxu0 0
  %3060 = vmatpush1.bf16.msra.mxu0 %v2112
  %3061 = vmatprep.subr.bf16.mxu0 0
  %3062 = vmatpush1.bf16.msra.mxu0 %v2113
  %3063 = vmatprep.subr.bf16.mxu0 0
  %3064 = vmatpush1.bf16.msra.mxu0 %v2114
  %3065 = vmatprep.subr.bf16.mxu0 0
  %3066 = vmatpush1.bf16.msra.mxu0 %v2115
  %3067 = vmatprep.subr.bf16.mxu0 0
  %3068 = vmatpush1.bf16.msra.mxu0 %v2116
  %3069 = vmatprep.subr.bf16.mxu0 0
  %3070 = vmatpush1.bf16.msra.mxu0 %v2117
  %3071 = vmatprep.subr.bf16.mxu0 0
  %3072 = vmatpush1.bf16.msra.mxu0 %v2118
  %3073 = vmatprep.subr.bf16.mxu0 0
  %3074 = vmatpush1.bf16.msra.mxu0 %v2119
  %3075 = vmatprep.subr.bf16.mxu0 0
  %3076 = vmatpush1.bf16.msra.mxu0 %v2120
  %3077 = vmatprep.subr.bf16.mxu0 0
  %3078 = vmatpush1.bf16.msra.mxu0 %v2121
  %3079 = vmatprep.subr.bf16.mxu0 0
  %3080 = vmatpush1.bf16.msra.mxu0 %v2122
  %3081 = vmatprep.subr.bf16.mxu0 0
  %3082 = vmatpush1.bf16.msra.mxu0 %v2123
  %3083 = vmatprep.subr.bf16.mxu0 0
  %3084 = vmatpush1.bf16.msra.mxu0 %v2124
  %3085 = vmatprep.mubr.bf16.mxu0 %v696
  %3086 = vmatmul.mubr.bf16.gmra.mrb[0].mxu0 %v695
  %v3087 = vpop.f32.mrb[0].mxu0
  %v3088 = vadd.f32 %v3048, %v3087
  %v3089 = vpop.f32.mrb[0].mxu0
  %v3090 = vpop.f32.mrb[0].mxu0
  %v3091 = vpop.f32.mrb[0].mxu0
  %3092 = vdwg.mxu0
  %3093 = vmatprep.subr.bf16.mxu0 0
  %3094 = vmatpush1.bf16.msra.mxu0 %v2125
  %3095 = vmatprep.subr.bf16.mxu0 0
  %3096 = vmatpush1.bf16.msra.mxu0 %v2126
  %3097 = vmatprep.subr.bf16.mxu0 0
  %3098 = vmatpush1.bf16.msra.mxu0 %v2127
  %3099 = vmatprep.subr.bf16.mxu0 0
  %3100 = vmatpush1.bf16.msra.mxu0 %v2128
  %3101 = vmatprep.subr.bf16.mxu0 0
  %3102 = vmatpush1.bf16.msra.mxu0 %v2129
  %3103 = vmatprep.subr.bf16.mxu0 0
  %3104 = vmatpush1.bf16.msra.mxu0 %v2130
  %3105 = vmatprep.subr.bf16.mxu0 0
  %3106 = vmatpush1.bf16.msra.mxu0 %v2131
  %3107 = vmatprep.subr.bf16.mxu0 0
  %3108 = vmatpush1.bf16.msra.mxu0 %v2132
  %3109 = vmatprep.subr.bf16.mxu0 0
  %3110 = vmatpush1.bf16.msra.mxu0 0
  %3111 = vmatprep.subr.bf16.mxu0 0
  %3112 = vmatpush1.bf16.msra.mxu0 0
  %3113 = vmatprep.subr.bf16.mxu0 0
  %3114 = vmatpush1.bf16.msra.mxu0 0
  %3115 = vmatprep.subr.bf16.mxu0 0
  %3116 = vmatpush1.bf16.msra.mxu0 0
  %3117 = vmatprep.subr.bf16.mxu0 0
  %3118 = vmatpush1.bf16.msra.mxu0 0
  %3119 = vmatprep.subr.bf16.mxu0 0
  %3120 = vmatpush1.bf16.msra.mxu0 0
  %3121 = vmatprep.subr.bf16.mxu0 0
  %3122 = vmatpush1.bf16.msra.mxu0 0
  %3123 = vmatprep.subr.bf16.mxu0 0
  %3124 = vmatpush1.bf16.msra.mxu0 0
  %3125 = vmatprep.mubr.bf16.mxu0 0
  %3126 = vmatmul.mubr.bf16.gmra.mrb[0].mxu0 %v697
  %v3127 = vpop.f32.mrb[0].mxu0
  %v3128 = vadd.f32 %v3088, %v3127
  %v3129 = vpop.f32.mrb[0].mxu0
  %v3130 = vpop.f32.mrb[0].mxu0
  %v3131 = vpop.f32.mrb[0].mxu0
  %3132 = vdwg.mxu0
  %v3133 = vmul.f32 %v3128, 0.1
  %v3134 = vmax.f32 %v3128, %v3133
  %vm3135 = vcmask 523264
  %v3136 = vsel %vm3135, %v3134, 0.0
  %v3137 = vpack.c.bf16 %v3136, %v3136
  %v3138 = vld [vmem:[%s3] sm:$0xf]
  %v3139 = vld [vmem:[%s3 + $0x4] sm:$0xf]
  %v3140 = vld [vmem:[%s3 + $0x8] sm:$0xf]
  %v3141 = vld [vmem:[%s3 + $0xc] sm:$0xf]
  %v3142 = vld [vmem:[%s3 + $0x10] sm:$0xf]
  %v3143 = vld [vmem:[%s3 + $0x14] sm:$0xf]
  %v3144 = vld [vmem:[%s3 + $0x18] sm:$0xf]
  %v3145 = vld [vmem:[%s3 + $0x1c] sm:$0xf]
  %v3146 = vld [vmem:[%s3 + $0x20] sm:$0xf]
  %v3147 = vld [vmem:[%s3 + $0x24] sm:$0xf]
  %v3148 = vld [vmem:[%s3 + $0x28] sm:$0xf]
  %v3149 = vld [vmem:[%s3 + $0x2c] sm:$0xf]
  %v3150 = vld [vmem:[%s3 + $0x30] sm:$0xf]
  %v3151 = vld [vmem:[%s3 + $0x34] sm:$0xf]
  %v3152 = vld [vmem:[%s3 + $0x38] sm:$0xf]
  %v3153 = vld [vmem:[%s3 + $0x3c] sm:$0xf]
  %v3154 = vld [vmem:[%s4] sm:$0x1]
  %v3155 = vlaneseq
  %v3156 = vshrl.u32 %v3155, 7
  %v3157 = vsub.s32 0, %v3156
  %v3158 = vrot.slane %v3154, %v3157
  %v3175 = vunpack.c.l.b16 %v3138
  %v3176 = vunpack.c.l.b16 %v3139
  %v3177 = vunpack.c.l.b16 %v3140
  %v3178 = vunpack.c.l.b16 %v3141
  %v3179 = vunpack.c.l.b16 %v3142
  %v3180 = vunpack.c.l.b16 %v3143
  %v3181 = vunpack.c.l.b16 %v3144
  %v3182 = vunpack.c.l.b16 %v3145
  %v3183 = vunpack.c.l.b16 %v3146
  %v3184 = vunpack.c.l.b16 %v3147
  %v3185 = vunpack.c.l.b16 %v3148
  %v3186 = vunpack.c.l.b16 %v3149
  %v3187 = vunpack.c.l.b16 %v3150
  %v3188 = vunpack.c.l.b16 %v3151
  %v3189 = vunpack.c.l.b16 %v3152
  %v3190 = vunpack.c.l.b16 %v3153
  %v3191 = vpack.c.b16 %v3176, %v3175
  %v3192 = vpack.c.b16 %v3178, %v3177
  %v3193 = vpack.c.b16 %v3180, %v3179
  %v3194 = vpack.c.b16 %v3182, %v3181
  %v3195 = vpack.c.b16 %v3184, %v3183
  %v3196 = vpack.c.b16 %v3186, %v3185
  %v3197 = vpack.c.b16 %v3188, %v3187
  %v3198 = vpack.c.b16 %v3190, %v3189
  %3207 = vmatprep.subr.bf16.mxu0 0
  %3208 = vmatpush1.bf16.msra.mxu0 %v3191
  %3209 = vmatprep.subr.bf16.mxu0 0
  %3210 = vmatpush1.bf16.msra.mxu0 %v3192
  %3211 = vmatprep.subr.bf16.mxu0 0
  %3212 = vmatpush1.bf16.msra.mxu0 %v3193
  %3213 = vmatprep.subr.bf16.mxu0 0
  %3214 = vmatpush1.bf16.msra.mxu0 %v3194
  %3215 = vmatprep.subr.bf16.mxu0 0
  %3216 = vmatpush1.bf16.msra.mxu0 %v3195
  %3217 = vmatprep.subr.bf16.mxu0 0
  %3218 = vmatpush1.bf16.msra.mxu0 %v3196
  %3219 = vmatprep.subr.bf16.mxu0 0
  %3220 = vmatpush1.bf16.msra.mxu0 %v3197
  %3221 = vmatprep.subr.bf16.mxu0 0
  %3222 = vmatpush1.bf16.msra.mxu0 %v3198
  %3223 = vmatprep.subr.bf16.mxu0 0
  %3224 = vmatpush1.bf16.msra.mxu0 0
  %3225 = vmatprep.subr.bf16.mxu0 0
  %3226 = vmatpush1.bf16.msra.mxu0 0
  %3227 = vmatprep.subr.bf16.mxu0 0
  %3228 = vmatpush1.bf16.msra.mxu0 0
  %3229 = vmatprep.subr.bf16.mxu0 0
  %3230 = vmatpush1.bf16.msra.mxu0 0
  %3231 = vmatprep.subr.bf16.mxu0 0
  %3232 = vmatpush1.bf16.msra.mxu0 0
  %3233 = vmatprep.subr.bf16.mxu0 0
  %3234 = vmatpush1.bf16.msra.mxu0 0
  %3235 = vmatprep.subr.bf16.mxu0 0
  %3236 = vmatpush1.bf16.msra.mxu0 0
  %3237 = vmatprep.subr.bf16.mxu0 0
  %3238 = vmatpush1.bf16.msra.mxu0 0
  %3239 = vmatprep.mubr.bf16.mxu0 0
  %3240 = vmatmul.mubr.bf16.gmra.mrb[0].mxu0 %v3137
  %v3241 = vpop.f32.mrb[0].mxu0
  %v3242 = vadd.f32 %v3158, %v3241
  %v3243 = vpop.f32.mrb[0].mxu0
  %v3244 = vpop.f32.mrb[0].mxu0
  %v3245 = vpop.f32.mrb[0].mxu0
  %3246 = vdwg.mxu0
  %v3247 = vmul.f32 %v3242, 0.1
  %v3248 = vmax.f32 %v3242, %v3247
  %v3249 = vpack.c.bf16 %v3248, %v3248
  %s3250 = scalar_lea.vmem %s3, 64
  %v3251 = vld [vmem:[%s3250] sm:$0xf]
  %v3252 = vld [vmem:[%s3250 + $0x4] sm:$0xf]
  %v3253 = vld [vmem:[%s3250 + $0x8] sm:$0xf]
  %v3254 = vld [vmem:[%s3250 + $0xc] sm:$0xf]
  %v3255 = vld [vmem:[%s3250 + $0x10] sm:$0xf]
  %v3256 = vld [vmem:[%s3250 + $0x14] sm:$0xf]
  %v3257 = vld [vmem:[%s3250 + $0x18] sm:$0xf]
  %v3258 = vld [vmem:[%s3250 + $0x1c] sm:$0xf]
  %v3259 = vld [vmem:[%s3250 + $0x20] sm:$0xf]
  %v3260 = vld [vmem:[%s3250 + $0x24] sm:$0xf]
  %v3261 = vld [vmem:[%s3250 + $0x28] sm:$0xf]
  %v3262 = vld [vmem:[%s3250 + $0x2c] sm:$0xf]
  %v3263 = vld [vmem:[%s3250 + $0x30] sm:$0xf]
  %v3264 = vld [vmem:[%s3250 + $0x34] sm:$0xf]
  %v3265 = vld [vmem:[%s3250 + $0x38] sm:$0xf]
  %v3266 = vld [vmem:[%s3250 + $0x3c] sm:$0xf]
  %v3267 = vld [vmem:[%s4 + $0x1] sm:$0x1]
  %v3268 = vlaneseq
  %v3269 = vshrl.u32 %v3268, 7
  %v3270 = vsub.s32 0, %v3269
  %v3271 = vrot.slane %v3267, %v3270
  %v3288 = vunpack.c.l.b16 %v3251
  %v3289 = vunpack.c.l.b16 %v3252
  %v3290 = vunpack.c.l.b16 %v3253
  %v3291 = vunpack.c.l.b16 %v3254
  %v3292 = vunpack.c.l.b16 %v3255
  %v3293 = vunpack.c.l.b16 %v3256
  %v3294 = vunpack.c.l.b16 %v3257
  %v3295 = vunpack.c.l.b16 %v3258
  %v3296 = vunpack.c.l.b16 %v3259
  %v3297 = vunpack.c.l.b16 %v3260
  %v3298 = vunpack.c.l.b16 %v3261
  %v3299 = vunpack.c.l.b16 %v3262
  %v3300 = vunpack.c.l.b16 %v3263
  %v3301 = vunpack.c.l.b16 %v3264
  %v3302 = vunpack.c.l.b16 %v3265
  %v3303 = vunpack.c.l.b16 %v3266
  %v3304 = vpack.c.b16 %v3289, %v3288
  %v3305 = vpack.c.b16 %v3291, %v3290
  %v3306 = vpack.c.b16 %v3293, %v3292
  %v3307 = vpack.c.b16 %v3295, %v3294
  %v3308 = vpack.c.b16 %v3297, %v3296
  %v3309 = vpack.c.b16 %v3299, %v3298
  %v3310 = vpack.c.b16 %v3301, %v3300
  %v3311 = vpack.c.b16 %v3303, %v3302
  %3320 = vmatprep.subr.bf16.mxu0 0
  %3321 = vmatpush1.bf16.msra.mxu0 %v3304
  %3322 = vmatprep.subr.bf16.mxu0 0
  %3323 = vmatpush1.bf16.msra.mxu0 %v3305
  %3324 = vmatprep.subr.bf16.mxu0 0
  %3325 = vmatpush1.bf16.msra.mxu0 %v3306
  %3326 = vmatprep.subr.bf16.mxu0 0
  %3327 = vmatpush1.bf16.msra.mxu0 %v3307
  %3328 = vmatprep.subr.bf16.mxu0 0
  %3329 = vmatpush1.bf16.msra.mxu0 %v3308
  %3330 = vmatprep.subr.bf16.mxu0 0
  %3331 = vmatpush1.bf16.msra.mxu0 %v3309
  %3332 = vmatprep.subr.bf16.mxu0 0
  %3333 = vmatpush1.bf16.msra.mxu0 %v3310
  %3334 = vmatprep.subr.bf16.mxu0 0
  %3335 = vmatpush1.bf16.msra.mxu0 %v3311
  %3336 = vmatprep.subr.bf16.mxu0 0
  %3337 = vmatpush1.bf16.msra.mxu0 0
  %3338 = vmatprep.subr.bf16.mxu0 0
  %3339 = vmatpush1.bf16.msra.mxu0 0
  %3340 = vmatprep.subr.bf16.mxu0 0
  %3341 = vmatpush1.bf16.msra.mxu0 0
  %3342 = vmatprep.subr.bf16.mxu0 0
  %3343 = vmatpush1.bf16.msra.mxu0 0
  %3344 = vmatprep.subr.bf16.mxu0 0
  %3345 = vmatpush1.bf16.msra.mxu0 0
  %3346 = vmatprep.subr.bf16.mxu0 0
  %3347 = vmatpush1.bf16.msra.mxu0 0
  %3348 = vmatprep.subr.bf16.mxu0 0
  %3349 = vmatpush1.bf16.msra.mxu0 0
  %3350 = vmatprep.subr.bf16.mxu0 0
  %3351 = vmatpush1.bf16.msra.mxu0 0
  %3352 = vmatprep.mubr.bf16.mxu0 0
  %3353 = vmatmul.mubr.bf16.gmra.mrb[0].mxu0 %v3249
  %v3354 = vpop.f32.mrb[0].mxu0
  %v3355 = vadd.f32 %v3271, %v3354
  %v3356 = vpop.f32.mrb[0].mxu0
  %v3357 = vpop.f32.mrb[0].mxu0
  %v3358 = vpop.f32.mrb[0].mxu0
  %3359 = vdwg.mxu0
  %v3360 = vmul.f32 %v3355, 0.1
  %v3361 = vmax.f32 %v3355, %v3360
  %v3362 = vpack.c.bf16 %v3361, %v3361
  %s3363 = scalar_lea.vmem %s3, 128
  %v3364 = vld [vmem:[%s3363] sm:$0xf]
  %v3365 = vld [vmem:[%s3363 + $0x4] sm:$0xf]
  %v3366 = vld [vmem:[%s3363 + $0x8] sm:$0xf]
  %v3367 = vld [vmem:[%s3363 + $0xc] sm:$0xf]
  %v3368 = vld [vmem:[%s3363 + $0x10] sm:$0xf]
  %v3369 = vld [vmem:[%s3363 + $0x14] sm:$0xf]
  %v3370 = vld [vmem:[%s3363 + $0x18] sm:$0xf]
  %v3371 = vld [vmem:[%s3363 + $0x1c] sm:$0xf]
  %v3372 = vld [vmem:[%s3363 + $0x20] sm:$0xf]
  %v3373 = vld [vmem:[%s3363 + $0x24] sm:$0xf]
  %v3374 = vld [vmem:[%s3363 + $0x28] sm:$0xf]
  %v3375 = vld [vmem:[%s3363 + $0x2c] sm:$0xf]
  %v3376 = vld [vmem:[%s3363 + $0x30] sm:$0xf]
  %v3377 = vld [vmem:[%s3363 + $0x34] sm:$0xf]
  %v3378 = vld [vmem:[%s3363 + $0x38] sm:$0xf]
  %v3379 = vld [vmem:[%s3363 + $0x3c] sm:$0xf]
  %v3380 = vld [vmem:[%s4 + $0x2] sm:$0x1]
  %v3381 = vlaneseq
  %v3382 = vshrl.u32 %v3381, 7
  %v3383 = vsub.s32 0, %v3382
  %v3384 = vrot.slane %v3380, %v3383
  %v3401 = vunpack.c.l.b16 %v3364
  %v3402 = vunpack.c.l.b16 %v3365
  %v3403 = vunpack.c.l.b16 %v3366
  %v3404 = vunpack.c.l.b16 %v3367
  %v3405 = vunpack.c.l.b16 %v3368
  %v3406 = vunpack.c.l.b16 %v3369
  %v3407 = vunpack.c.l.b16 %v3370
  %v3408 = vunpack.c.l.b16 %v3371
  %v3409 = vunpack.c.l.b16 %v3372
  %v3410 = vunpack.c.l.b16 %v3373
  %v3411 = vunpack.c.l.b16 %v3374
  %v3412 = vunpack.c.l.b16 %v3375
  %v3413 = vunpack.c.l.b16 %v3376
  %v3414 = vunpack.c.l.b16 %v3377
  %v3415 = vunpack.c.l.b16 %v3378
  %v3416 = vunpack.c.l.b16 %v3379
  %v3417 = vpack.c.b16 %v3402, %v3401
  %v3418 = vpack.c.b16 %v3404, %v3403
  %v3419 = vpack.c.b16 %v3406, %v3405
  %v3420 = vpack.c.b16 %v3408, %v3407
  %v3421 = vpack.c.b16 %v3410, %v3409
  %v3422 = vpack.c.b16 %v3412, %v3411
  %v3423 = vpack.c.b16 %v3414, %v3413
  %v3424 = vpack.c.b16 %v3416, %v3415
  %3433 = vmatprep.subr.bf16.mxu0 0
  %3434 = vmatpush1.bf16.msra.mxu0 %v3417
  %3435 = vmatprep.subr.bf16.mxu0 0
  %3436 = vmatpush1.bf16.msra.mxu0 %v3418
  %3437 = vmatprep.subr.bf16.mxu0 0
  %3438 = vmatpush1.bf16.msra.mxu0 %v3419
  %3439 = vmatprep.subr.bf16.mxu0 0
  %3440 = vmatpush1.bf16.msra.mxu0 %v3420
  %3441 = vmatprep.subr.bf16.mxu0 0
  %3442 = vmatpush1.bf16.msra.mxu0 %v3421
  %3443 = vmatprep.subr.bf16.mxu0 0
  %3444 = vmatpush1.bf16.msra.mxu0 %v3422
  %3445 = vmatprep.subr.bf16.mxu0 0
  %3446 = vmatpush1.bf16.msra.mxu0 %v3423
  %3447 = vmatprep.subr.bf16.mxu0 0
  %3448 = vmatpush1.bf16.msra.mxu0 %v3424
  %3449 = vmatprep.subr.bf16.mxu0 0
  %3450 = vmatpush1.bf16.msra.mxu0 0
  %3451 = vmatprep.subr.bf16.mxu0 0
  %3452 = vmatpush1.bf16.msra.mxu0 0
  %3453 = vmatprep.subr.bf16.mxu0 0
  %3454 = vmatpush1.bf16.msra.mxu0 0
  %3455 = vmatprep.subr.bf16.mxu0 0
  %3456 = vmatpush1.bf16.msra.mxu0 0
  %3457 = vmatprep.subr.bf16.mxu0 0
  %3458 = vmatpush1.bf16.msra.mxu0 0
  %3459 = vmatprep.subr.bf16.mxu0 0
  %3460 = vmatpush1.bf16.msra.mxu0 0
  %3461 = vmatprep.subr.bf16.mxu0 0
  %3462 = vmatpush1.bf16.msra.mxu0 0
  %3463 = vmatprep.subr.bf16.mxu0 0
  %3464 = vmatpush1.bf16.msra.mxu0 0
  %3465 = vmatprep.mubr.bf16.mxu0 0
  %3466 = vmatmul.mubr.bf16.gmra.mrb[0].mxu0 %v3362
  %v3467 = vpop.f32.mrb[0].mxu0
  %v3468 = vadd.f32 %v3384, %v3467
  %v3469 = vpop.f32.mrb[0].mxu0
  %v3470 = vpop.f32.mrb[0].mxu0
  %v3471 = vpop.f32.mrb[0].mxu0
  %3472 = vdwg.mxu0
  %v3473 = vmul.f32 %v3468, 0.1
  %v3474 = vmax.f32 %v3468, %v3473
  %v3475 = vpack.c.bf16 %v3474, %v3474
  %s3476 = scalar_lea.vmem %s3, 192
  %v3477 = vld [vmem:[%s3476] sm:$0xf]
  %v3478 = vld [vmem:[%s3476 + $0x4] sm:$0xf]
  %v3479 = vld [vmem:[%s3476 + $0x8] sm:$0xf]
  %v3480 = vld [vmem:[%s3476 + $0xc] sm:$0xf]
  %v3481 = vld [vmem:[%s3476 + $0x10] sm:$0xf]
  %v3482 = vld [vmem:[%s3476 + $0x14] sm:$0xf]
  %v3483 = vld [vmem:[%s3476 + $0x18] sm:$0xf]
  %v3484 = vld [vmem:[%s3476 + $0x1c] sm:$0xf]
  %v3485 = vld [vmem:[%s3476 + $0x20] sm:$0xf]
  %v3486 = vld [vmem:[%s3476 + $0x24] sm:$0xf]
  %v3487 = vld [vmem:[%s3476 + $0x28] sm:$0xf]
  %v3488 = vld [vmem:[%s3476 + $0x2c] sm:$0xf]
  %v3489 = vld [vmem:[%s3476 + $0x30] sm:$0xf]
  %v3490 = vld [vmem:[%s3476 + $0x34] sm:$0xf]
  %v3491 = vld [vmem:[%s3476 + $0x38] sm:$0xf]
  %v3492 = vld [vmem:[%s3476 + $0x3c] sm:$0xf]
  %v3493 = vld [vmem:[%s4 + $0x3] sm:$0x1]
  %v3494 = vlaneseq
  %v3495 = vshrl.u32 %v3494, 7
  %v3496 = vsub.s32 0, %v3495
  %v3497 = vrot.slane %v3493, %v3496
  %v3514 = vunpack.c.l.b16 %v3477
  %v3515 = vunpack.c.l.b16 %v3478
  %v3516 = vunpack.c.l.b16 %v3479
  %v3517 = vunpack.c.l.b16 %v3480
  %v3518 = vunpack.c.l.b16 %v3481
  %v3519 = vunpack.c.l.b16 %v3482
  %v3520 = vunpack.c.l.b16 %v3483
  %v3521 = vunpack.c.l.b16 %v3484
  %v3522 = vunpack.c.l.b16 %v3485
  %v3523 = vunpack.c.l.b16 %v3486
  %v3524 = vunpack.c.l.b16 %v3487
  %v3525 = vunpack.c.l.b16 %v3488
  %v3526 = vunpack.c.l.b16 %v3489
  %v3527 = vunpack.c.l.b16 %v3490
  %v3528 = vunpack.c.l.b16 %v3491
  %v3529 = vunpack.c.l.b16 %v3492
  %v3530 = vpack.c.b16 %v3515, %v3514
  %v3531 = vpack.c.b16 %v3517, %v3516
  %v3532 = vpack.c.b16 %v3519, %v3518
  %v3533 = vpack.c.b16 %v3521, %v3520
  %v3534 = vpack.c.b16 %v3523, %v3522
  %v3535 = vpack.c.b16 %v3525, %v3524
  %v3536 = vpack.c.b16 %v3527, %v3526
  %v3537 = vpack.c.b16 %v3529, %v3528
  %3546 = vmatprep.subr.bf16.mxu0 0
  %3547 = vmatpush1.bf16.msra.mxu0 %v3530
  %3548 = vmatprep.subr.bf16.mxu0 0
  %3549 = vmatpush1.bf16.msra.mxu0 %v3531
  %3550 = vmatprep.subr.bf16.mxu0 0
  %3551 = vmatpush1.bf16.msra.mxu0 %v3532
  %3552 = vmatprep.subr.bf16.mxu0 0
  %3553 = vmatpush1.bf16.msra.mxu0 %v3533
  %3554 = vmatprep.subr.bf16.mxu0 0
  %3555 = vmatpush1.bf16.msra.mxu0 %v3534
  %3556 = vmatprep.subr.bf16.mxu0 0
  %3557 = vmatpush1.bf16.msra.mxu0 %v3535
  %3558 = vmatprep.subr.bf16.mxu0 0
  %3559 = vmatpush1.bf16.msra.mxu0 %v3536
  %3560 = vmatprep.subr.bf16.mxu0 0
  %3561 = vmatpush1.bf16.msra.mxu0 %v3537
  %3562 = vmatprep.subr.bf16.mxu0 0
  %3563 = vmatpush1.bf16.msra.mxu0 0
  %3564 = vmatprep.subr.bf16.mxu0 0
  %3565 = vmatpush1.bf16.msra.mxu0 0
  %3566 = vmatprep.subr.bf16.mxu0 0
  %3567 = vmatpush1.bf16.msra.mxu0 0
  %3568 = vmatprep.subr.bf16.mxu0 0
  %3569 = vmatpush1.bf16.msra.mxu0 0
  %3570 = vmatprep.subr.bf16.mxu0 0
  %3571 = vmatpush1.bf16.msra.mxu0 0
  %3572 = vmatprep.subr.bf16.mxu0 0
  %3573 = vmatpush1.bf16.msra.mxu0 0
  %3574 = vmatprep.subr.bf16.mxu0 0
  %3575 = vmatpush1.bf16.msra.mxu0 0
  %3576 = vmatprep.subr.bf16.mxu0 0
  %3577 = vmatpush1.bf16.msra.mxu0 0
  %3578 = vmatprep.mubr.bf16.mxu0 0
  %3579 = vmatmul.mubr.bf16.gmra.mrb[0].mxu0 %v3475
  %v3580 = vpop.f32.mrb[0].mxu0
  %v3581 = vadd.f32 %v3497, %v3580
  %v3582 = vpop.f32.mrb[0].mxu0
  %v3583 = vpop.f32.mrb[0].mxu0
  %v3584 = vpop.f32.mrb[0].mxu0
  %3585 = vdwg.mxu0
  %s3586 = scalar_lea.vmem %s3, 256
  %v3587 = vld [vmem:[%s3586] sm:$0xf]
  %v3588 = vld [vmem:[%s3586 + $0x4] sm:$0xf]
  %v3589 = vld [vmem:[%s3586 + $0x8] sm:$0xf]
  %v3590 = vld [vmem:[%s3586 + $0xc] sm:$0xf]
  %v3591 = vld [vmem:[%s3586 + $0x10] sm:$0xf]
  %v3592 = vld [vmem:[%s3586 + $0x14] sm:$0xf]
  %v3593 = vld [vmem:[%s3586 + $0x18] sm:$0xf]
  %v3594 = vld [vmem:[%s3586 + $0x1c] sm:$0xf]
  %v3595 = vld [vmem:[%s3586 + $0x20] sm:$0xf]
  %v3596 = vld [vmem:[%s3586 + $0x24] sm:$0xf]
  %v3597 = vld [vmem:[%s3586 + $0x28] sm:$0xf]
  %v3598 = vld [vmem:[%s3586 + $0x2c] sm:$0xf]
  %v3599 = vld [vmem:[%s3586 + $0x30] sm:$0xf]
  %v3600 = vld [vmem:[%s3586 + $0x34] sm:$0xf]
  %v3601 = vld [vmem:[%s3586 + $0x38] sm:$0xf]
  %v3602 = vld [vmem:[%s3586 + $0x3c] sm:$0xf]
  %v3603 = vld [vmem:[%s4 + $0x4] sm:$0x1]
  %v3604 = vlaneseq
  %v3605 = vshrl.u32 %v3604, 7
  %v3606 = vsub.s32 0, %v3605
  %v3607 = vrot.slane %v3603, %v3606
  %v3624 = vunpack.c.l.b16 %v3587
  %v3625 = vunpack.c.l.b16 %v3588
  %v3626 = vunpack.c.l.b16 %v3589
  %v3627 = vunpack.c.l.b16 %v3590
  %v3628 = vunpack.c.l.b16 %v3591
  %v3629 = vunpack.c.l.b16 %v3592
  %v3630 = vunpack.c.l.b16 %v3593
  %v3631 = vunpack.c.l.b16 %v3594
  %v3632 = vunpack.c.l.b16 %v3595
  %v3633 = vunpack.c.l.b16 %v3596
  %v3634 = vunpack.c.l.b16 %v3597
  %v3635 = vunpack.c.l.b16 %v3598
  %v3636 = vunpack.c.l.b16 %v3599
  %v3637 = vunpack.c.l.b16 %v3600
  %v3638 = vunpack.c.l.b16 %v3601
  %v3639 = vunpack.c.l.b16 %v3602
  %v3640 = vpack.c.b16 %v3625, %v3624
  %v3641 = vpack.c.b16 %v3627, %v3626
  %v3642 = vpack.c.b16 %v3629, %v3628
  %v3643 = vpack.c.b16 %v3631, %v3630
  %v3644 = vpack.c.b16 %v3633, %v3632
  %v3645 = vpack.c.b16 %v3635, %v3634
  %v3646 = vpack.c.b16 %v3637, %v3636
  %v3647 = vpack.c.b16 %v3639, %v3638
  %3656 = vmatprep.subr.bf16.mxu0 0
  %3657 = vmatpush1.bf16.msra.mxu0 %v3640
  %3658 = vmatprep.subr.bf16.mxu0 0
  %3659 = vmatpush1.bf16.msra.mxu0 %v3641
  %3660 = vmatprep.subr.bf16.mxu0 0
  %3661 = vmatpush1.bf16.msra.mxu0 %v3642
  %3662 = vmatprep.subr.bf16.mxu0 0
  %3663 = vmatpush1.bf16.msra.mxu0 %v3643
  %3664 = vmatprep.subr.bf16.mxu0 0
  %3665 = vmatpush1.bf16.msra.mxu0 %v3644
  %3666 = vmatprep.subr.bf16.mxu0 0
  %3667 = vmatpush1.bf16.msra.mxu0 %v3645
  %3668 = vmatprep.subr.bf16.mxu0 0
  %3669 = vmatpush1.bf16.msra.mxu0 %v3646
  %3670 = vmatprep.subr.bf16.mxu0 0
  %3671 = vmatpush1.bf16.msra.mxu0 %v3647
  %3672 = vmatprep.subr.bf16.mxu0 0
  %3673 = vmatpush1.bf16.msra.mxu0 0
  %3674 = vmatprep.subr.bf16.mxu0 0
  %3675 = vmatpush1.bf16.msra.mxu0 0
  %3676 = vmatprep.subr.bf16.mxu0 0
  %3677 = vmatpush1.bf16.msra.mxu0 0
  %3678 = vmatprep.subr.bf16.mxu0 0
  %3679 = vmatpush1.bf16.msra.mxu0 0
  %3680 = vmatprep.subr.bf16.mxu0 0
  %3681 = vmatpush1.bf16.msra.mxu0 0
  %3682 = vmatprep.subr.bf16.mxu0 0
  %3683 = vmatpush1.bf16.msra.mxu0 0
  %3684 = vmatprep.subr.bf16.mxu0 0
  %3685 = vmatpush1.bf16.msra.mxu0 0
  %3686 = vmatprep.subr.bf16.mxu0 0
  %3687 = vmatpush1.bf16.msra.mxu0 0
  %3688 = vmatprep.mubr.bf16.mxu0 0
  %3689 = vmatmul.mubr.bf16.gmra.mrb[0].mxu0 %v3475
  %v3690 = vpop.f32.mrb[0].mxu0
  %v3691 = vadd.f32 %v3607, %v3690
  %v3692 = vpop.f32.mrb[0].mxu0
  %v3693 = vpop.f32.mrb[0].mxu0
  %v3694 = vpop.f32.mrb[0].mxu0
  %3695 = vdwg.mxu0
  %s3696 = scalar_lea.vmem %s3, 320
  %v3697 = vld [vmem:[%s3696] sm:$0xf]
  %v3698 = vld [vmem:[%s3696 + $0x4] sm:$0xf]
  %v3699 = vld [vmem:[%s3696 + $0x8] sm:$0xf]
  %v3700 = vld [vmem:[%s3696 + $0xc] sm:$0xf]
  %v3701 = vld [vmem:[%s3696 + $0x10] sm:$0xf]
  %v3702 = vld [vmem:[%s3696 + $0x14] sm:$0xf]
  %v3703 = vld [vmem:[%s3696 + $0x18] sm:$0xf]
  %v3704 = vld [vmem:[%s3696 + $0x1c] sm:$0xf]
  %v3705 = vld [vmem:[%s3696 + $0x20] sm:$0xf]
  %v3706 = vld [vmem:[%s3696 + $0x24] sm:$0xf]
  %v3707 = vld [vmem:[%s3696 + $0x28] sm:$0xf]
  %v3708 = vld [vmem:[%s3696 + $0x2c] sm:$0xf]
  %v3709 = vld [vmem:[%s3696 + $0x30] sm:$0xf]
  %v3710 = vld [vmem:[%s3696 + $0x34] sm:$0xf]
  %v3711 = vld [vmem:[%s3696 + $0x38] sm:$0xf]
  %v3712 = vld [vmem:[%s3696 + $0x3c] sm:$0xf]
  %v3713 = vld [vmem:[%s4 + $0x5] sm:$0x1]
  %v3714 = vlaneseq
  %v3715 = vshrl.u32 %v3714, 7
  %v3716 = vsub.s32 0, %v3715
  %v3717 = vrot.slane %v3713, %v3716
  %v3734 = vunpack.c.l.b16 %v3697
  %v3735 = vunpack.c.l.b16 %v3698
  %v3736 = vunpack.c.l.b16 %v3699
  %v3737 = vunpack.c.l.b16 %v3700
  %v3738 = vunpack.c.l.b16 %v3701
  %v3739 = vunpack.c.l.b16 %v3702
  %v3740 = vunpack.c.l.b16 %v3703
  %v3741 = vunpack.c.l.b16 %v3704
  %v3742 = vunpack.c.l.b16 %v3705
  %v3743 = vunpack.c.l.b16 %v3706
  %v3744 = vunpack.c.l.b16 %v3707
  %v3745 = vunpack.c.l.b16 %v3708
  %v3746 = vunpack.c.l.b16 %v3709
  %v3747 = vunpack.c.l.b16 %v3710
  %v3748 = vunpack.c.l.b16 %v3711
  %v3749 = vunpack.c.l.b16 %v3712
  %v3750 = vpack.c.b16 %v3735, %v3734
  %v3751 = vpack.c.b16 %v3737, %v3736
  %v3752 = vpack.c.b16 %v3739, %v3738
  %v3753 = vpack.c.b16 %v3741, %v3740
  %v3754 = vpack.c.b16 %v3743, %v3742
  %v3755 = vpack.c.b16 %v3745, %v3744
  %v3756 = vpack.c.b16 %v3747, %v3746
  %v3757 = vpack.c.b16 %v3749, %v3748
  %3766 = vmatprep.subr.bf16.mxu0 0
  %3767 = vmatpush1.bf16.msra.mxu0 %v3750
  %3768 = vmatprep.subr.bf16.mxu0 0
  %3769 = vmatpush1.bf16.msra.mxu0 %v3751
  %3770 = vmatprep.subr.bf16.mxu0 0
  %3771 = vmatpush1.bf16.msra.mxu0 %v3752
  %3772 = vmatprep.subr.bf16.mxu0 0
  %3773 = vmatpush1.bf16.msra.mxu0 %v3753
  %3774 = vmatprep.subr.bf16.mxu0 0
  %3775 = vmatpush1.bf16.msra.mxu0 %v3754
  %3776 = vmatprep.subr.bf16.mxu0 0
  %3777 = vmatpush1.bf16.msra.mxu0 %v3755
  %3778 = vmatprep.subr.bf16.mxu0 0
  %3779 = vmatpush1.bf16.msra.mxu0 %v3756
  %3780 = vmatprep.subr.bf16.mxu0 0
  %3781 = vmatpush1.bf16.msra.mxu0 %v3757
  %3782 = vmatprep.subr.bf16.mxu0 0
  %3783 = vmatpush1.bf16.msra.mxu0 0
  %3784 = vmatprep.subr.bf16.mxu0 0
  %3785 = vmatpush1.bf16.msra.mxu0 0
  %3786 = vmatprep.subr.bf16.mxu0 0
  %3787 = vmatpush1.bf16.msra.mxu0 0
  %3788 = vmatprep.subr.bf16.mxu0 0
  %3789 = vmatpush1.bf16.msra.mxu0 0
  %3790 = vmatprep.subr.bf16.mxu0 0
  %3791 = vmatpush1.bf16.msra.mxu0 0
  %3792 = vmatprep.subr.bf16.mxu0 0
  %3793 = vmatpush1.bf16.msra.mxu0 0
  %3794 = vmatprep.subr.bf16.mxu0 0
  %3795 = vmatpush1.bf16.msra.mxu0 0
  %3796 = vmatprep.subr.bf16.mxu0 0
  %3797 = vmatpush1.bf16.msra.mxu0 0
  %3798 = vmatprep.mubr.bf16.mxu0 0
  %3799 = vmatmul.mubr.bf16.gmra.mrb[0].mxu0 %v42
  %v3800 = vpop.f32.mrb[0].mxu0
  %v3801 = vadd.f32 %v3717, %v3800
  %v3802 = vpop.f32.mrb[0].mxu0
  %v3803 = vpop.f32.mrb[0].mxu0
  %v3804 = vpop.f32.mrb[0].mxu0
  %3805 = vdwg.mxu0
  %v3806 = vmul.f32 %v3801, 0.1
  %v3807 = vmax.f32 %v3801, %v3806
  %v3808 = vpack.c.bf16 %v3807, %v3807
  %s3809 = scalar_lea.vmem %s3, 384
  %v3810 = vld [vmem:[%s3809] sm:$0xf]
  %v3811 = vld [vmem:[%s3809 + $0x4] sm:$0xf]
  %v3812 = vld [vmem:[%s3809 + $0x8] sm:$0xf]
  %v3813 = vld [vmem:[%s3809 + $0xc] sm:$0xf]
  %v3814 = vld [vmem:[%s3809 + $0x10] sm:$0xf]
  %v3815 = vld [vmem:[%s3809 + $0x14] sm:$0xf]
  %v3816 = vld [vmem:[%s3809 + $0x18] sm:$0xf]
  %v3817 = vld [vmem:[%s3809 + $0x1c] sm:$0xf]
  %v3818 = vld [vmem:[%s3809 + $0x20] sm:$0xf]
  %v3819 = vld [vmem:[%s3809 + $0x24] sm:$0xf]
  %v3820 = vld [vmem:[%s3809 + $0x28] sm:$0xf]
  %v3821 = vld [vmem:[%s3809 + $0x2c] sm:$0xf]
  %v3822 = vld [vmem:[%s3809 + $0x30] sm:$0xf]
  %v3823 = vld [vmem:[%s3809 + $0x34] sm:$0xf]
  %v3824 = vld [vmem:[%s3809 + $0x38] sm:$0xf]
  %v3825 = vld [vmem:[%s3809 + $0x3c] sm:$0xf]
  %v3826 = vld [vmem:[%s4 + $0x6] sm:$0x1]
  %v3827 = vlaneseq
  %v3828 = vshrl.u32 %v3827, 7
  %v3829 = vsub.s32 0, %v3828
  %v3830 = vrot.slane %v3826, %v3829
  %v3847 = vunpack.c.l.b16 %v3810
  %v3848 = vunpack.c.l.b16 %v3811
  %v3849 = vunpack.c.l.b16 %v3812
  %v3850 = vunpack.c.l.b16 %v3813
  %v3851 = vunpack.c.l.b16 %v3814
  %v3852 = vunpack.c.l.b16 %v3815
  %v3853 = vunpack.c.l.b16 %v3816
  %v3854 = vunpack.c.l.b16 %v3817
  %v3855 = vunpack.c.l.b16 %v3818
  %v3856 = vunpack.c.l.b16 %v3819
  %v3857 = vunpack.c.l.b16 %v3820
  %v3858 = vunpack.c.l.b16 %v3821
  %v3859 = vunpack.c.l.b16 %v3822
  %v3860 = vunpack.c.l.b16 %v3823
  %v3861 = vunpack.c.l.b16 %v3824
  %v3862 = vunpack.c.l.b16 %v3825
  %v3863 = vpack.c.b16 %v3848, %v3847
  %v3864 = vpack.c.b16 %v3850, %v3849
  %v3865 = vpack.c.b16 %v3852, %v3851
  %v3866 = vpack.c.b16 %v3854, %v3853
  %v3867 = vpack.c.b16 %v3856, %v3855
  %v3868 = vpack.c.b16 %v3858, %v3857
  %v3869 = vpack.c.b16 %v3860, %v3859
  %v3870 = vpack.c.b16 %v3862, %v3861
  %3879 = vmatprep.subr.bf16.mxu0 0
  %3880 = vmatpush1.bf16.msra.mxu0 %v3863
  %3881 = vmatprep.subr.bf16.mxu0 0
  %3882 = vmatpush1.bf16.msra.mxu0 %v3864
  %3883 = vmatprep.subr.bf16.mxu0 0
  %3884 = vmatpush1.bf16.msra.mxu0 %v3865
  %3885 = vmatprep.subr.bf16.mxu0 0
  %3886 = vmatpush1.bf16.msra.mxu0 %v3866
  %3887 = vmatprep.subr.bf16.mxu0 0
  %3888 = vmatpush1.bf16.msra.mxu0 %v3867
  %3889 = vmatprep.subr.bf16.mxu0 0
  %3890 = vmatpush1.bf16.msra.mxu0 %v3868
  %3891 = vmatprep.subr.bf16.mxu0 0
  %3892 = vmatpush1.bf16.msra.mxu0 %v3869
  %3893 = vmatprep.subr.bf16.mxu0 0
  %3894 = vmatpush1.bf16.msra.mxu0 %v3870
  %3895 = vmatprep.subr.bf16.mxu0 0
  %3896 = vmatpush1.bf16.msra.mxu0 0
  %3897 = vmatprep.subr.bf16.mxu0 0
  %3898 = vmatpush1.bf16.msra.mxu0 0
  %3899 = vmatprep.subr.bf16.mxu0 0
  %3900 = vmatpush1.bf16.msra.mxu0 0
  %3901 = vmatprep.subr.bf16.mxu0 0
  %3902 = vmatpush1.bf16.msra.mxu0 0
  %3903 = vmatprep.subr.bf16.mxu0 0
  %3904 = vmatpush1.bf16.msra.mxu0 0
  %3905 = vmatprep.subr.bf16.mxu0 0
  %3906 = vmatpush1.bf16.msra.mxu0 0
  %3907 = vmatprep.subr.bf16.mxu0 0
  %3908 = vmatpush1.bf16.msra.mxu0 0
  %3909 = vmatprep.subr.bf16.mxu0 0
  %3910 = vmatpush1.bf16.msra.mxu0 0
  %3911 = vmatprep.mubr.bf16.mxu0 0
  %3912 = vmatmul.mubr.bf16.gmra.mrb[0].mxu0 %v3808
  %v3913 = vpop.f32.mrb[0].mxu0
  %v3914 = vadd.f32 %v3830, %v3913
  %v3915 = vpop.f32.mrb[0].mxu0
  %v3916 = vpop.f32.mrb[0].mxu0
  %v3917 = vpop.f32.mrb[0].mxu0
  %3918 = vdwg.mxu0
  %v3919 = vmul.f32 %v3914, 0.1
  %v3920 = vmax.f32 %v3914, %v3919
  %v3921 = vpack.c.bf16 %v3920, %v3920
  %s3922 = scalar_lea.vmem %s3, 448
  %v3923 = vld [vmem:[%s3922] sm:$0xf]
  %v3924 = vld [vmem:[%s3922 + $0x4] sm:$0xf]
  %v3925 = vld [vmem:[%s3922 + $0x8] sm:$0xf]
  %v3926 = vld [vmem:[%s3922 + $0xc] sm:$0xf]
  %v3927 = vld [vmem:[%s3922 + $0x10] sm:$0xf]
  %v3928 = vld [vmem:[%s3922 + $0x14] sm:$0xf]
  %v3929 = vld [vmem:[%s3922 + $0x18] sm:$0xf]
  %v3930 = vld [vmem:[%s3922 + $0x1c] sm:$0xf]
  %v3931 = vld [vmem:[%s3922 + $0x20] sm:$0xf]
  %v3932 = vld [vmem:[%s3922 + $0x24] sm:$0xf]
  %v3933 = vld [vmem:[%s3922 + $0x28] sm:$0xf]
  %v3934 = vld [vmem:[%s3922 + $0x2c] sm:$0xf]
  %v3935 = vld [vmem:[%s3922 + $0x30] sm:$0xf]
  %v3936 = vld [vmem:[%s3922 + $0x34] sm:$0xf]
  %v3937 = vld [vmem:[%s3922 + $0x38] sm:$0xf]
  %v3938 = vld [vmem:[%s3922 + $0x3c] sm:$0xf]
  %v3939 = vld [vmem:[%s4 + $0x7] sm:$0x1]
  %v3940 = vlaneseq
  %v3941 = vshrl.u32 %v3940, 7
  %v3942 = vsub.s32 0, %v3941
  %v3943 = vrot.slane %v3939, %v3942
  %v3960 = vunpack.c.l.b16 %v3923
  %v3961 = vunpack.c.l.b16 %v3924
  %v3962 = vunpack.c.l.b16 %v3925
  %v3963 = vunpack.c.l.b16 %v3926
  %v3964 = vunpack.c.l.b16 %v3927
  %v3965 = vunpack.c.l.b16 %v3928
  %v3966 = vunpack.c.l.b16 %v3929
  %v3967 = vunpack.c.l.b16 %v3930
  %v3968 = vunpack.c.l.b16 %v3931
  %v3969 = vunpack.c.l.b16 %v3932
  %v3970 = vunpack.c.l.b16 %v3933
  %v3971 = vunpack.c.l.b16 %v3934
  %v3972 = vunpack.c.l.b16 %v3935
  %v3973 = vunpack.c.l.b16 %v3936
  %v3974 = vunpack.c.l.b16 %v3937
  %v3975 = vunpack.c.l.b16 %v3938
  %v3976 = vpack.c.b16 %v3961, %v3960
  %v3977 = vpack.c.b16 %v3963, %v3962
  %v3978 = vpack.c.b16 %v3965, %v3964
  %v3979 = vpack.c.b16 %v3967, %v3966
  %v3980 = vpack.c.b16 %v3969, %v3968
  %v3981 = vpack.c.b16 %v3971, %v3970
  %v3982 = vpack.c.b16 %v3973, %v3972
  %v3983 = vpack.c.b16 %v3975, %v3974
  %3992 = vmatprep.subr.bf16.mxu0 0
  %3993 = vmatpush1.bf16.msra.mxu0 %v3976
  %3994 = vmatprep.subr.bf16.mxu0 0
  %3995 = vmatpush1.bf16.msra.mxu0 %v3977
  %3996 = vmatprep.subr.bf16.mxu0 0
  %3997 = vmatpush1.bf16.msra.mxu0 %v3978
  %3998 = vmatprep.subr.bf16.mxu0 0
  %3999 = vmatpush1.bf16.msra.mxu0 %v3979
  %4000 = vmatprep.subr.bf16.mxu0 0
  %4001 = vmatpush1.bf16.msra.mxu0 %v3980
  %4002 = vmatprep.subr.bf16.mxu0 0
  %4003 = vmatpush1.bf16.msra.mxu0 %v3981
  %4004 = vmatprep.subr.bf16.mxu0 0
  %4005 = vmatpush1.bf16.msra.mxu0 %v3982
  %4006 = vmatprep.subr.bf16.mxu0 0
  %4007 = vmatpush1.bf16.msra.mxu0 %v3983
  %4008 = vmatprep.subr.bf16.mxu0 0
  %4009 = vmatpush1.bf16.msra.mxu0 0
  %4010 = vmatprep.subr.bf16.mxu0 0
  %4011 = vmatpush1.bf16.msra.mxu0 0
  %4012 = vmatprep.subr.bf16.mxu0 0
  %4013 = vmatpush1.bf16.msra.mxu0 0
  %4014 = vmatprep.subr.bf16.mxu0 0
  %4015 = vmatpush1.bf16.msra.mxu0 0
  %4016 = vmatprep.subr.bf16.mxu0 0
  %4017 = vmatpush1.bf16.msra.mxu0 0
  %4018 = vmatprep.subr.bf16.mxu0 0
  %4019 = vmatpush1.bf16.msra.mxu0 0
  %4020 = vmatprep.subr.bf16.mxu0 0
  %4021 = vmatpush1.bf16.msra.mxu0 0
  %4022 = vmatprep.subr.bf16.mxu0 0
  %4023 = vmatpush1.bf16.msra.mxu0 0
  %4024 = vmatprep.mubr.bf16.mxu0 0
  %4025 = vmatmul.mubr.bf16.gmra.mrb[0].mxu0 %v3921
  %v4026 = vpop.f32.mrb[0].mxu0
  %v4027 = vadd.f32 %v3943, %v4026
  %v4028 = vpop.f32.mrb[0].mxu0
  %v4029 = vpop.f32.mrb[0].mxu0
  %v4030 = vpop.f32.mrb[0].mxu0
  %4031 = vdwg.mxu0
  %v4032 = vmul.f32 %v4027, 0.1
  %v4033 = vmax.f32 %v4027, %v4032
  %v4034 = vpack.c.bf16 %v4033, %v4033
  %s4035 = scalar_lea.vmem %s3, 512
  %v4036 = vld [vmem:[%s4035] sm:$0xf]
  %v4037 = vld [vmem:[%s4035 + $0x4] sm:$0xf]
  %v4038 = vld [vmem:[%s4035 + $0x8] sm:$0xf]
  %v4039 = vld [vmem:[%s4035 + $0xc] sm:$0xf]
  %v4040 = vld [vmem:[%s4035 + $0x10] sm:$0xf]
  %v4041 = vld [vmem:[%s4035 + $0x14] sm:$0xf]
  %v4042 = vld [vmem:[%s4035 + $0x18] sm:$0xf]
  %v4043 = vld [vmem:[%s4035 + $0x1c] sm:$0xf]
  %v4044 = vld [vmem:[%s4035 + $0x20] sm:$0xf]
  %v4045 = vld [vmem:[%s4035 + $0x24] sm:$0xf]
  %v4046 = vld [vmem:[%s4035 + $0x28] sm:$0xf]
  %v4047 = vld [vmem:[%s4035 + $0x2c] sm:$0xf]
  %v4048 = vld [vmem:[%s4035 + $0x30] sm:$0xf]
  %v4049 = vld [vmem:[%s4035 + $0x34] sm:$0xf]
  %v4050 = vld [vmem:[%s4035 + $0x38] sm:$0xf]
  %v4051 = vld [vmem:[%s4035 + $0x3c] sm:$0xf]
  %v4052 = vld [vmem:[%s4 + $0x8] sm:$0x1]
  %v4053 = vlaneseq
  %v4054 = vshrl.u32 %v4053, 7
  %v4055 = vsub.s32 0, %v4054
  %v4056 = vrot.slane %v4052, %v4055
  %v4073 = vunpack.c.l.b16 %v4036
  %v4074 = vunpack.c.l.b16 %v4037
  %v4075 = vunpack.c.l.b16 %v4038
  %v4076 = vunpack.c.l.b16 %v4039
  %v4077 = vunpack.c.l.b16 %v4040
  %v4078 = vunpack.c.l.b16 %v4041
  %v4079 = vunpack.c.l.b16 %v4042
  %v4080 = vunpack.c.l.b16 %v4043
  %v4081 = vunpack.c.l.b16 %v4044
  %v4082 = vunpack.c.l.b16 %v4045
  %v4083 = vunpack.c.l.b16 %v4046
  %v4084 = vunpack.c.l.b16 %v4047
  %v4085 = vunpack.c.l.b16 %v4048
  %v4086 = vunpack.c.l.b16 %v4049
  %v4087 = vunpack.c.l.b16 %v4050
  %v4088 = vunpack.c.l.b16 %v4051
  %v4089 = vpack.c.b16 %v4074, %v4073
  %v4090 = vpack.c.b16 %v4076, %v4075
  %v4091 = vpack.c.b16 %v4078, %v4077
  %v4092 = vpack.c.b16 %v4080, %v4079
  %v4093 = vpack.c.b16 %v4082, %v4081
  %v4094 = vpack.c.b16 %v4084, %v4083
  %v4095 = vpack.c.b16 %v4086, %v4085
  %v4096 = vpack.c.b16 %v4088, %v4087
  %4105 = vmatprep.subr.bf16.mxu0 0
  %4106 = vmatpush1.bf16.msra.mxu0 %v4089
  %4107 = vmatprep.subr.bf16.mxu0 0
  %4108 = vmatpush1.bf16.msra.mxu0 %v4090
  %4109 = vmatprep.subr.bf16.mxu0 0
  %4110 = vmatpush1.bf16.msra.mxu0 %v4091
  %4111 = vmatprep.subr.bf16.mxu0 0
  %4112 = vmatpush1.bf16.msra.mxu0 %v4092
  %4113 = vmatprep.subr.bf16.mxu0 0
  %4114 = vmatpush1.bf16.msra.mxu0 %v4093
  %4115 = vmatprep.subr.bf16.mxu0 0
  %4116 = vmatpush1.bf16.msra.mxu0 %v4094
  %4117 = vmatprep.subr.bf16.mxu0 0
  %4118 = vmatpush1.bf16.msra.mxu0 %v4095
  %4119 = vmatprep.subr.bf16.mxu0 0
  %4120 = vmatpush1.bf16.msra.mxu0 %v4096
  %4121 = vmatprep.subr.bf16.mxu0 0
  %4122 = vmatpush1.bf16.msra.mxu0 0
  %4123 = vmatprep.subr.bf16.mxu0 0
  %4124 = vmatpush1.bf16.msra.mxu0 0
  %4125 = vmatprep.subr.bf16.mxu0 0
  %4126 = vmatpush1.bf16.msra.mxu0 0
  %4127 = vmatprep.subr.bf16.mxu0 0
  %4128 = vmatpush1.bf16.msra.mxu0 0
  %4129 = vmatprep.subr.bf16.mxu0 0
  %4130 = vmatpush1.bf16.msra.mxu0 0
  %4131 = vmatprep.subr.bf16.mxu0 0
  %4132 = vmatpush1.bf16.msra.mxu0 0
  %4133 = vmatprep.subr.bf16.mxu0 0
  %4134 = vmatpush1.bf16.msra.mxu0 0
  %4135 = vmatprep.subr.bf16.mxu0 0
  %4136 = vmatpush1.bf16.msra.mxu0 0
  %4137 = vmatprep.mubr.bf16.mxu0 0
  %4138 = vmatmul.mubr.bf16.gmra.mrb[0].mxu0 %v4034
  %v4139 = vpop.f32.mrb[0].mxu0
  %v4140 = vadd.f32 %v4056, %v4139
  %v4141 = vpop.f32.mrb[0].mxu0
  %v4142 = vpop.f32.mrb[0].mxu0
  %v4143 = vpop.f32.mrb[0].mxu0
  %4144 = vdwg.mxu0
  %s4145 = scalar_lea.vmem %s3, 576
  %v4146 = vld [vmem:[%s4145] sm:$0xf]
  %v4147 = vld [vmem:[%s4145 + $0x4] sm:$0xf]
  %v4148 = vld [vmem:[%s4145 + $0x8] sm:$0xf]
  %v4149 = vld [vmem:[%s4145 + $0xc] sm:$0xf]
  %v4150 = vld [vmem:[%s4145 + $0x10] sm:$0xf]
  %v4151 = vld [vmem:[%s4145 + $0x14] sm:$0xf]
  %v4152 = vld [vmem:[%s4145 + $0x18] sm:$0xf]
  %v4153 = vld [vmem:[%s4145 + $0x1c] sm:$0xf]
  %v4154 = vld [vmem:[%s4145 + $0x20] sm:$0xf]
  %v4155 = vld [vmem:[%s4145 + $0x24] sm:$0xf]
  %v4156 = vld [vmem:[%s4145 + $0x28] sm:$0xf]
  %v4157 = vld [vmem:[%s4145 + $0x2c] sm:$0xf]
  %v4158 = vld [vmem:[%s4145 + $0x30] sm:$0xf]
  %v4159 = vld [vmem:[%s4145 + $0x34] sm:$0xf]
  %v4160 = vld [vmem:[%s4145 + $0x38] sm:$0xf]
  %v4161 = vld [vmem:[%s4145 + $0x3c] sm:$0xf]
  %v4162 = vld [vmem:[%s4 + $0x9] sm:$0x1]
  %v4163 = vlaneseq
  %v4164 = vshrl.u32 %v4163, 7
  %v4165 = vsub.s32 0, %v4164
  %v4166 = vrot.slane %v4162, %v4165
  %v4183 = vunpack.c.l.b16 %v4146
  %v4184 = vunpack.c.l.b16 %v4147
  %v4185 = vunpack.c.l.b16 %v4148
  %v4186 = vunpack.c.l.b16 %v4149
  %v4187 = vunpack.c.l.b16 %v4150
  %v4188 = vunpack.c.l.b16 %v4151
  %v4189 = vunpack.c.l.b16 %v4152
  %v4190 = vunpack.c.l.b16 %v4153
  %v4191 = vunpack.c.l.b16 %v4154
  %v4192 = vunpack.c.l.b16 %v4155
  %v4193 = vunpack.c.l.b16 %v4156
  %v4194 = vunpack.c.l.b16 %v4157
  %v4195 = vunpack.c.l.b16 %v4158
  %v4196 = vunpack.c.l.b16 %v4159
  %v4197 = vunpack.c.l.b16 %v4160
  %v4198 = vunpack.c.l.b16 %v4161
  %v4199 = vpack.c.b16 %v4184, %v4183
  %v4200 = vpack.c.b16 %v4186, %v4185
  %v4201 = vpack.c.b16 %v4188, %v4187
  %v4202 = vpack.c.b16 %v4190, %v4189
  %v4203 = vpack.c.b16 %v4192, %v4191
  %v4204 = vpack.c.b16 %v4194, %v4193
  %v4205 = vpack.c.b16 %v4196, %v4195
  %v4206 = vpack.c.b16 %v4198, %v4197
  %4215 = vmatprep.subr.bf16.mxu0 0
  %4216 = vmatpush1.bf16.msra.mxu0 %v4199
  %4217 = vmatprep.subr.bf16.mxu0 0
  %4218 = vmatpush1.bf16.msra.mxu0 %v4200
  %4219 = vmatprep.subr.bf16.mxu0 0
  %4220 = vmatpush1.bf16.msra.mxu0 %v4201
  %4221 = vmatprep.subr.bf16.mxu0 0
  %4222 = vmatpush1.bf16.msra.mxu0 %v4202
  %4223 = vmatprep.subr.bf16.mxu0 0
  %4224 = vmatpush1.bf16.msra.mxu0 %v4203
  %4225 = vmatprep.subr.bf16.mxu0 0
  %4226 = vmatpush1.bf16.msra.mxu0 %v4204
  %4227 = vmatprep.subr.bf16.mxu0 0
  %4228 = vmatpush1.bf16.msra.mxu0 %v4205
  %4229 = vmatprep.subr.bf16.mxu0 0
  %4230 = vmatpush1.bf16.msra.mxu0 %v4206
  %4231 = vmatprep.subr.bf16.mxu0 0
  %4232 = vmatpush1.bf16.msra.mxu0 0
  %4233 = vmatprep.subr.bf16.mxu0 0
  %4234 = vmatpush1.bf16.msra.mxu0 0
  %4235 = vmatprep.subr.bf16.mxu0 0
  %4236 = vmatpush1.bf16.msra.mxu0 0
  %4237 = vmatprep.subr.bf16.mxu0 0
  %4238 = vmatpush1.bf16.msra.mxu0 0
  %4239 = vmatprep.subr.bf16.mxu0 0
  %4240 = vmatpush1.bf16.msra.mxu0 0
  %4241 = vmatprep.subr.bf16.mxu0 0
  %4242 = vmatpush1.bf16.msra.mxu0 0
  %4243 = vmatprep.subr.bf16.mxu0 0
  %4244 = vmatpush1.bf16.msra.mxu0 0
  %4245 = vmatprep.subr.bf16.mxu0 0
  %4246 = vmatpush1.bf16.msra.mxu0 0
  %4247 = vmatprep.mubr.bf16.mxu0 0
  %4248 = vmatmul.mubr.bf16.gmra.mrb[0].mxu0 %v4034
  %v4249 = vpop.f32.mrb[0].mxu0
  %v4250 = vadd.f32 %v4166, %v4249
  %v4251 = vpop.f32.mrb[0].mxu0
  %v4252 = vpop.f32.mrb[0].mxu0
  %v4253 = vpop.f32.mrb[0].mxu0
  %4254 = vdwg.mxu0
  %v4255 = vmul.f32 %v3691, 0.5
  %v4256 = vmul.f32 %v4255, 1.442695
  %v4257 = vpow.pop %v4256
  %v4258 = vmul.f32 %v43, %v4257
  %v4259 = vadd.f32 %v4258, %v3581
  %v4260 = vpack.c.bf16 %v4259, %v4259
  %v4261 = vmul.f32 %v4250, 0.5
  %v4262 = vmul.f32 %v4261, 1.442695
  %v4263 = vpow.pop %v4262
  %v4264 = vmul.f32 %v44, %v4263
  %v4265 = vadd.f32 %v4264, %v4140
  %v4266 = vpack.c.bf16 %v4265, %v4265
  %s4267 = scalar_lea.vmem %s3, 640
  %v4268 = vld [vmem:[%s4267] sm:$0xf]
  %v4269 = vld [vmem:[%s4267 + $0x4] sm:$0xf]
  %v4270 = vld [vmem:[%s4267 + $0x8] sm:$0xf]
  %v4271 = vld [vmem:[%s4267 + $0xc] sm:$0xf]
  %v4272 = vld [vmem:[%s4267 + $0x10] sm:$0xf]
  %v4273 = vld [vmem:[%s4267 + $0x14] sm:$0xf]
  %v4274 = vld [vmem:[%s4267 + $0x18] sm:$0xf]
  %v4275 = vld [vmem:[%s4267 + $0x1c] sm:$0xf]
  %v4276 = vld [vmem:[%s4267 + $0x20] sm:$0xf]
  %v4277 = vld [vmem:[%s4267 + $0x24] sm:$0xf]
  %v4278 = vld [vmem:[%s4267 + $0x28] sm:$0xf]
  %v4279 = vld [vmem:[%s4267 + $0x2c] sm:$0xf]
  %v4280 = vld [vmem:[%s4267 + $0x30] sm:$0xf]
  %v4281 = vld [vmem:[%s4267 + $0x34] sm:$0xf]
  %v4282 = vld [vmem:[%s4267 + $0x38] sm:$0xf]
  %v4283 = vld [vmem:[%s4267 + $0x3c] sm:$0xf]
  %v4284 = vld [vmem:[%s4 + $0xa] sm:$0x1]
  %v4285 = vlaneseq
  %v4286 = vshrl.u32 %v4285, 7
  %v4287 = vsub.s32 0, %v4286
  %v4288 = vrot.slane %v4284, %v4287
  %v4305 = vunpack.c.l.b16 %v4268
  %v4306 = vunpack.c.l.b16 %v4269
  %v4307 = vunpack.c.l.b16 %v4270
  %v4308 = vunpack.c.l.b16 %v4271
  %v4309 = vunpack.c.l.b16 %v4272
  %v4310 = vunpack.c.l.b16 %v4273
  %v4311 = vunpack.c.l.b16 %v4274
  %v4312 = vunpack.c.l.b16 %v4275
  %v4313 = vunpack.c.l.b16 %v4276
  %v4314 = vunpack.c.l.b16 %v4277
  %v4315 = vunpack.c.l.b16 %v4278
  %v4316 = vunpack.c.l.b16 %v4279
  %v4317 = vunpack.c.l.b16 %v4280
  %v4318 = vunpack.c.l.b16 %v4281
  %v4319 = vunpack.c.l.b16 %v4282
  %v4320 = vunpack.c.l.b16 %v4283
  %v4321 = vpack.c.b16 %v4306, %v4305
  %v4322 = vpack.c.b16 %v4308, %v4307
  %v4323 = vpack.c.b16 %v4310, %v4309
  %v4324 = vpack.c.b16 %v4312, %v4311
  %v4325 = vpack.c.b16 %v4314, %v4313
  %v4326 = vpack.c.b16 %v4316, %v4315
  %v4327 = vpack.c.b16 %v4318, %v4317
  %v4328 = vpack.c.b16 %v4320, %v4319
  %4337 = vmatprep.subr.bf16.mxu0 0
  %4338 = vmatpush1.bf16.msra.mxu0 %v4321
  %4339 = vmatprep.subr.bf16.mxu0 0
  %4340 = vmatpush1.bf16.msra.mxu0 %v4322
  %4341 = vmatprep.subr.bf16.mxu0 0
  %4342 = vmatpush1.bf16.msra.mxu0 %v4323
  %4343 = vmatprep.subr.bf16.mxu0 0
  %4344 = vmatpush1.bf16.msra.mxu0 %v4324
  %4345 = vmatprep.subr.bf16.mxu0 0
  %4346 = vmatpush1.bf16.msra.mxu0 %v4325
  %4347 = vmatprep.subr.bf16.mxu0 0
  %4348 = vmatpush1.bf16.msra.mxu0 %v4326
  %4349 = vmatprep.subr.bf16.mxu0 0
  %4350 = vmatpush1.bf16.msra.mxu0 %v4327
  %4351 = vmatprep.subr.bf16.mxu0 0
  %4352 = vmatpush1.bf16.msra.mxu0 %v4328
  %4353 = vmatprep.subr.bf16.mxu0 0
  %4354 = vmatpush1.bf16.msra.mxu0 0
  %4355 = vmatprep.subr.bf16.mxu0 0
  %4356 = vmatpush1.bf16.msra.mxu0 0
  %4357 = vmatprep.subr.bf16.mxu0 0
  %4358 = vmatpush1.bf16.msra.mxu0 0
  %4359 = vmatprep.subr.bf16.mxu0 0
  %4360 = vmatpush1.bf16.msra.mxu0 0
  %4361 = vmatprep.subr.bf16.mxu0 0
  %4362 = vmatpush1.bf16.msra.mxu0 0
  %4363 = vmatprep.subr.bf16.mxu0 0
  %4364 = vmatpush1.bf16.msra.mxu0 0
  %4365 = vmatprep.subr.bf16.mxu0 0
  %4366 = vmatpush1.bf16.msra.mxu0 0
  %4367 = vmatprep.subr.bf16.mxu0 0
  %4368 = vmatpush1.bf16.msra.mxu0 0
  %4369 = vmatprep.mubr.bf16.mxu0 0
  %4370 = vmatmul.mubr.bf16.gmra.mrb[0].mxu0 %v4260
  %v4371 = vpop.f32.mrb[0].mxu0
  %v4372 = vadd.f32 %v4288, %v4371
  %v4373 = vpop.f32.mrb[0].mxu0
  %v4374 = vpop.f32.mrb[0].mxu0
  %v4375 = vpop.f32.mrb[0].mxu0
  %4376 = vdwg.mxu0
  %v4377 = vmul.f32 %v4372, 0.1
  %v4378 = vmax.f32 %v4372, %v4377
  %v4379 = vpack.c.bf16 %v4378, %v4378
  %s4380 = scalar_lea.vmem %s3, 704
  %v4381 = vld [vmem:[%s4380] sm:$0xf]
  %v4382 = vld [vmem:[%s4380 + $0x4] sm:$0xf]
  %v4383 = vld [vmem:[%s4380 + $0x8] sm:$0xf]
  %v4384 = vld [vmem:[%s4380 + $0xc] sm:$0xf]
  %v4385 = vld [vmem:[%s4380 + $0x10] sm:$0xf]
  %v4386 = vld [vmem:[%s4380 + $0x14] sm:$0xf]
  %v4387 = vld [vmem:[%s4380 + $0x18] sm:$0xf]
  %v4388 = vld [vmem:[%s4380 + $0x1c] sm:$0xf]
  %v4389 = vld [vmem:[%s4380 + $0x20] sm:$0xf]
  %v4390 = vld [vmem:[%s4380 + $0x24] sm:$0xf]
  %v4391 = vld [vmem:[%s4380 + $0x28] sm:$0xf]
  %v4392 = vld [vmem:[%s4380 + $0x2c] sm:$0xf]
  %v4393 = vld [vmem:[%s4380 + $0x30] sm:$0xf]
  %v4394 = vld [vmem:[%s4380 + $0x34] sm:$0xf]
  %v4395 = vld [vmem:[%s4380 + $0x38] sm:$0xf]
  %v4396 = vld [vmem:[%s4380 + $0x3c] sm:$0xf]
  %v4397 = vld [vmem:[%s4 + $0xb] sm:$0x1]
  %v4398 = vlaneseq
  %v4399 = vshrl.u32 %v4398, 7
  %v4400 = vsub.s32 0, %v4399
  %v4401 = vrot.slane %v4397, %v4400
  %v4418 = vunpack.c.l.b16 %v4381
  %v4419 = vunpack.c.l.b16 %v4382
  %v4420 = vunpack.c.l.b16 %v4383
  %v4421 = vunpack.c.l.b16 %v4384
  %v4422 = vunpack.c.l.b16 %v4385
  %v4423 = vunpack.c.l.b16 %v4386
  %v4424 = vunpack.c.l.b16 %v4387
  %v4425 = vunpack.c.l.b16 %v4388
  %v4426 = vunpack.c.l.b16 %v4389
  %v4427 = vunpack.c.l.b16 %v4390
  %v4428 = vunpack.c.l.b16 %v4391
  %v4429 = vunpack.c.l.b16 %v4392
  %v4430 = vunpack.c.l.b16 %v4393
  %v4431 = vunpack.c.l.b16 %v4394
  %v4432 = vunpack.c.l.b16 %v4395
  %v4433 = vunpack.c.l.b16 %v4396
  %v4434 = vpack.c.b16 %v4419, %v4418
  %v4435 = vpack.c.b16 %v4421, %v4420
  %v4436 = vpack.c.b16 %v4423, %v4422
  %v4437 = vpack.c.b16 %v4425, %v4424
  %v4438 = vpack.c.b16 %v4427, %v4426
  %v4439 = vpack.c.b16 %v4429, %v4428
  %v4440 = vpack.c.b16 %v4431, %v4430
  %v4441 = vpack.c.b16 %v4433, %v4432
  %4450 = vmatprep.subr.bf16.mxu0 0
  %4451 = vmatpush1.bf16.msra.mxu0 %v4434
  %4452 = vmatprep.subr.bf16.mxu0 0
  %4453 = vmatpush1.bf16.msra.mxu0 %v4435
  %4454 = vmatprep.subr.bf16.mxu0 0
  %4455 = vmatpush1.bf16.msra.mxu0 %v4436
  %4456 = vmatprep.subr.bf16.mxu0 0
  %4457 = vmatpush1.bf16.msra.mxu0 %v4437
  %4458 = vmatprep.subr.bf16.mxu0 0
  %4459 = vmatpush1.bf16.msra.mxu0 %v4438
  %4460 = vmatprep.subr.bf16.mxu0 0
  %4461 = vmatpush1.bf16.msra.mxu0 %v4439
  %4462 = vmatprep.subr.bf16.mxu0 0
  %4463 = vmatpush1.bf16.msra.mxu0 %v4440
  %4464 = vmatprep.subr.bf16.mxu0 0
  %4465 = vmatpush1.bf16.msra.mxu0 %v4441
  %4466 = vmatprep.subr.bf16.mxu0 0
  %4467 = vmatpush1.bf16.msra.mxu0 0
  %4468 = vmatprep.subr.bf16.mxu0 0
  %4469 = vmatpush1.bf16.msra.mxu0 0
  %4470 = vmatprep.subr.bf16.mxu0 0
  %4471 = vmatpush1.bf16.msra.mxu0 0
  %4472 = vmatprep.subr.bf16.mxu0 0
  %4473 = vmatpush1.bf16.msra.mxu0 0
  %4474 = vmatprep.subr.bf16.mxu0 0
  %4475 = vmatpush1.bf16.msra.mxu0 0
  %4476 = vmatprep.subr.bf16.mxu0 0
  %4477 = vmatpush1.bf16.msra.mxu0 0
  %4478 = vmatprep.subr.bf16.mxu0 0
  %4479 = vmatpush1.bf16.msra.mxu0 0
  %4480 = vmatprep.subr.bf16.mxu0 0
  %4481 = vmatpush1.bf16.msra.mxu0 0
  %4482 = vmatprep.mubr.bf16.mxu0 0
  %4483 = vmatmul.mubr.bf16.gmra.mrb[0].mxu0 %v4379
  %v4484 = vpop.f32.mrb[0].mxu0
  %v4485 = vadd.f32 %v4401, %v4484
  %v4486 = vpop.f32.mrb[0].mxu0
  %v4487 = vpop.f32.mrb[0].mxu0
  %v4488 = vpop.f32.mrb[0].mxu0
  %4489 = vdwg.mxu0
  %v4490 = vmul.f32 %v4485, 0.1
  %v4491 = vmax.f32 %v4485, %v4490
  %v4492 = vpack.c.bf16 %v4491, %v4491
  %s4493 = scalar_lea.vmem %s3, 768
  %v4494 = vld [vmem:[%s4493] sm:$0xf]
  %v4495 = vld [vmem:[%s4493 + $0x4] sm:$0xf]
  %v4496 = vld [vmem:[%s4493 + $0x8] sm:$0xf]
  %v4497 = vld [vmem:[%s4493 + $0xc] sm:$0xf]
  %v4498 = vld [vmem:[%s4493 + $0x10] sm:$0xf]
  %v4499 = vld [vmem:[%s4493 + $0x14] sm:$0xf]
  %v4500 = vld [vmem:[%s4493 + $0x18] sm:$0xf]
  %v4501 = vld [vmem:[%s4493 + $0x1c] sm:$0xf]
  %v4502 = vld [vmem:[%s4493 + $0x20] sm:$0xf]
  %v4503 = vld [vmem:[%s4493 + $0x24] sm:$0xf]
  %v4504 = vld [vmem:[%s4493 + $0x28] sm:$0xf]
  %v4505 = vld [vmem:[%s4493 + $0x2c] sm:$0xf]
  %v4506 = vld [vmem:[%s4493 + $0x30] sm:$0xf]
  %v4507 = vld [vmem:[%s4493 + $0x34] sm:$0xf]
  %v4508 = vld [vmem:[%s4493 + $0x38] sm:$0xf]
  %v4509 = vld [vmem:[%s4493 + $0x3c] sm:$0xf]
  %v4510 = vld [vmem:[%s4 + $0xc] sm:$0x1]
  %v4511 = vlaneseq
  %v4512 = vshrl.u32 %v4511, 7
  %v4513 = vsub.s32 0, %v4512
  %v4514 = vrot.slane %v4510, %v4513
  %v4531 = vunpack.c.l.b16 %v4494
  %v4532 = vunpack.c.l.b16 %v4495
  %v4533 = vunpack.c.l.b16 %v4496
  %v4534 = vunpack.c.l.b16 %v4497
  %v4535 = vunpack.c.l.b16 %v4498
  %v4536 = vunpack.c.l.b16 %v4499
  %v4537 = vunpack.c.l.b16 %v4500
  %v4538 = vunpack.c.l.b16 %v4501
  %v4539 = vunpack.c.l.b16 %v4502
  %v4540 = vunpack.c.l.b16 %v4503
  %v4541 = vunpack.c.l.b16 %v4504
  %v4542 = vunpack.c.l.b16 %v4505
  %v4543 = vunpack.c.l.b16 %v4506
  %v4544 = vunpack.c.l.b16 %v4507
  %v4545 = vunpack.c.l.b16 %v4508
  %v4546 = vunpack.c.l.b16 %v4509
  %v4547 = vpack.c.b16 %v4532, %v4531
  %v4548 = vpack.c.b16 %v4534, %v4533
  %v4549 = vpack.c.b16 %v4536, %v4535
  %v4550 = vpack.c.b16 %v4538, %v4537
  %v4551 = vpack.c.b16 %v4540, %v4539
  %v4552 = vpack.c.b16 %v4542, %v4541
  %v4553 = vpack.c.b16 %v4544, %v4543
  %v4554 = vpack.c.b16 %v4546, %v4545
  %4563 = vmatprep.subr.bf16.mxu0 0
  %4564 = vmatpush1.bf16.msra.mxu0 %v4547
  %4565 = vmatprep.subr.bf16.mxu0 0
  %4566 = vmatpush1.bf16.msra.mxu0 %v4548
  %4567 = vmatprep.subr.bf16.mxu0 0
  %4568 = vmatpush1.bf16.msra.mxu0 %v4549
  %4569 = vmatprep.subr.bf16.mxu0 0
  %4570 = vmatpush1.bf16.msra.mxu0 %v4550
  %4571 = vmatprep.subr.bf16.mxu0 0
  %4572 = vmatpush1.bf16.msra.mxu0 %v4551
  %4573 = vmatprep.subr.bf16.mxu0 0
  %4574 = vmatpush1.bf16.msra.mxu0 %v4552
  %4575 = vmatprep.subr.bf16.mxu0 0
  %4576 = vmatpush1.bf16.msra.mxu0 %v4553
  %4577 = vmatprep.subr.bf16.mxu0 0
  %4578 = vmatpush1.bf16.msra.mxu0 %v4554
  %4579 = vmatprep.subr.bf16.mxu0 0
  %4580 = vmatpush1.bf16.msra.mxu0 0
  %4581 = vmatprep.subr.bf16.mxu0 0
  %4582 = vmatpush1.bf16.msra.mxu0 0
  %4583 = vmatprep.subr.bf16.mxu0 0
  %4584 = vmatpush1.bf16.msra.mxu0 0
  %4585 = vmatprep.subr.bf16.mxu0 0
  %4586 = vmatpush1.bf16.msra.mxu0 0
  %4587 = vmatprep.subr.bf16.mxu0 0
  %4588 = vmatpush1.bf16.msra.mxu0 0
  %4589 = vmatprep.subr.bf16.mxu0 0
  %4590 = vmatpush1.bf16.msra.mxu0 0
  %4591 = vmatprep.subr.bf16.mxu0 0
  %4592 = vmatpush1.bf16.msra.mxu0 0
  %4593 = vmatprep.subr.bf16.mxu0 0
  %4594 = vmatpush1.bf16.msra.mxu0 0
  %4595 = vmatprep.mubr.bf16.mxu0 0
  %4596 = vmatmul.mubr.bf16.gmra.mrb[0].mxu0 %v4492
  %v4597 = vpop.f32.mrb[0].mxu0
  %v4598 = vadd.f32 %v4514, %v4597
  %v4599 = vpop.f32.mrb[0].mxu0
  %v4600 = vpop.f32.mrb[0].mxu0
  %v4601 = vpop.f32.mrb[0].mxu0
  %4602 = vdwg.mxu0
  %v4603 = vmul.f32 %v4598, 0.1
  %v4604 = vmax.f32 %v4598, %v4603
  %v4605 = vpack.c.bf16 %v4604, %v4604
  %s4606 = scalar_lea.vmem %s3, 832
  %v4607 = vld [vmem:[%s4606] sm:$0xf]
  %v4608 = vld [vmem:[%s4606 + $0x4] sm:$0xf]
  %v4609 = vld [vmem:[%s4606 + $0x8] sm:$0xf]
  %v4610 = vld [vmem:[%s4606 + $0xc] sm:$0xf]
  %v4611 = vld [vmem:[%s4606 + $0x10] sm:$0xf]
  %v4612 = vld [vmem:[%s4606 + $0x14] sm:$0xf]
  %v4613 = vld [vmem:[%s4606 + $0x18] sm:$0xf]
  %v4614 = vld [vmem:[%s4606 + $0x1c] sm:$0xf]
  %v4615 = vld [vmem:[%s4606 + $0x20] sm:$0xf]
  %v4616 = vld [vmem:[%s4606 + $0x24] sm:$0xf]
  %v4617 = vld [vmem:[%s4606 + $0x28] sm:$0xf]
  %v4618 = vld [vmem:[%s4606 + $0x2c] sm:$0xf]
  %v4619 = vld [vmem:[%s4606 + $0x30] sm:$0xf]
  %v4620 = vld [vmem:[%s4606 + $0x34] sm:$0xf]
  %v4621 = vld [vmem:[%s4606 + $0x38] sm:$0xf]
  %v4622 = vld [vmem:[%s4606 + $0x3c] sm:$0xf]
  %v4623 = vld [vmem:[%s4 + $0xd] sm:$0x1]
  %v4624 = vlaneseq
  %v4625 = vshrl.u32 %v4624, 7
  %v4626 = vsub.s32 0, %v4625
  %v4627 = vrot.slane %v4623, %v4626
  %v4644 = vunpack.c.l.b16 %v4607
  %v4645 = vunpack.c.l.b16 %v4608
  %v4646 = vunpack.c.l.b16 %v4609
  %v4647 = vunpack.c.l.b16 %v4610
  %v4648 = vunpack.c.l.b16 %v4611
  %v4649 = vunpack.c.l.b16 %v4612
  %v4650 = vunpack.c.l.b16 %v4613
  %v4651 = vunpack.c.l.b16 %v4614
  %v4652 = vunpack.c.l.b16 %v4615
  %v4653 = vunpack.c.l.b16 %v4616
  %v4654 = vunpack.c.l.b16 %v4617
  %v4655 = vunpack.c.l.b16 %v4618
  %v4656 = vunpack.c.l.b16 %v4619
  %v4657 = vunpack.c.l.b16 %v4620
  %v4658 = vunpack.c.l.b16 %v4621
  %v4659 = vunpack.c.l.b16 %v4622
  %v4660 = vpack.c.b16 %v4645, %v4644
  %v4661 = vpack.c.b16 %v4647, %v4646
  %v4662 = vpack.c.b16 %v4649, %v4648
  %v4663 = vpack.c.b16 %v4651, %v4650
  %v4664 = vpack.c.b16 %v4653, %v4652
  %v4665 = vpack.c.b16 %v4655, %v4654
  %v4666 = vpack.c.b16 %v4657, %v4656
  %v4667 = vpack.c.b16 %v4659, %v4658
  %4676 = vmatprep.subr.bf16.mxu0 0
  %4677 = vmatpush1.bf16.msra.mxu0 %v4660
  %4678 = vmatprep.subr.bf16.mxu0 0
  %4679 = vmatpush1.bf16.msra.mxu0 %v4661
  %4680 = vmatprep.subr.bf16.mxu0 0
  %4681 = vmatpush1.bf16.msra.mxu0 %v4662
  %4682 = vmatprep.subr.bf16.mxu0 0
  %4683 = vmatpush1.bf16.msra.mxu0 %v4663
  %4684 = vmatprep.subr.bf16.mxu0 0
  %4685 = vmatpush1.bf16.msra.mxu0 %v4664
  %4686 = vmatprep.subr.bf16.mxu0 0
  %4687 = vmatpush1.bf16.msra.mxu0 %v4665
  %4688 = vmatprep.subr.bf16.mxu0 0
  %4689 = vmatpush1.bf16.msra.mxu0 %v4666
  %4690 = vmatprep.subr.bf16.mxu0 0
  %4691 = vmatpush1.bf16.msra.mxu0 %v4667
  %4692 = vmatprep.subr.bf16.mxu0 0
  %4693 = vmatpush1.bf16.msra.mxu0 0
  %4694 = vmatprep.subr.bf16.mxu0 0
  %4695 = vmatpush1.bf16.msra.mxu0 0
  %4696 = vmatprep.subr.bf16.mxu0 0
  %4697 = vmatpush1.bf16.msra.mxu0 0
  %4698 = vmatprep.subr.bf16.mxu0 0
  %4699 = vmatpush1.bf16.msra.mxu0 0
  %4700 = vmatprep.subr.bf16.mxu0 0
  %4701 = vmatpush1.bf16.msra.mxu0 0
  %4702 = vmatprep.subr.bf16.mxu0 0
  %4703 = vmatpush1.bf16.msra.mxu0 0
  %4704 = vmatprep.subr.bf16.mxu0 0
  %4705 = vmatpush1.bf16.msra.mxu0 0
  %4706 = vmatprep.subr.bf16.mxu0 0
  %4707 = vmatpush1.bf16.msra.mxu0 0
  %4708 = vmatprep.mubr.bf16.mxu0 0
  %4709 = vmatmul.mubr.bf16.gmra.mrb[0].mxu0 %v4605
  %v4710 = vpop.f32.mrb[0].mxu0
  %v4711 = vadd.f32 %v4627, %v4710
  %v4712 = vpop.f32.mrb[0].mxu0
  %v4713 = vpop.f32.mrb[0].mxu0
  %v4714 = vpop.f32.mrb[0].mxu0
  %4715 = vdwg.mxu0
  %4716 = vmatprep.subr.bf16.mxu0 0
  %4717 = vmatpush1.bf16.msra.mxu0 %v4321
  %4718 = vmatprep.subr.bf16.mxu0 0
  %4719 = vmatpush1.bf16.msra.mxu0 %v4322
  %4720 = vmatprep.subr.bf16.mxu0 0
  %4721 = vmatpush1.bf16.msra.mxu0 %v4323
  %4722 = vmatprep.subr.bf16.mxu0 0
  %4723 = vmatpush1.bf16.msra.mxu0 %v4324
  %4724 = vmatprep.subr.bf16.mxu0 0
  %4725 = vmatpush1.bf16.msra.mxu0 %v4325
  %4726 = vmatprep.subr.bf16.mxu0 0
  %4727 = vmatpush1.bf16.msra.mxu0 %v4326
  %4728 = vmatprep.subr.bf16.mxu0 0
  %4729 = vmatpush1.bf16.msra.mxu0 %v4327
  %4730 = vmatprep.subr.bf16.mxu0 0
  %4731 = vmatpush1.bf16.msra.mxu0 %v4328
  %4732 = vmatprep.subr.bf16.mxu0 0
  %4733 = vmatpush1.bf16.msra.mxu0 0
  %4734 = vmatprep.subr.bf16.mxu0 0
  %4735 = vmatpush1.bf16.msra.mxu0 0
  %4736 = vmatprep.subr.bf16.mxu0 0
  %4737 = vmatpush1.bf16.msra.mxu0 0
  %4738 = vmatprep.subr.bf16.mxu0 0
  %4739 = vmatpush1.bf16.msra.mxu0 0
  %4740 = vmatprep.subr.bf16.mxu0 0
  %4741 = vmatpush1.bf16.msra.mxu0 0
  %4742 = vmatprep.subr.bf16.mxu0 0
  %4743 = vmatpush1.bf16.msra.mxu0 0
  %4744 = vmatprep.subr.bf16.mxu0 0
  %4745 = vmatpush1.bf16.msra.mxu0 0
  %4746 = vmatprep.subr.bf16.mxu0 0
  %4747 = vmatpush1.bf16.msra.mxu0 0
  %4748 = vmatprep.mubr.bf16.mxu0 0
  %4749 = vmatmul.mubr.bf16.gmra.mrb[0].mxu0 %v4266
  %v4750 = vpop.f32.mrb[0].mxu0
  %v4751 = vadd.f32 %v4288, %v4750
  %v4752 = vpop.f32.mrb[0].mxu0
  %v4753 = vpop.f32.mrb[0].mxu0
  %v4754 = vpop.f32.mrb[0].mxu0
  %4755 = vdwg.mxu0
  %v4756 = vmul.f32 %v4751, 0.1
  %v4757 = vmax.f32 %v4751, %v4756
  %v4758 = vpack.c.bf16 %v4757, %v4757
  %4759 = vmatprep.subr.bf16.mxu0 0
  %4760 = vmatpush1.bf16.msra.mxu0 %v4434
  %4761 = vmatprep.subr.bf16.mxu0 0
  %4762 = vmatpush1.bf16.msra.mxu0 %v4435
  %4763 = vmatprep.subr.bf16.mxu0 0
  %4764 = vmatpush1.bf16.msra.mxu0 %v4436
  %4765 = vmatprep.subr.bf16.mxu0 0
  %4766 = vmatpush1.bf16.msra.mxu0 %v4437
  %4767 = vmatprep.subr.bf16.mxu0 0
  %4768 = vmatpush1.bf16.msra.mxu0 %v4438
  %4769 = vmatprep.subr.bf16.mxu0 0
  %4770 = vmatpush1.bf16.msra.mxu0 %v4439
  %4771 = vmatprep.subr.bf16.mxu0 0
  %4772 = vmatpush1.bf16.msra.mxu0 %v4440
  %4773 = vmatprep.subr.bf16.mxu0 0
  %4774 = vmatpush1.bf16.msra.mxu0 %v4441
  %4775 = vmatprep.subr.bf16.mxu0 0
  %4776 = vmatpush1.bf16.msra.mxu0 0
  %4777 = vmatprep.subr.bf16.mxu0 0
  %4778 = vmatpush1.bf16.msra.mxu0 0
  %4779 = vmatprep.subr.bf16.mxu0 0
  %4780 = vmatpush1.bf16.msra.mxu0 0
  %4781 = vmatprep.subr.bf16.mxu0 0
  %4782 = vmatpush1.bf16.msra.mxu0 0
  %4783 = vmatprep.subr.bf16.mxu0 0
  %4784 = vmatpush1.bf16.msra.mxu0 0
  %4785 = vmatprep.subr.bf16.mxu0 0
  %4786 = vmatpush1.bf16.msra.mxu0 0
  %4787 = vmatprep.subr.bf16.mxu0 0
  %4788 = vmatpush1.bf16.msra.mxu0 0
  %4789 = vmatprep.subr.bf16.mxu0 0
  %4790 = vmatpush1.bf16.msra.mxu0 0
  %4791 = vmatprep.mubr.bf16.mxu0 0
  %4792 = vmatmul.mubr.bf16.gmra.mrb[0].mxu0 %v4758
  %v4793 = vpop.f32.mrb[0].mxu0
  %v4794 = vadd.f32 %v4401, %v4793
  %v4795 = vpop.f32.mrb[0].mxu0
  %v4796 = vpop.f32.mrb[0].mxu0
  %v4797 = vpop.f32.mrb[0].mxu0
  %4798 = vdwg.mxu0
  %v4799 = vmul.f32 %v4794, 0.1
  %v4800 = vmax.f32 %v4794, %v4799
  %v4801 = vpack.c.bf16 %v4800, %v4800
  %4802 = vmatprep.subr.bf16.mxu0 0
  %4803 = vmatpush1.bf16.msra.mxu0 %v4547
  %4804 = vmatprep.subr.bf16.mxu0 0
  %4805 = vmatpush1.bf16.msra.mxu0 %v4548
  %4806 = vmatprep.subr.bf16.mxu0 0
  %4807 = vmatpush1.bf16.msra.mxu0 %v4549
  %4808 = vmatprep.subr.bf16.mxu0 0
  %4809 = vmatpush1.bf16.msra.mxu0 %v4550
  %4810 = vmatprep.subr.bf16.mxu0 0
  %4811 = vmatpush1.bf16.msra.mxu0 %v4551
  %4812 = vmatprep.subr.bf16.mxu0 0
  %4813 = vmatpush1.bf16.msra.mxu0 %v4552
  %4814 = vmatprep.subr.bf16.mxu0 0
  %4815 = vmatpush1.bf16.msra.mxu0 %v4553
  %4816 = vmatprep.subr.bf16.mxu0 0
  %4817 = vmatpush1.bf16.msra.mxu0 %v4554
  %4818 = vmatprep.subr.bf16.mxu0 0
  %4819 = vmatpush1.bf16.msra.mxu0 0
  %4820 = vmatprep.subr.bf16.mxu0 0
  %4821 = vmatpush1.bf16.msra.mxu0 0
  %4822 = vmatprep.subr.bf16.mxu0 0
  %4823 = vmatpush1.bf16.msra.mxu0 0
  %4824 = vmatprep.subr.bf16.mxu0 0
  %4825 = vmatpush1.bf16.msra.mxu0 0
  %4826 = vmatprep.subr.bf16.mxu0 0
  %4827 = vmatpush1.bf16.msra.mxu0 0
  %4828 = vmatprep.subr.bf16.mxu0 0
  %4829 = vmatpush1.bf16.msra.mxu0 0
  %4830 = vmatprep.subr.bf16.mxu0 0
  %4831 = vmatpush1.bf16.msra.mxu0 0
  %4832 = vmatprep.subr.bf16.mxu0 0
  %4833 = vmatpush1.bf16.msra.mxu0 0
  %4834 = vmatprep.mubr.bf16.mxu0 0
  %4835 = vmatmul.mubr.bf16.gmra.mrb[0].mxu0 %v4801
  %v4836 = vpop.f32.mrb[0].mxu0
  %v4837 = vadd.f32 %v4514, %v4836
  %v4838 = vpop.f32.mrb[0].mxu0
  %v4839 = vpop.f32.mrb[0].mxu0
  %v4840 = vpop.f32.mrb[0].mxu0
  %4841 = vdwg.mxu0
  %v4842 = vmul.f32 %v4837, 0.1
  %v4843 = vmax.f32 %v4837, %v4842
  %v4844 = vpack.c.bf16 %v4843, %v4843
  %4845 = vmatprep.subr.bf16.mxu0 0
  %4846 = vmatpush1.bf16.msra.mxu0 %v4660
  %4847 = vmatprep.subr.bf16.mxu0 0
  %4848 = vmatpush1.bf16.msra.mxu0 %v4661
  %4849 = vmatprep.subr.bf16.mxu0 0
  %4850 = vmatpush1.bf16.msra.mxu0 %v4662
  %4851 = vmatprep.subr.bf16.mxu0 0
  %4852 = vmatpush1.bf16.msra.mxu0 %v4663
  %4853 = vmatprep.subr.bf16.mxu0 0
  %4854 = vmatpush1.bf16.msra.mxu0 %v4664
  %4855 = vmatprep.subr.bf16.mxu0 0
  %4856 = vmatpush1.bf16.msra.mxu0 %v4665
  %4857 = vmatprep.subr.bf16.mxu0 0
  %4858 = vmatpush1.bf16.msra.mxu0 %v4666
  %4859 = vmatprep.subr.bf16.mxu0 0
  %4860 = vmatpush1.bf16.msra.mxu0 %v4667
  %4861 = vmatprep.subr.bf16.mxu0 0
  %4862 = vmatpush1.bf16.msra.mxu0 0
  %4863 = vmatprep.subr.bf16.mxu0 0
  %4864 = vmatpush1.bf16.msra.mxu0 0
  %4865 = vmatprep.subr.bf16.mxu0 0
  %4866 = vmatpush1.bf16.msra.mxu0 0
  %4867 = vmatprep.subr.bf16.mxu0 0
  %4868 = vmatpush1.bf16.msra.mxu0 0
  %4869 = vmatprep.subr.bf16.mxu0 0
  %4870 = vmatpush1.bf16.msra.mxu0 0
  %4871 = vmatprep.subr.bf16.mxu0 0
  %4872 = vmatpush1.bf16.msra.mxu0 0
  %4873 = vmatprep.subr.bf16.mxu0 0
  %4874 = vmatpush1.bf16.msra.mxu0 0
  %4875 = vmatprep.subr.bf16.mxu0 0
  %4876 = vmatpush1.bf16.msra.mxu0 0
  %4877 = vmatprep.mubr.bf16.mxu0 0
  %4878 = vmatmul.mubr.bf16.gmra.mrb[0].mxu0 %v4844
  %v4879 = vpop.f32.mrb[0].mxu0
  %v4880 = vadd.f32 %v4627, %v4879
  %v4881 = vpop.f32.mrb[0].mxu0
  %v4882 = vpop.f32.mrb[0].mxu0
  %v4883 = vpop.f32.mrb[0].mxu0
  %4884 = vdwg.mxu0
  %s4885 = scalar_lea.vmem %s3, 960
  %v4886 = vld [vmem:[%s4885] sm:$0xf]
  %v4887 = vld [vmem:[%s4885 + $0x4] sm:$0xf]
  %v4888 = vld [vmem:[%s4885 + $0x8] sm:$0xf]
  %v4889 = vld [vmem:[%s4885 + $0xc] sm:$0xf]
  %v4890 = vld [vmem:[%s4885 + $0x10] sm:$0xf]
  %v4891 = vld [vmem:[%s4885 + $0x14] sm:$0xf]
  %v4892 = vld [vmem:[%s4885 + $0x18] sm:$0xf]
  %v4893 = vld [vmem:[%s4885 + $0x1c] sm:$0xf]
  %v4894 = vld [vmem:[%s4885 + $0x20] sm:$0xf]
  %v4895 = vld [vmem:[%s4885 + $0x24] sm:$0xf]
  %v4896 = vld [vmem:[%s4885 + $0x28] sm:$0xf]
  %v4897 = vld [vmem:[%s4885 + $0x2c] sm:$0xf]
  %v4898 = vld [vmem:[%s4885 + $0x30] sm:$0xf]
  %v4899 = vld [vmem:[%s4885 + $0x34] sm:$0xf]
  %v4900 = vld [vmem:[%s4885 + $0x38] sm:$0xf]
  %v4901 = vld [vmem:[%s4885 + $0x3c] sm:$0xf]
  %v4918 = vunpack.c.l.b16 %v4886
  %v4919 = vunpack.c.l.b16 %v4887
  %v4920 = vunpack.c.l.b16 %v4888
  %v4921 = vunpack.c.l.b16 %v4889
  %v4922 = vunpack.c.l.b16 %v4890
  %v4923 = vunpack.c.l.b16 %v4891
  %v4924 = vunpack.c.l.b16 %v4892
  %v4925 = vunpack.c.l.b16 %v4893
  %v4926 = vunpack.c.l.b16 %v4894
  %v4927 = vunpack.c.l.b16 %v4895
  %v4928 = vunpack.c.l.b16 %v4896
  %v4929 = vunpack.c.l.b16 %v4897
  %v4930 = vunpack.c.l.b16 %v4898
  %v4931 = vunpack.c.l.b16 %v4899
  %v4932 = vunpack.c.l.b16 %v4900
  %v4933 = vunpack.c.l.b16 %v4901
  %v4934 = vpack.c.b16 %v4919, %v4918
  %v4935 = vpack.c.b16 %v4921, %v4920
  %v4936 = vpack.c.b16 %v4923, %v4922
  %v4937 = vpack.c.b16 %v4925, %v4924
  %v4938 = vpack.c.b16 %v4927, %v4926
  %v4939 = vpack.c.b16 %v4929, %v4928
  %v4940 = vpack.c.b16 %v4931, %v4930
  %v4941 = vpack.c.b16 %v4933, %v4932
  %4950 = vmatprep.subr.bf16.mxu0 0
  %4951 = vmatpush1.bf16.msra.mxu0 %v4934
  %4952 = vmatprep.subr.bf16.mxu0 0
  %4953 = vmatpush1.bf16.msra.mxu0 %v4935
  %4954 = vmatprep.subr.bf16.mxu0 0
  %4955 = vmatpush1.bf16.msra.mxu0 %v4936
  %4956 = vmatprep.subr.bf16.mxu0 0
  %4957 = vmatpush1.bf16.msra.mxu0 %v4937
  %4958 = vmatprep.subr.bf16.mxu0 0
  %4959 = vmatpush1.bf16.msra.mxu0 %v4938
  %4960 = vmatprep.subr.bf16.mxu0 0
  %4961 = vmatpush1.bf16.msra.mxu0 %v4939
  %4962 = vmatprep.subr.bf16.mxu0 0
  %4963 = vmatpush1.bf16.msra.mxu0 %v4940
  %4964 = vmatprep.subr.bf16.mxu0 0
  %4965 = vmatpush1.bf16.msra.mxu0 %v4941
  %4966 = vmatprep.subr.bf16.mxu0 0
  %4967 = vmatpush1.bf16.msra.mxu0 0
  %4968 = vmatprep.subr.bf16.mxu0 0
  %4969 = vmatpush1.bf16.msra.mxu0 0
  %4970 = vmatprep.subr.bf16.mxu0 0
  %4971 = vmatpush1.bf16.msra.mxu0 0
  %4972 = vmatprep.subr.bf16.mxu0 0
  %4973 = vmatpush1.bf16.msra.mxu0 0
  %4974 = vmatprep.subr.bf16.mxu0 0
  %4975 = vmatpush1.bf16.msra.mxu0 0
  %4976 = vmatprep.subr.bf16.mxu0 0
  %4977 = vmatpush1.bf16.msra.mxu0 0
  %4978 = vmatprep.subr.bf16.mxu0 0
  %4979 = vmatpush1.bf16.msra.mxu0 0
  %4980 = vmatprep.subr.bf16.mxu0 0
  %4981 = vmatpush1.bf16.msra.mxu0 0
  %4982 = vmatprep.mubr.bf16.mxu0 0
  %4983 = vmatmul.mubr.bf16.gmra.mrb[0].mxu0 %v3137
  %v4984 = vpop.f32.mrb[0].mxu0
  %v4985 = vadd.f32 0.0, %v4984
  %v4986 = vpop.f32.mrb[0].mxu0
  %v4987 = vpop.f32.mrb[0].mxu0
  %v4988 = vpop.f32.mrb[0].mxu0
  %4989 = vdwg.mxu0
  %s4990 = scalar_lea.vmem %s3, 896
  %v4991 = vld [vmem:[%s4990] sm:$0xf]
  %v4992 = vld [vmem:[%s4990 + $0x4] sm:$0xf]
  %v4993 = vld [vmem:[%s4990 + $0x8] sm:$0xf]
  %v4994 = vld [vmem:[%s4990 + $0xc] sm:$0xf]
  %v4995 = vld [vmem:[%s4990 + $0x10] sm:$0xf]
  %v4996 = vld [vmem:[%s4990 + $0x14] sm:$0xf]
  %v4997 = vld [vmem:[%s4990 + $0x18] sm:$0xf]
  %v4998 = vld [vmem:[%s4990 + $0x1c] sm:$0xf]
  %v4999 = vld [vmem:[%s4990 + $0x20] sm:$0xf]
  %v5000 = vld [vmem:[%s4990 + $0x24] sm:$0xf]
  %v5001 = vld [vmem:[%s4990 + $0x28] sm:$0xf]
  %v5002 = vld [vmem:[%s4990 + $0x2c] sm:$0xf]
  %v5003 = vld [vmem:[%s4990 + $0x30] sm:$0xf]
  %v5004 = vld [vmem:[%s4990 + $0x34] sm:$0xf]
  %v5005 = vld [vmem:[%s4990 + $0x38] sm:$0xf]
  %v5006 = vld [vmem:[%s4990 + $0x3c] sm:$0xf]
  %v5023 = vunpack.c.l.b16 %v4991
  %v5024 = vunpack.c.l.b16 %v4992
  %v5025 = vunpack.c.l.b16 %v4993
  %v5026 = vunpack.c.l.b16 %v4994
  %v5027 = vunpack.c.l.b16 %v4995
  %v5028 = vunpack.c.l.b16 %v4996
  %v5029 = vunpack.c.l.b16 %v4997
  %v5030 = vunpack.c.l.b16 %v4998
  %v5031 = vunpack.c.l.b16 %v4999
  %v5032 = vunpack.c.l.b16 %v5000
  %v5033 = vunpack.c.l.b16 %v5001
  %v5034 = vunpack.c.l.b16 %v5002
  %v5035 = vunpack.c.l.b16 %v5003
  %v5036 = vunpack.c.l.b16 %v5004
  %v5037 = vunpack.c.l.b16 %v5005
  %v5038 = vunpack.c.l.b16 %v5006
  %v5039 = vpack.c.b16 %v5024, %v5023
  %v5040 = vpack.c.b16 %v5026, %v5025
  %v5041 = vpack.c.b16 %v5028, %v5027
  %v5042 = vpack.c.b16 %v5030, %v5029
  %v5043 = vpack.c.b16 %v5032, %v5031
  %v5044 = vpack.c.b16 %v5034, %v5033
  %v5045 = vpack.c.b16 %v5036, %v5035
  %v5046 = vpack.c.b16 %v5038, %v5037
  %5055 = vmatprep.subr.bf16.mxu0 0
  %5056 = vmatpush1.bf16.msra.mxu0 %v5039
  %5057 = vmatprep.subr.bf16.mxu0 0
  %5058 = vmatpush1.bf16.msra.mxu0 %v5040
  %5059 = vmatprep.subr.bf16.mxu0 0
  %5060 = vmatpush1.bf16.msra.mxu0 %v5041
  %5061 = vmatprep.subr.bf16.mxu0 0
  %5062 = vmatpush1.bf16.msra.mxu0 %v5042
  %5063 = vmatprep.subr.bf16.mxu0 0
  %5064 = vmatpush1.bf16.msra.mxu0 %v5043
  %5065 = vmatprep.subr.bf16.mxu0 0
  %5066 = vmatpush1.bf16.msra.mxu0 %v5044
  %5067 = vmatprep.subr.bf16.mxu0 0
  %5068 = vmatpush1.bf16.msra.mxu0 %v5045
  %5069 = vmatprep.subr.bf16.mxu0 0
  %5070 = vmatpush1.bf16.msra.mxu0 %v5046
  %5071 = vmatprep.subr.bf16.mxu0 0
  %5072 = vmatpush1.bf16.msra.mxu0 0
  %5073 = vmatprep.subr.bf16.mxu0 0
  %5074 = vmatpush1.bf16.msra.mxu0 0
  %5075 = vmatprep.subr.bf16.mxu0 0
  %5076 = vmatpush1.bf16.msra.mxu0 0
  %5077 = vmatprep.subr.bf16.mxu0 0
  %5078 = vmatpush1.bf16.msra.mxu0 0
  %5079 = vmatprep.subr.bf16.mxu0 0
  %5080 = vmatpush1.bf16.msra.mxu0 0
  %5081 = vmatprep.subr.bf16.mxu0 0
  %5082 = vmatpush1.bf16.msra.mxu0 0
  %5083 = vmatprep.subr.bf16.mxu0 0
  %5084 = vmatpush1.bf16.msra.mxu0 0
  %5085 = vmatprep.subr.bf16.mxu0 0
  %5086 = vmatpush1.bf16.msra.mxu0 0
  %5087 = vmatprep.mubr.bf16.mxu0 0
  %5088 = vmatmul.mubr.bf16.gmra.mrb[0].mxu0 %v4260
  %v5089 = vpop.f32.mrb[0].mxu0
  %v5090 = vadd.f32 %v4985, %v5089
  %v5091 = vpop.f32.mrb[0].mxu0
  %v5092 = vpop.f32.mrb[0].mxu0
  %v5093 = vpop.f32.mrb[0].mxu0
  %5094 = vdwg.mxu0
  %v5095 = vld [vmem:[%s4 + $0xe] sm:$0x1]
  %v5096 = vlaneseq
  %v5097 = vshrl.u32 %v5096, 7
  %v5098 = vsub.s32 0, %v5097
  %v5099 = vrot.slane %v5095, %v5098
  %v5100 = vadd.f32 %v5090, %v5099
  %v5101 = vmul.f32 %v5100, 0.1
  %v5102 = vmax.f32 %v5100, %v5101
  %v5103 = vpack.c.bf16 %v5102, %v5102
  %s5104 = scalar_lea.vmem %s3, 1024
  %v5105 = vld [vmem:[%s5104] sm:$0xf]
  %v5106 = vld [vmem:[%s5104 + $0x4] sm:$0xf]
  %v5107 = vld [vmem:[%s5104 + $0x8] sm:$0xf]
  %v5108 = vld [vmem:[%s5104 + $0xc] sm:$0xf]
  %v5109 = vld [vmem:[%s5104 + $0x10] sm:$0xf]
  %v5110 = vld [vmem:[%s5104 + $0x14] sm:$0xf]
  %v5111 = vld [vmem:[%s5104 + $0x18] sm:$0xf]
  %v5112 = vld [vmem:[%s5104 + $0x1c] sm:$0xf]
  %v5113 = vld [vmem:[%s5104 + $0x20] sm:$0xf]
  %v5114 = vld [vmem:[%s5104 + $0x24] sm:$0xf]
  %v5115 = vld [vmem:[%s5104 + $0x28] sm:$0xf]
  %v5116 = vld [vmem:[%s5104 + $0x2c] sm:$0xf]
  %v5117 = vld [vmem:[%s5104 + $0x30] sm:$0xf]
  %v5118 = vld [vmem:[%s5104 + $0x34] sm:$0xf]
  %v5119 = vld [vmem:[%s5104 + $0x38] sm:$0xf]
  %v5120 = vld [vmem:[%s5104 + $0x3c] sm:$0xf]
  %v5121 = vld [vmem:[%s4 + $0x10] sm:$0x1]
  %v5122 = vlaneseq
  %v5123 = vshrl.u32 %v5122, 7
  %v5124 = vsub.s32 0, %v5123
  %v5125 = vrot.slane %v5121, %v5124
  %v5142 = vunpack.c.l.b16 %v5105
  %v5143 = vunpack.c.l.b16 %v5106
  %v5144 = vunpack.c.l.b16 %v5107
  %v5145 = vunpack.c.l.b16 %v5108
  %v5146 = vunpack.c.l.b16 %v5109
  %v5147 = vunpack.c.l.b16 %v5110
  %v5148 = vunpack.c.l.b16 %v5111
  %v5149 = vunpack.c.l.b16 %v5112
  %v5150 = vunpack.c.l.b16 %v5113
  %v5151 = vunpack.c.l.b16 %v5114
  %v5152 = vunpack.c.l.b16 %v5115
  %v5153 = vunpack.c.l.b16 %v5116
  %v5154 = vunpack.c.l.b16 %v5117
  %v5155 = vunpack.c.l.b16 %v5118
  %v5156 = vunpack.c.l.b16 %v5119
  %v5157 = vunpack.c.l.b16 %v5120
  %v5158 = vpack.c.b16 %v5143, %v5142
  %v5159 = vpack.c.b16 %v5145, %v5144
  %v5160 = vpack.c.b16 %v5147, %v5146
  %v5161 = vpack.c.b16 %v5149, %v5148
  %v5162 = vpack.c.b16 %v5151, %v5150
  %v5163 = vpack.c.b16 %v5153, %v5152
  %v5164 = vpack.c.b16 %v5155, %v5154
  %v5165 = vpack.c.b16 %v5157, %v5156
  %5174 = vmatprep.subr.bf16.mxu0 0
  %5175 = vmatpush1.bf16.msra.mxu0 %v5158
  %5176 = vmatprep.subr.bf16.mxu0 0
  %5177 = vmatpush1.bf16.msra.mxu0 %v5159
  %5178 = vmatprep.subr.bf16.mxu0 0
  %5179 = vmatpush1.bf16.msra.mxu0 %v5160
  %5180 = vmatprep.subr.bf16.mxu0 0
  %5181 = vmatpush1.bf16.msra.mxu0 %v5161
  %5182 = vmatprep.subr.bf16.mxu0 0
  %5183 = vmatpush1.bf16.msra.mxu0 %v5162
  %5184 = vmatprep.subr.bf16.mxu0 0
  %5185 = vmatpush1.bf16.msra.mxu0 %v5163
  %5186 = vmatprep.subr.bf16.mxu0 0
  %5187 = vmatpush1.bf16.msra.mxu0 %v5164
  %5188 = vmatprep.subr.bf16.mxu0 0
  %5189 = vmatpush1.bf16.msra.mxu0 %v5165
  %5190 = vmatprep.subr.bf16.mxu0 0
  %5191 = vmatpush1.bf16.msra.mxu0 0
  %5192 = vmatprep.subr.bf16.mxu0 0
  %5193 = vmatpush1.bf16.msra.mxu0 0
  %5194 = vmatprep.subr.bf16.mxu0 0
  %5195 = vmatpush1.bf16.msra.mxu0 0
  %5196 = vmatprep.subr.bf16.mxu0 0
  %5197 = vmatpush1.bf16.msra.mxu0 0
  %5198 = vmatprep.subr.bf16.mxu0 0
  %5199 = vmatpush1.bf16.msra.mxu0 0
  %5200 = vmatprep.subr.bf16.mxu0 0
  %5201 = vmatpush1.bf16.msra.mxu0 0
  %5202 = vmatprep.subr.bf16.mxu0 0
  %5203 = vmatpush1.bf16.msra.mxu0 0
  %5204 = vmatprep.subr.bf16.mxu0 0
  %5205 = vmatpush1.bf16.msra.mxu0 0
  %5206 = vmatprep.mubr.bf16.mxu0 0
  %5207 = vmatmul.mubr.bf16.gmra.mrb[0].mxu0 %v5103
  %v5208 = vpop.f32.mrb[0].mxu0
  %v5209 = vadd.f32 %v5125, %v5208
  %v5210 = vpop.f32.mrb[0].mxu0
  %v5211 = vpop.f32.mrb[0].mxu0
  %v5212 = vpop.f32.mrb[0].mxu0
  %5213 = vdwg.mxu0
  %v5214 = vmul.f32 %v5209, 0.1
  %v5215 = vmax.f32 %v5209, %v5214
  %v5216 = vpack.c.bf16 %v5215, %v5215
  %s5217 = scalar_lea.vmem %s3, 1088
  %v5218 = vld [vmem:[%s5217] sm:$0xf]
  %v5219 = vld [vmem:[%s5217 + $0x4] sm:$0xf]
  %v5220 = vld [vmem:[%s5217 + $0x8] sm:$0xf]
  %v5221 = vld [vmem:[%s5217 + $0xc] sm:$0xf]
  %v5222 = vld [vmem:[%s5217 + $0x10] sm:$0xf]
  %v5223 = vld [vmem:[%s5217 + $0x14] sm:$0xf]
  %v5224 = vld [vmem:[%s5217 + $0x18] sm:$0xf]
  %v5225 = vld [vmem:[%s5217 + $0x1c] sm:$0xf]
  %v5226 = vld [vmem:[%s5217 + $0x20] sm:$0xf]
  %v5227 = vld [vmem:[%s5217 + $0x24] sm:$0xf]
  %v5228 = vld [vmem:[%s5217 + $0x28] sm:$0xf]
  %v5229 = vld [vmem:[%s5217 + $0x2c] sm:$0xf]
  %v5230 = vld [vmem:[%s5217 + $0x30] sm:$0xf]
  %v5231 = vld [vmem:[%s5217 + $0x34] sm:$0xf]
  %v5232 = vld [vmem:[%s5217 + $0x38] sm:$0xf]
  %v5233 = vld [vmem:[%s5217 + $0x3c] sm:$0xf]
  %v5234 = vld [vmem:[%s4 + $0x11] sm:$0x1]
  %v5235 = vlaneseq
  %v5236 = vshrl.u32 %v5235, 7
  %v5237 = vsub.s32 0, %v5236
  %v5238 = vrot.slane %v5234, %v5237
  %v5255 = vunpack.c.l.b16 %v5218
  %v5256 = vunpack.c.l.b16 %v5219
  %v5257 = vunpack.c.l.b16 %v5220
  %v5258 = vunpack.c.l.b16 %v5221
  %v5259 = vunpack.c.l.b16 %v5222
  %v5260 = vunpack.c.l.b16 %v5223
  %v5261 = vunpack.c.l.b16 %v5224
  %v5262 = vunpack.c.l.b16 %v5225
  %v5263 = vunpack.c.l.b16 %v5226
  %v5264 = vunpack.c.l.b16 %v5227
  %v5265 = vunpack.c.l.b16 %v5228
  %v5266 = vunpack.c.l.b16 %v5229
  %v5267 = vunpack.c.l.b16 %v5230
  %v5268 = vunpack.c.l.b16 %v5231
  %v5269 = vunpack.c.l.b16 %v5232
  %v5270 = vunpack.c.l.b16 %v5233
  %v5271 = vpack.c.b16 %v5256, %v5255
  %v5272 = vpack.c.b16 %v5258, %v5257
  %v5273 = vpack.c.b16 %v5260, %v5259
  %v5274 = vpack.c.b16 %v5262, %v5261
  %v5275 = vpack.c.b16 %v5264, %v5263
  %v5276 = vpack.c.b16 %v5266, %v5265
  %v5277 = vpack.c.b16 %v5268, %v5267
  %v5278 = vpack.c.b16 %v5270, %v5269
  %5287 = vmatprep.subr.bf16.mxu0 0
  %5288 = vmatpush1.bf16.msra.mxu0 %v5271
  %5289 = vmatprep.subr.bf16.mxu0 0
  %5290 = vmatpush1.bf16.msra.mxu0 %v5272
  %5291 = vmatprep.subr.bf16.mxu0 0
  %5292 = vmatpush1.bf16.msra.mxu0 %v5273
  %5293 = vmatprep.subr.bf16.mxu0 0
  %5294 = vmatpush1.bf16.msra.mxu0 %v5274
  %5295 = vmatprep.subr.bf16.mxu0 0
  %5296 = vmatpush1.bf16.msra.mxu0 %v5275
  %5297 = vmatprep.subr.bf16.mxu0 0
  %5298 = vmatpush1.bf16.msra.mxu0 %v5276
  %5299 = vmatprep.subr.bf16.mxu0 0
  %5300 = vmatpush1.bf16.msra.mxu0 %v5277
  %5301 = vmatprep.subr.bf16.mxu0 0
  %5302 = vmatpush1.bf16.msra.mxu0 %v5278
  %5303 = vmatprep.subr.bf16.mxu0 0
  %5304 = vmatpush1.bf16.msra.mxu0 0
  %5305 = vmatprep.subr.bf16.mxu0 0
  %5306 = vmatpush1.bf16.msra.mxu0 0
  %5307 = vmatprep.subr.bf16.mxu0 0
  %5308 = vmatpush1.bf16.msra.mxu0 0
  %5309 = vmatprep.subr.bf16.mxu0 0
  %5310 = vmatpush1.bf16.msra.mxu0 0
  %5311 = vmatprep.subr.bf16.mxu0 0
  %5312 = vmatpush1.bf16.msra.mxu0 0
  %5313 = vmatprep.subr.bf16.mxu0 0
  %5314 = vmatpush1.bf16.msra.mxu0 0
  %5315 = vmatprep.subr.bf16.mxu0 0
  %5316 = vmatpush1.bf16.msra.mxu0 0
  %5317 = vmatprep.subr.bf16.mxu0 0
  %5318 = vmatpush1.bf16.msra.mxu0 0
  %5319 = vmatprep.mubr.bf16.mxu0 0
  %5320 = vmatmul.mubr.bf16.gmra.mrb[0].mxu0 %v5216
  %v5321 = vpop.f32.mrb[0].mxu0
  %v5322 = vadd.f32 %v5238, %v5321
  %v5323 = vpop.f32.mrb[0].mxu0
  %v5324 = vpop.f32.mrb[0].mxu0
  %v5325 = vpop.f32.mrb[0].mxu0
  %5326 = vdwg.mxu0
  %v5327 = vmul.f32 %v5322, 0.1
  %v5328 = vmax.f32 %v5322, %v5327
  %v5329 = vpack.c.bf16 %v5328, %v5328
  %s5330 = scalar_lea.vmem %s3, 1152
  %v5331 = vld [vmem:[%s5330] sm:$0xf]
  %v5332 = vld [vmem:[%s5330 + $0x4] sm:$0xf]
  %v5333 = vld [vmem:[%s5330 + $0x8] sm:$0xf]
  %v5334 = vld [vmem:[%s5330 + $0xc] sm:$0xf]
  %v5335 = vld [vmem:[%s5330 + $0x10] sm:$0xf]
  %v5336 = vld [vmem:[%s5330 + $0x14] sm:$0xf]
  %v5337 = vld [vmem:[%s5330 + $0x18] sm:$0xf]
  %v5338 = vld [vmem:[%s5330 + $0x1c] sm:$0xf]
  %v5339 = vld [vmem:[%s5330 + $0x20] sm:$0xf]
  %v5340 = vld [vmem:[%s5330 + $0x24] sm:$0xf]
  %v5341 = vld [vmem:[%s5330 + $0x28] sm:$0xf]
  %v5342 = vld [vmem:[%s5330 + $0x2c] sm:$0xf]
  %v5343 = vld [vmem:[%s5330 + $0x30] sm:$0xf]
  %v5344 = vld [vmem:[%s5330 + $0x34] sm:$0xf]
  %v5345 = vld [vmem:[%s5330 + $0x38] sm:$0xf]
  %v5346 = vld [vmem:[%s5330 + $0x3c] sm:$0xf]
  %v5347 = vld [vmem:[%s4 + $0x12] sm:$0x1]
  %v5348 = vlaneseq
  %v5349 = vshrl.u32 %v5348, 7
  %v5350 = vsub.s32 0, %v5349
  %v5351 = vrot.slane %v5347, %v5350
  %v5368 = vunpack.c.l.b16 %v5331
  %v5369 = vunpack.c.l.b16 %v5332
  %v5370 = vunpack.c.l.b16 %v5333
  %v5371 = vunpack.c.l.b16 %v5334
  %v5372 = vunpack.c.l.b16 %v5335
  %v5373 = vunpack.c.l.b16 %v5336
  %v5374 = vunpack.c.l.b16 %v5337
  %v5375 = vunpack.c.l.b16 %v5338
  %v5376 = vunpack.c.l.b16 %v5339
  %v5377 = vunpack.c.l.b16 %v5340
  %v5378 = vunpack.c.l.b16 %v5341
  %v5379 = vunpack.c.l.b16 %v5342
  %v5380 = vunpack.c.l.b16 %v5343
  %v5381 = vunpack.c.l.b16 %v5344
  %v5382 = vunpack.c.l.b16 %v5345
  %v5383 = vunpack.c.l.b16 %v5346
  %v5384 = vpack.c.b16 %v5369, %v5368
  %v5385 = vpack.c.b16 %v5371, %v5370
  %v5386 = vpack.c.b16 %v5373, %v5372
  %v5387 = vpack.c.b16 %v5375, %v5374
  %v5388 = vpack.c.b16 %v5377, %v5376
  %v5389 = vpack.c.b16 %v5379, %v5378
  %v5390 = vpack.c.b16 %v5381, %v5380
  %v5391 = vpack.c.b16 %v5383, %v5382
  %5400 = vmatprep.subr.bf16.mxu0 0
  %5401 = vmatpush1.bf16.msra.mxu0 %v5384
  %5402 = vmatprep.subr.bf16.mxu0 0
  %5403 = vmatpush1.bf16.msra.mxu0 %v5385
  %5404 = vmatprep.subr.bf16.mxu0 0
  %5405 = vmatpush1.bf16.msra.mxu0 %v5386
  %5406 = vmatprep.subr.bf16.mxu0 0
  %5407 = vmatpush1.bf16.msra.mxu0 %v5387
  %5408 = vmatprep.subr.bf16.mxu0 0
  %5409 = vmatpush1.bf16.msra.mxu0 %v5388
  %5410 = vmatprep.subr.bf16.mxu0 0
  %5411 = vmatpush1.bf16.msra.mxu0 %v5389
  %5412 = vmatprep.subr.bf16.mxu0 0
  %5413 = vmatpush1.bf16.msra.mxu0 %v5390
  %5414 = vmatprep.subr.bf16.mxu0 0
  %5415 = vmatpush1.bf16.msra.mxu0 %v5391
  %5416 = vmatprep.subr.bf16.mxu0 0
  %5417 = vmatpush1.bf16.msra.mxu0 0
  %5418 = vmatprep.subr.bf16.mxu0 0
  %5419 = vmatpush1.bf16.msra.mxu0 0
  %5420 = vmatprep.subr.bf16.mxu0 0
  %5421 = vmatpush1.bf16.msra.mxu0 0
  %5422 = vmatprep.subr.bf16.mxu0 0
  %5423 = vmatpush1.bf16.msra.mxu0 0
  %5424 = vmatprep.subr.bf16.mxu0 0
  %5425 = vmatpush1.bf16.msra.mxu0 0
  %5426 = vmatprep.subr.bf16.mxu0 0
  %5427 = vmatpush1.bf16.msra.mxu0 0
  %5428 = vmatprep.subr.bf16.mxu0 0
  %5429 = vmatpush1.bf16.msra.mxu0 0
  %5430 = vmatprep.subr.bf16.mxu0 0
  %5431 = vmatpush1.bf16.msra.mxu0 0
  %5432 = vmatprep.mubr.bf16.mxu0 0
  %5433 = vmatmul.mubr.bf16.gmra.mrb[0].mxu0 %v5329
  %v5434 = vpop.f32.mrb[0].mxu0
  %v5435 = vadd.f32 %v5351, %v5434
  %v5436 = vpop.f32.mrb[0].mxu0
  %v5437 = vpop.f32.mrb[0].mxu0
  %v5438 = vpop.f32.mrb[0].mxu0
  %5439 = vdwg.mxu0
  %5440 = vmatprep.subr.bf16.mxu0 0
  %5441 = vmatpush1.bf16.msra.mxu0 %v5039
  %5442 = vmatprep.subr.bf16.mxu0 0
  %5443 = vmatpush1.bf16.msra.mxu0 %v5040
  %5444 = vmatprep.subr.bf16.mxu0 0
  %5445 = vmatpush1.bf16.msra.mxu0 %v5041
  %5446 = vmatprep.subr.bf16.mxu0 0
  %5447 = vmatpush1.bf16.msra.mxu0 %v5042
  %5448 = vmatprep.subr.bf16.mxu0 0
  %5449 = vmatpush1.bf16.msra.mxu0 %v5043
  %5450 = vmatprep.subr.bf16.mxu0 0
  %5451 = vmatpush1.bf16.msra.mxu0 %v5044
  %5452 = vmatprep.subr.bf16.mxu0 0
  %5453 = vmatpush1.bf16.msra.mxu0 %v5045
  %5454 = vmatprep.subr.bf16.mxu0 0
  %5455 = vmatpush1.bf16.msra.mxu0 %v5046
  %5456 = vmatprep.subr.bf16.mxu0 0
  %5457 = vmatpush1.bf16.msra.mxu0 0
  %5458 = vmatprep.subr.bf16.mxu0 0
  %5459 = vmatpush1.bf16.msra.mxu0 0
  %5460 = vmatprep.subr.bf16.mxu0 0
  %5461 = vmatpush1.bf16.msra.mxu0 0
  %5462 = vmatprep.subr.bf16.mxu0 0
  %5463 = vmatpush1.bf16.msra.mxu0 0
  %5464 = vmatprep.subr.bf16.mxu0 0
  %5465 = vmatpush1.bf16.msra.mxu0 0
  %5466 = vmatprep.subr.bf16.mxu0 0
  %5467 = vmatpush1.bf16.msra.mxu0 0
  %5468 = vmatprep.subr.bf16.mxu0 0
  %5469 = vmatpush1.bf16.msra.mxu0 0
  %5470 = vmatprep.subr.bf16.mxu0 0
  %5471 = vmatpush1.bf16.msra.mxu0 0
  %5472 = vmatprep.mubr.bf16.mxu0 0
  %5473 = vmatmul.mubr.bf16.gmra.mrb[0].mxu0 %v4266
  %v5474 = vpop.f32.mrb[0].mxu0
  %v5475 = vadd.f32 %v4985, %v5474
  %v5476 = vpop.f32.mrb[0].mxu0
  %v5477 = vpop.f32.mrb[0].mxu0
  %v5478 = vpop.f32.mrb[0].mxu0
  %5479 = vdwg.mxu0
  %v5480 = vadd.f32 %v5475, %v5099
  %v5481 = vmul.f32 %v5480, 0.1
  %v5482 = vmax.f32 %v5480, %v5481
  %v5483 = vpack.c.bf16 %v5482, %v5482
  %5484 = vmatprep.subr.bf16.mxu0 0
  %5485 = vmatpush1.bf16.msra.mxu0 %v5158
  %5486 = vmatprep.subr.bf16.mxu0 0
  %5487 = vmatpush1.bf16.msra.mxu0 %v5159
  %5488 = vmatprep.subr.bf16.mxu0 0
  %5489 = vmatpush1.bf16.msra.mxu0 %v5160
  %5490 = vmatprep.subr.bf16.mxu0 0
  %5491 = vmatpush1.bf16.msra.mxu0 %v5161
  %5492 = vmatprep.subr.bf16.mxu0 0
  %5493 = vmatpush1.bf16.msra.mxu0 %v5162
  %5494 = vmatprep.subr.bf16.mxu0 0
  %5495 = vmatpush1.bf16.msra.mxu0 %v5163
  %5496 = vmatprep.subr.bf16.mxu0 0
  %5497 = vmatpush1.bf16.msra.mxu0 %v5164
  %5498 = vmatprep.subr.bf16.mxu0 0
  %5499 = vmatpush1.bf16.msra.mxu0 %v5165
  %5500 = vmatprep.subr.bf16.mxu0 0
  %5501 = vmatpush1.bf16.msra.mxu0 0
  %5502 = vmatprep.subr.bf16.mxu0 0
  %5503 = vmatpush1.bf16.msra.mxu0 0
  %5504 = vmatprep.subr.bf16.mxu0 0
  %5505 = vmatpush1.bf16.msra.mxu0 0
  %5506 = vmatprep.subr.bf16.mxu0 0
  %5507 = vmatpush1.bf16.msra.mxu0 0
  %5508 = vmatprep.subr.bf16.mxu0 0
  %5509 = vmatpush1.bf16.msra.mxu0 0
  %5510 = vmatprep.subr.bf16.mxu0 0
  %5511 = vmatpush1.bf16.msra.mxu0 0
  %5512 = vmatprep.subr.bf16.mxu0 0
  %5513 = vmatpush1.bf16.msra.mxu0 0
  %5514 = vmatprep.subr.bf16.mxu0 0
  %5515 = vmatpush1.bf16.msra.mxu0 0
  %5516 = vmatprep.mubr.bf16.mxu0 0
  %5517 = vmatmul.mubr.bf16.gmra.mrb[0].mxu0 %v5483
  %v5518 = vpop.f32.mrb[0].mxu0
  %v5519 = vadd.f32 %v5125, %v5518
  %v5520 = vpop.f32.mrb[0].mxu0
  %v5521 = vpop.f32.mrb[0].mxu0
  %v5522 = vpop.f32.mrb[0].mxu0
  %5523 = vdwg.mxu0
  %v5524 = vmul.f32 %v5519, 0.1
  %v5525 = vmax.f32 %v5519, %v5524
  %v5526 = vpack.c.bf16 %v5525, %v5525
  %5527 = vmatprep.subr.bf16.mxu0 0
  %5528 = vmatpush1.bf16.msra.mxu0 %v5271
  %5529 = vmatprep.subr.bf16.mxu0 0
  %5530 = vmatpush1.bf16.msra.mxu0 %v5272
  %5531 = vmatprep.subr.bf16.mxu0 0
  %5532 = vmatpush1.bf16.msra.mxu0 %v5273
  %5533 = vmatprep.subr.bf16.mxu0 0
  %5534 = vmatpush1.bf16.msra.mxu0 %v5274
  %5535 = vmatprep.subr.bf16.mxu0 0
  %5536 = vmatpush1.bf16.msra.mxu0 %v5275
  %5537 = vmatprep.subr.bf16.mxu0 0
  %5538 = vmatpush1.bf16.msra.mxu0 %v5276
  %5539 = vmatprep.subr.bf16.mxu0 0
  %5540 = vmatpush1.bf16.msra.mxu0 %v5277
  %5541 = vmatprep.subr.bf16.mxu0 0
  %5542 = vmatpush1.bf16.msra.mxu0 %v5278
  %5543 = vmatprep.subr.bf16.mxu0 0
  %5544 = vmatpush1.bf16.msra.mxu0 0
  %5545 = vmatprep.subr.bf16.mxu0 0
  %5546 = vmatpush1.bf16.msra.mxu0 0
  %5547 = vmatprep.subr.bf16.mxu0 0
  %5548 = vmatpush1.bf16.msra.mxu0 0
  %5549 = vmatprep.subr.bf16.mxu0 0
  %5550 = vmatpush1.bf16.msra.mxu0 0
  %5551 = vmatprep.subr.bf16.mxu0 0
  %5552 = vmatpush1.bf16.msra.mxu0 0
  %5553 = vmatprep.subr.bf16.mxu0 0
  %5554 = vmatpush1.bf16.msra.mxu0 0
  %5555 = vmatprep.subr.bf16.mxu0 0
  %5556 = vmatpush1.bf16.msra.mxu0 0
  %5557 = vmatprep.subr.bf16.mxu0 0
  %5558 = vmatpush1.bf16.msra.mxu0 0
  %5559 = vmatprep.mubr.bf16.mxu0 0
  %5560 = vmatmul.mubr.bf16.gmra.mrb[0].mxu0 %v5526
  %v5561 = vpop.f32.mrb[0].mxu0
  %v5562 = vadd.f32 %v5238, %v5561
  %v5563 = vpop.f32.mrb[0].mxu0
  %v5564 = vpop.f32.mrb[0].mxu0
  %v5565 = vpop.f32.mrb[0].mxu0
  %5566 = vdwg.mxu0
  %v5567 = vmul.f32 %v5562, 0.1
  %v5568 = vmax.f32 %v5562, %v5567
  %v5569 = vpack.c.bf16 %v5568, %v5568
  %5570 = vmatprep.subr.bf16.mxu0 0
  %5571 = vmatpush1.bf16.msra.mxu0 %v5384
  %5572 = vmatprep.subr.bf16.mxu0 0
  %5573 = vmatpush1.bf16.msra.mxu0 %v5385
  %5574 = vmatprep.subr.bf16.mxu0 0
  %5575 = vmatpush1.bf16.msra.mxu0 %v5386
  %5576 = vmatprep.subr.bf16.mxu0 0
  %5577 = vmatpush1.bf16.msra.mxu0 %v5387
  %5578 = vmatprep.subr.bf16.mxu0 0
  %5579 = vmatpush1.bf16.msra.mxu0 %v5388
  %5580 = vmatprep.subr.bf16.mxu0 0
  %5581 = vmatpush1.bf16.msra.mxu0 %v5389
  %5582 = vmatprep.subr.bf16.mxu0 0
  %5583 = vmatpush1.bf16.msra.mxu0 %v5390
  %5584 = vmatprep.subr.bf16.mxu0 0
  %5585 = vmatpush1.bf16.msra.mxu0 %v5391
  %5586 = vmatprep.subr.bf16.mxu0 0
  %5587 = vmatpush1.bf16.msra.mxu0 0
  %5588 = vmatprep.subr.bf16.mxu0 0
  %5589 = vmatpush1.bf16.msra.mxu0 0
  %5590 = vmatprep.subr.bf16.mxu0 0
  %5591 = vmatpush1.bf16.msra.mxu0 0
  %5592 = vmatprep.subr.bf16.mxu0 0
  %5593 = vmatpush1.bf16.msra.mxu0 0
  %5594 = vmatprep.subr.bf16.mxu0 0
  %5595 = vmatpush1.bf16.msra.mxu0 0
  %5596 = vmatprep.subr.bf16.mxu0 0
  %5597 = vmatpush1.bf16.msra.mxu0 0
  %5598 = vmatprep.subr.bf16.mxu0 0
  %5599 = vmatpush1.bf16.msra.mxu0 0
  %5600 = vmatprep.subr.bf16.mxu0 0
  %5601 = vmatpush1.bf16.msra.mxu0 0
  %5602 = vmatprep.mubr.bf16.mxu0 0
  %5603 = vmatmul.mubr.bf16.gmra.mrb[0].mxu0 %v5569
  %v5604 = vpop.f32.mrb[0].mxu0
  %v5605 = vadd.f32 %v5351, %v5604
  %v5606 = vpop.f32.mrb[0].mxu0
  %v5607 = vpop.f32.mrb[0].mxu0
  %v5608 = vpop.f32.mrb[0].mxu0
  %5609 = vdwg.mxu0
  %5611 = vrot.lane.b32.xlu0 %v3581, 64
  %v5612 = vpop.permute.xlu0 %5611
  %5615 = vrot.lane.b32.xlu0 %v3691, 80
  %v5616 = vpop.permute.xlu0 %5615
  %5619 = vrot.lane.b32.xlu0 %v4140, 96
  %v5620 = vpop.permute.xlu0 %5619
  %5623 = vrot.lane.b32.xlu0 %v4250, 112
  %v5624 = vpop.permute.xlu0 %5623
  %v5626 = vsel %vm3135, %v3134, %v5612
  %vm5627 = vcmask 654336
  %v5628 = vsel %vm5627, %v5626, %v5616
  %vm5629 = vcmask 785408
  %v5630 = vsel %vm5629, %v5628, %v5620
  %vm5631 = vcmask 916480
  %v5632 = vsel %vm5631, %v5630, %v5624
  %5633 = vst [vmem:[%s5] sm:$0xff] %v5632
  %5635 = vrot.lane.b32.xlu0 %v4880, 64
  %v5636 = vpop.permute.xlu0 %5635
  %v5638 = vsel %vm3135, %v4711, %v5636
  %5639 = vst [vmem:[%s6] sm:$0xff] %v5638
  %5640 = vst [vmem:[%s7] sm:$0xff] %v5435
  %5641 = vst [vmem:[%s7 + $0x8] sm:$0xff] %v5605
  // Predicated region
  $region22: #{apfg_forward.1} parent=0 // pred_check
    _
  $region23: #{apfg_forward.1} parent=0 // pred_check_branch
    %5643 = sbr.rel (0) target = $region25
  $region24: #{apfg_forward.1} parent=0 // pred_region
    _
  $region25: #{apfg_forward.1} parent=0 // pred_fallthru
    _
  // Predicated region
  $region26: #{apfg_forward.1} parent=0 // pred_check
    _
  $region27: #{apfg_forward.1} parent=0 // pred_check_branch
    %5645 = sbr.rel (0) target = $region29
  $region28: #{apfg_forward.1} parent=0 // pred_region
    _
  $region29: #{apfg_forward.1} parent=0 // pred_fallthru
    _
  // Predicated region
  $region30: #{apfg_forward.1} parent=0 // pred_check
    _
  $region31: #{apfg_forward.1} parent=0 // pred_check_branch
    %5647 = sbr.rel (0) target = $region33
  $region32: #{apfg_forward.1} parent=0 // pred_region
    _
  $region33: #{apfg_forward.1} parent=0 // pred_fallthru
    _
  // Predicated region
  $region34: #{apfg_forward.1} parent=0 // pred_check
    _
  $region35: #{apfg_forward.1} parent=0 // pred_check_branch
    %5649 = sbr.rel (0) target = $region37
  $region36: #{apfg_forward.1} parent=0 // pred_region
    _
  $region37: #{apfg_forward.1} parent=0 // pred_fallthru
    _
  // Predicated region
  $region38: #{apfg_forward.1} parent=0 // pred_check
    _
  $region39: #{apfg_forward.1} parent=0 // pred_check_branch
    %5651 = sbr.rel (0) target = $region41
  $region40: #{apfg_forward.1} parent=0 // pred_region
    _
  $region41: #{apfg_forward.1} parent=0 // pred_fallthru
    _
  // Predicated region
  $region42: #{apfg_forward.1} parent=0 // pred_check
    _
  $region43: #{apfg_forward.1} parent=0 // pred_check_branch
    %5653 = sbr.rel (0) target = $region45
  $region44: #{apfg_forward.1} parent=0 // pred_region
    _
  $region45: #{apfg_forward.1} parent=0 // pred_fallthru
    _

</llo_original>
